<compile_context>
chip_gen: v6e
topology: v6e:2x2x1
jax: 0.10.0
libtpu: 0.0.40
codegen_flags: <defaults>
</compile_context>

<pallas_src>
import jax
import jax.numpy as jnp
from jax.experimental import pallas as pl
from jax.experimental.pallas import tpu as pltpu

VGG19_CFG = [64, 64, 'M', 128, 128, 'M', 256, 256, 256, 256, 'M',
             512, 512, 512, 512, 'M', 512, 512, 512, 512, 'M']


# ---------------------------------------------------------------------------
# Conv 3x3 (pad=1, stride=1) + bias + ReLU  [+ fused 2x2/stride-2 maxpool]
# ---------------------------------------------------------------------------
def _make_conv_kernel(H, W, TH, cin, cout, pool):
    """Builds the kernel body for one conv layer (all shapes static)."""

    def kernel(x_ref, w_ref, b_ref, o_ref, xp_ref):
        # x_ref : (1, H, W, cin)        bf16, whole image for batch element n
        # w_ref : (3, 3, cin, cout)     bf16
        # b_ref : (1, cout)             f32
        # o_ref : (1, THo, Wo, cout)    bf16, one output row tile
        # xp_ref: (H+2, W+2, cin)       bf16 VMEM scratch, zero-padded image
        i = pl.program_id(1)

        # Build the zero-padded image in VMEM once per batch element
        # (the row-tile axis iterates innermost and sequentially).
        @pl.when(i == 0)
        def _():
            xp_ref[...] = jnp.zeros_like(xp_ref)
            xp_ref[pl.ds(1, H), pl.ds(1, W), :] = x_ref[0]

        row0 = pl.multiple_of(i * TH, TH)

        # 9 shifted (TH*W, cin) @ (cin, cout) MXU matmuls, f32 accumulation.
        acc = None
        for dy in range(3):
            for dx in range(3):
                xs = xp_ref[pl.ds(row0 + dy, TH), pl.ds(dx, W), :]
                d = jnp.dot(xs.reshape(TH * W, cin), w_ref[dy, dx],
                            preferred_element_type=jnp.float32)
                acc = d if acc is None else acc + d

        # bias + ReLU in f32.
        y = jnp.maximum(acc + b_ref[...], 0.0)
        y = y.reshape(TH, W, cout)

        if pool:
            # Fused 2x2 / stride-2 max pool on the f32 tile before the store.
            yr = y.reshape(TH // 2, 2, W, cout)
            r = jnp.maximum(yr[:, 0], yr[:, 1])           # (TH//2, W, cout)
            rc = r.reshape(TH // 2, W // 2, 2, cout)
            y = jnp.maximum(rc[:, :, 0, :], rc[:, :, 1, :])  # (TH//2, W//2, C)

        o_ref[0] = y.astype(o_ref.dtype)

    return kernel


def conv3x3_relu_maybe_pool(x, w, b, pool):
    # x: (N, H, W, cin) bf16 NHWC ; w: (3, 3, cin, cout) bf16 ; b: (1, cout) f32
    N, H, W, cin = x.shape
    cout = w.shape[-1]
    TH = min(H, 8)                       # output-row tile (divides H; even when pooling)
    if pool:
        Ho, Wo, THo = H // 2, W // 2, TH // 2
    else:
        Ho, Wo, THo = H, W, TH

    kernel = _make_conv_kernel(H, W, TH, cin, cout, pool)

    return pl.pallas_call(
        kernel,
        out_shape=jax.ShapeDtypeStruct((N, Ho, Wo, cout), jnp.bfloat16),
        grid=(N, H // TH),
        in_specs=[
            pl.BlockSpec((1, H, W, cin), lambda n, i: (n, 0, 0, 0)),
            pl.BlockSpec((3, 3, cin, cout), lambda n, i: (0, 0, 0, 0)),
            pl.BlockSpec((1, cout), lambda n, i: (0, 0)),
        ],
        out_specs=pl.BlockSpec((1, THo, Wo, cout), lambda n, i: (n, i, 0, 0)),
        scratch_shapes=[pltpu.VMEM((H + 2, W + 2, cin), jnp.bfloat16)],
        compiler_params=pltpu.CompilerParams(
            # Row axis must stay "arbitrary": the padded-image scratch is
            # filled at row-tile 0 and reused by the following row tiles.
            dimension_semantics=("parallel", "arbitrary"),
            vmem_limit_bytes=48 * 1024 * 1024),   # valid on v7x's 64 MiB VMEM
    )(x, w, b)


# ---------------------------------------------------------------------------
# VGG19 features forward pass
# ---------------------------------------------------------------------------
def init_vgg19_params(key):
    params = []
    cin = 3
    for v in VGG19_CFG:
        if v == 'M':
            continue
        key, wk = jax.random.split(key)
        std = (2.0 / (9.0 * cin)) ** 0.5  # He-normal
        w = (jax.random.normal(wk, (3, 3, cin, v), jnp.float32) * std)
        params.append((w.astype(jnp.bfloat16), jnp.zeros((1, v), jnp.float32)))
        cin = v
    return params


def agg_conv_last_forward(x_nchw, params):
    # PyTorch semantics: x = vgg19.features(x) ; NCHW in, NCHW out.
    x = jnp.transpose(x_nchw, (0, 2, 3, 1)).astype(jnp.bfloat16)  # NHWC, bf16
    pi = 0
    i = 0
    while i < len(VGG19_CFG):
        v = VGG19_CFG[i]
        assert v != 'M'
        pool = (i + 1 < len(VGG19_CFG) and VGG19_CFG[i + 1] == 'M')
        w, b = params[pi]
        pi += 1
        x = conv3x3_relu_maybe_pool(x, w, b, pool)
        i += 2 if pool else 1
    return jnp.transpose(x.astype(jnp.float32), (0, 3, 1, 2))  # back to NCHW


if __name__ == "__main__":
    key = jax.random.PRNGKey(0)
    key, xk, pk = jax.random.split(key, 3)

    # Small input consistent with VGG19 features: NCHW, 3 input channels,
    # spatial 32 so that all 5 maxpools are valid (32 -> 1).
    x = jax.random.normal(xk, (2, 3, 32, 32), jnp.float32)
    params = init_vgg19_params(pk)

    out = agg_conv_last_forward(x, params)
    out = jax.block_until_ready(out)

    assert out.shape == (2, 512, 1, 1), out.shape
    assert out.dtype == jnp.float32
    print("KERNEL_OK")
</pallas_src>

<mosaic_0001>
module attributes {stable_mosaic.version = 11 : i64} {
  func.func @kernel(%arg0: i32, %arg1: i32, %arg2: memref<1x32x32x3xbf16, #tpu.memory_space<vmem>>, %arg3: memref<3x3x3x64xbf16, #tpu.memory_space<vmem>>, %arg4: memref<1x64xf32, #tpu.memory_space<vmem>>, %arg5: memref<1x8x32x64xbf16, #tpu.memory_space<vmem>>, %arg6: memref<34x34x3xbf16, #tpu.memory_space<vmem>>) attributes {dimension_semantics = [#tpu.dimension_semantics<parallel>, #tpu.dimension_semantics<arbitrary>], iteration_bounds = array<i64: 2, 4>, scalar_prefetch = 0 : i64, scratch_operands = 1 : i64, tpu.core_type = #tpu.core_type<tc>, window_params = [{transform_indices = @transform_0, window_bounds = array<i64: 1, 32, 32, 3>}, {pipeline_mode = #tpu.pipeline_mode<synchronous>, transform_indices = @transform_1, window_bounds = array<i64: 3, 3, 3, 64>}, {pipeline_mode = #tpu.pipeline_mode<synchronous>, transform_indices = @transform_2, window_bounds = array<i64: 1, 64>}, {transform_indices = @transform_3, window_bounds = array<i64: 1, 8, 32, 64>}]} {
    %c0_i32 = arith.constant 0 : i32
    %0 = arith.cmpi eq, %arg1, %c0_i32 : i32
    %1 = arith.extui %0 : i1 to i32
    %c0_i32_0 = arith.constant 0 : i32
    %2 = arith.cmpi ne, %1, %c0_i32_0 : i32
    scf.if %2 {
      %cst_74 = arith.constant 0.000000e+00 : bf16
      %86 = vector.broadcast %cst_74 : bf16 to vector<34x34x3xbf16>
      %c0_75 = arith.constant 0 : index
      %c0_76 = arith.constant 0 : index
      %c0_77 = arith.constant 0 : index
      %87 = vector.load %arg6[%c0_75, %c0_76, %c0_77] : memref<34x34x3xbf16, #tpu.memory_space<vmem>>, vector<34x34x3xbf16>
      tpu.vector_store %arg6[%c0_75, %c0_76, %c0_77], %86 {strides = array<i32>} : memref<34x34x3xbf16, #tpu.memory_space<vmem>>, vector<34x34x3xbf16>,
      %c0_78 = arith.constant 0 : index
      %c0_79 = arith.constant 0 : index
      %c0_80 = arith.constant 0 : index
      %c0_81 = arith.constant 0 : index
      %88 = vector.load %arg2[%c0_78, %c0_79, %c0_80, %c0_81] : memref<1x32x32x3xbf16, #tpu.memory_space<vmem>>, vector<1x32x32x3xbf16>
      %89 = vector.shape_cast %88 : vector<1x32x32x3xbf16> to vector<32x32x3xbf16>
      %c1_82 = arith.constant 1 : index
      %c1_83 = arith.constant 1 : index
      %c0_84 = arith.constant 0 : index
      %90 = vector.load %arg6[%c1_82, %c1_83, %c0_84] : memref<34x34x3xbf16, #tpu.memory_space<vmem>>, vector<32x32x3xbf16>
      tpu.vector_store %arg6[%c1_82, %c1_83, %c0_84], %89 {strides = array<i32>} : memref<34x34x3xbf16, #tpu.memory_space<vmem>>, vector<32x32x3xbf16>,
    } else {
    }
    %c8_i32 = arith.constant 8 : i32
    %3 = arith.muli %arg1, %c8_i32 : i32
    %4 = tpu.assume_multiple %3, 8 : i32
    %c0_i32_1 = arith.constant 0 : i32
    %5 = arith.addi %4, %c0_i32_1 : i32
    %6 = arith.index_cast %5 : i32 to index
    %c0 = arith.constant 0 : index
    %c0_2 = arith.constant 0 : index
    %7 = vector.load %arg6[%6, %c0, %c0_2] : memref<34x34x3xbf16, #tpu.memory_space<vmem>>, vector<8x32x3xbf16>
    %8 = vector.shape_cast %7 : vector<8x32x3xbf16> to vector<256x3xbf16>
    %c0_3 = arith.constant 0 : index
    %c0_4 = arith.constant 0 : index
    %c0_5 = arith.constant 0 : index
    %c0_6 = arith.constant 0 : index
    %9 = vector.load %arg3[%c0_3, %c0_4, %c0_5, %c0_6] : memref<3x3x3x64xbf16, #tpu.memory_space<vmem>>, vector<1x1x3x64xbf16>
    %10 = vector.shape_cast %9 : vector<1x1x3x64xbf16> to vector<3x64xbf16>
    %cst = arith.constant dense<0.000000e+00> : vector<256x64xf32>
    %11 = tpu.matmul %8, %10, %cst {dimension_numbers = #tpu.dot_dimension_numbers<[1], [0], [0], [1], [0, 0, 1, 1], [], []>} : vector<256x3xbf16>, vector<3x64xbf16>, vector<256x64xf32> -> vector<256x64xf32>
    %c0_i32_7 = arith.constant 0 : i32
    %12 = arith.addi %4, %c0_i32_7 : i32
    %13 = arith.index_cast %12 : i32 to index
    %c1 = arith.constant 1 : index
    %c0_8 = arith.constant 0 : index
    %14 = vector.load %arg6[%13, %c1, %c0_8] : memref<34x34x3xbf16, #tpu.memory_space<vmem>>, vector<8x32x3xbf16>
    %15 = vector.shape_cast %14 : vector<8x32x3xbf16> to vector<256x3xbf16>
    %c0_9 = arith.constant 0 : index
    %c1_10 = arith.constant 1 : index
    %c0_11 = arith.constant 0 : index
    %c0_12 = arith.constant 0 : index
    %16 = vector.load %arg3[%c0_9, %c1_10, %c0_11, %c0_12] : memref<3x3x3x64xbf16, #tpu.memory_space<vmem>>, vector<1x1x3x64xbf16>
    %17 = vector.shape_cast %16 : vector<1x1x3x64xbf16> to vector<3x64xbf16>
    %cst_13 = arith.constant dense<0.000000e+00> : vector<256x64xf32>
    %18 = tpu.matmul %15, %17, %cst_13 {dimension_numbers = #tpu.dot_dimension_numbers<[1], [0], [0], [1], [0, 0, 1, 1], [], []>} : vector<256x3xbf16>, vector<3x64xbf16>, vector<256x64xf32> -> vector<256x64xf32>
    %19 = arith.addf %11, %18 : vector<256x64xf32>
    %c0_i32_14 = arith.constant 0 : i32
    %20 = arith.addi %4, %c0_i32_14 : i32
    %21 = arith.index_cast %20 : i32 to index
    %c2 = arith.constant 2 : index
    %c0_15 = arith.constant 0 : index
    %22 = vector.load %arg6[%21, %c2, %c0_15] : memref<34x34x3xbf16, #tpu.memory_space<vmem>>, vector<8x32x3xbf16>
    %23 = vector.shape_cast %22 : vector<8x32x3xbf16> to vector<256x3xbf16>
    %c0_16 = arith.constant 0 : index
    %c2_17 = arith.constant 2 : index
    %c0_18 = arith.constant 0 : index
    %c0_19 = arith.constant 0 : index
    %24 = vector.load %arg3[%c0_16, %c2_17, %c0_18, %c0_19] : memref<3x3x3x64xbf16, #tpu.memory_space<vmem>>, vector<1x1x3x64xbf16>
    %25 = vector.shape_cast %24 : vector<1x1x3x64xbf16> to vector<3x64xbf16>
    %cst_20 = arith.constant dense<0.000000e+00> : vector<256x64xf32>
    %26 = tpu.matmul %23, %25, %cst_20 {dimension_numbers = #tpu.dot_dimension_numbers<[1], [0], [0], [1], [0, 0, 1, 1], [], []>} : vector<256x3xbf16>, vector<3x64xbf16>, vector<256x64xf32> -> vector<256x64xf32>
    %27 = arith.addf %19, %26 : vector<256x64xf32>
    %c1_i32 = arith.constant 1 : i32
    %28 = arith.addi %4, %c1_i32 : i32
    %29 = arith.index_cast %28 : i32 to index
    %c0_21 = arith.constant 0 : index
    %c0_22 = arith.constant 0 : index
    %30 = vector.load %arg6[%29, %c0_21, %c0_22] : memref<34x34x3xbf16, #tpu.memory_space<vmem>>, vector<8x32x3xbf16>
    %31 = vector.shape_cast %30 : vector<8x32x3xbf16> to vector<256x3xbf16>
    %c1_23 = arith.constant 1 : index
    %c0_24 = arith.constant 0 : index
    %c0_25 = arith.constant 0 : index
    %c0_26 = arith.constant 0 : index
    %32 = vector.load %arg3[%c1_23, %c0_24, %c0_25, %c0_26] : memref<3x3x3x64xbf16, #tpu.memory_space<vmem>>, vector<1x1x3x64xbf16>
    %33 = vector.shape_cast %32 : vector<1x1x3x64xbf16> to vector<3x64xbf16>
    %cst_27 = arith.constant dense<0.000000e+00> : vector<256x64xf32>
    %34 = tpu.matmul %31, %33, %cst_27 {dimension_numbers = #tpu.dot_dimension_numbers<[1], [0], [0], [1], [0, 0, 1, 1], [], []>} : vector<256x3xbf16>, vector<3x64xbf16>, vector<256x64xf32> -> vector<256x64xf32>
    %35 = arith.addf %27, %34 : vector<256x64xf32>
    %c1_i32_28 = arith.constant 1 : i32
    %36 = arith.addi %4, %c1_i32_28 : i32
    %37 = arith.index_cast %36 : i32 to index
    %c1_29 = arith.constant 1 : index
    %c0_30 = arith.constant 0 : index
    %38 = vector.load %arg6[%37, %c1_29, %c0_30] : memref<34x34x3xbf16, #tpu.memory_space<vmem>>, vector<8x32x3xbf16>
    %39 = vector.shape_cast %38 : vector<8x32x3xbf16> to vector<256x3xbf16>
    %c1_31 = arith.constant 1 : index
    %c1_32 = arith.constant 1 : index
    %c0_33 = arith.constant 0 : index
    %c0_34 = arith.constant 0 : index
    %40 = vector.load %arg3[%c1_31, %c1_32, %c0_33, %c0_34] : memref<3x3x3x64xbf16, #tpu.memory_space<vmem>>, vector<1x1x3x64xbf16>
    %41 = vector.shape_cast %40 : vector<1x1x3x64xbf16> to vector<3x64xbf16>
    %cst_35 = arith.constant dense<0.000000e+00> : vector<256x64xf32>
    %42 = tpu.matmul %39, %41, %cst_35 {dimension_numbers = #tpu.dot_dimension_numbers<[1], [0], [0], [1], [0, 0, 1, 1], [], []>} : vector<256x3xbf16>, vector<3x64xbf16>, vector<256x64xf32> -> vector<256x64xf32>
    %43 = arith.addf %35, %42 : vector<256x64xf32>
    %c1_i32_36 = arith.constant 1 : i32
    %44 = arith.addi %4, %c1_i32_36 : i32
    %45 = arith.index_cast %44 : i32 to index
    %c2_37 = arith.constant 2 : index
    %c0_38 = arith.constant 0 : index
    %46 = vector.load %arg6[%45, %c2_37, %c0_38] : memref<34x34x3xbf16, #tpu.memory_space<vmem>>, vector<8x32x3xbf16>
    %47 = vector.shape_cast %46 : vector<8x32x3xbf16> to vector<256x3xbf16>
    %c1_39 = arith.constant 1 : index
    %c2_40 = arith.constant 2 : index
    %c0_41 = arith.constant 0 : index
    %c0_42 = arith.constant 0 : index
    %48 = vector.load %arg3[%c1_39, %c2_40, %c0_41, %c0_42] : memref<3x3x3x64xbf16, #tpu.memory_space<vmem>>, vector<1x1x3x64xbf16>
    %49 = vector.shape_cast %48 : vector<1x1x3x64xbf16> to vector<3x64xbf16>
    %cst_43 = arith.constant dense<0.000000e+00> : vector<256x64xf32>
    %50 = tpu.matmul %47, %49, %cst_43 {dimension_numbers = #tpu.dot_dimension_numbers<[1], [0], [0], [1], [0, 0, 1, 1], [], []>} : vector<256x3xbf16>, vector<3x64xbf16>, vector<256x64xf32> -> vector<256x64xf32>
    %51 = arith.addf %43, %50 : vector<256x64xf32>
    %c2_i32 = arith.constant 2 : i32
    %52 = arith.addi %4, %c2_i32 : i32
    %53 = arith.index_cast %52 : i32 to index
    %c0_44 = arith.constant 0 : index
    %c0_45 = arith.constant 0 : index
    %54 = vector.load %arg6[%53, %c0_44, %c0_45] : memref<34x34x3xbf16, #tpu.memory_space<vmem>>, vector<8x32x3xbf16>
    %55 = vector.shape_cast %54 : vector<8x32x3xbf16> to vector<256x3xbf16>
    %c2_46 = arith.constant 2 : index
    %c0_47 = arith.constant 0 : index
    %c0_48 = arith.constant 0 : index
    %c0_49 = arith.constant 0 : index
    %56 = vector.load %arg3[%c2_46, %c0_47, %c0_48, %c0_49] : memref<3x3x3x64xbf16, #tpu.memory_space<vmem>>, vector<1x1x3x64xbf16>
    %57 = vector.shape_cast %56 : vector<1x1x3x64xbf16> to vector<3x64xbf16>
    %cst_50 = arith.constant dense<0.000000e+00> : vector<256x64xf32>
    %58 = tpu.matmul %55, %57, %cst_50 {dimension_numbers = #tpu.dot_dimension_numbers<[1], [0], [0], [1], [0, 0, 1, 1], [], []>} : vector<256x3xbf16>, vector<3x64xbf16>, vector<256x64xf32> -> vector<256x64xf32>
    %59 = arith.addf %51, %58 : vector<256x64xf32>
    %c2_i32_51 = arith.constant 2 : i32
    %60 = arith.addi %4, %c2_i32_51 : i32
    %61 = arith.index_cast %60 : i32 to index
    %c1_52 = arith.constant 1 : index
    %c0_53 = arith.constant 0 : index
    %62 = vector.load %arg6[%61, %c1_52, %c0_53] : memref<34x34x3xbf16, #tpu.memory_space<vmem>>, vector<8x32x3xbf16>
    %63 = vector.shape_cast %62 : vector<8x32x3xbf16> to vector<256x3xbf16>
    %c2_54 = arith.constant 2 : index
    %c1_55 = arith.constant 1 : index
    %c0_56 = arith.constant 0 : index
    %c0_57 = arith.constant 0 : index
    %64 = vector.load %arg3[%c2_54, %c1_55, %c0_56, %c0_57] : memref<3x3x3x64xbf16, #tpu.memory_space<vmem>>, vector<1x1x3x64xbf16>
    %65 = vector.shape_cast %64 : vector<1x1x3x64xbf16> to vector<3x64xbf16>
    %cst_58 = arith.constant dense<0.000000e+00> : vector<256x64xf32>
    %66 = tpu.matmul %63, %65, %cst_58 {dimension_numbers = #tpu.dot_dimension_numbers<[1], [0], [0], [1], [0, 0, 1, 1], [], []>} : vector<256x3xbf16>, vector<3x64xbf16>, vector<256x64xf32> -> vector<256x64xf32>
    %67 = arith.addf %59, %66 : vector<256x64xf32>
    %c2_i32_59 = arith.constant 2 : i32
    %68 = arith.addi %4, %c2_i32_59 : i32
    %69 = arith.index_cast %68 : i32 to index
    %c2_60 = arith.constant 2 : index
    %c0_61 = arith.constant 0 : index
    %70 = vector.load %arg6[%69, %c2_60, %c0_61] : memref<34x34x3xbf16, #tpu.memory_space<vmem>>, vector<8x32x3xbf16>
    %71 = vector.shape_cast %70 : vector<8x32x3xbf16> to vector<256x3xbf16>
    %c2_62 = arith.constant 2 : index
    %c2_63 = arith.constant 2 : index
    %c0_64 = arith.constant 0 : index
    %c0_65 = arith.constant 0 : index
    %72 = vector.load %arg3[%c2_62, %c2_63, %c0_64, %c0_65] : memref<3x3x3x64xbf16, #tpu.memory_space<vmem>>, vector<1x1x3x64xbf16>
    %73 = vector.shape_cast %72 : vector<1x1x3x64xbf16> to vector<3x64xbf16>
    %cst_66 = arith.constant dense<0.000000e+00> : vector<256x64xf32>
    %74 = tpu.matmul %71, %73, %cst_66 {dimension_numbers = #tpu.dot_dimension_numbers<[1], [0], [0], [1], [0, 0, 1, 1], [], []>} : vector<256x3xbf16>, vector<3x64xbf16>, vector<256x64xf32> -> vector<256x64xf32>
    %75 = arith.addf %67, %74 : vector<256x64xf32>
    %c0_67 = arith.constant 0 : index
    %c0_68 = arith.constant 0 : index
    %76 = vector.load %arg4[%c0_67, %c0_68] : memref<1x64xf32, #tpu.memory_space<vmem>>, vector<1x64xf32>
    %77 = vector.broadcast %76 : vector<1x64xf32> to vector<256x64xf32>
    %78 = arith.addf %75, %77 : vector<256x64xf32>
    %cst_69 = arith.constant 0.000000e+00 : f32
    %79 = vector.broadcast %cst_69 : f32 to vector<256x64xf32>
    %80 = arith.maximumf %78, %79 : vector<256x64xf32>
    %81 = vector.shape_cast %80 : vector<256x64xf32> to vector<8x32x64xf32>
    %82 = arith.truncf %81 : vector<8x32x64xf32> to vector<8x32x64xbf16>
    %c0_70 = arith.constant 0 : index
    %c0_71 = arith.constant 0 : index
    %c0_72 = arith.constant 0 : index
    %c0_73 = arith.constant 0 : index
    %83 = vector.load %arg5[%c0_70, %c0_71, %c0_72, %c0_73] : memref<1x8x32x64xbf16, #tpu.memory_space<vmem>>, vector<1x8x32x64xbf16>
    %84 = vector.shape_cast %83 : vector<1x8x32x64xbf16> to vector<8x32x64xbf16>
    %85 = vector.shape_cast %82 : vector<8x32x64xbf16> to vector<1x8x32x64xbf16>
    tpu.vector_store %arg5[%c0_70, %c0_71, %c0_72, %c0_73], %85 {strides = array<i32>} : memref<1x8x32x64xbf16, #tpu.memory_space<vmem>>, vector<1x8x32x64xbf16>,
    return
  }
  func.func @transform_0(%arg0: i32, %arg1: i32) -> (i32, i32, i32, i32) {
    %c0_i32 = arith.constant 0 : i32
    %c0_i32_0 = arith.constant 0 : i32
    %c0_i32_1 = arith.constant 0 : i32
    %c0_i32_2 = arith.constant 0 : i32
    return %arg0, %c0_i32, %c0_i32_0, %c0_i32_1 : i32, i32, i32, i32
  }
  func.func @transform_1(%arg0: i32, %arg1: i32) -> (i32, i32, i32, i32) {
    %c0_i32 = arith.constant 0 : i32
    %c0_i32_0 = arith.constant 0 : i32
    %c0_i32_1 = arith.constant 0 : i32
    %c0_i32_2 = arith.constant 0 : i32
    %c0_i32_3 = arith.constant 0 : i32
    return %c0_i32, %c0_i32_0, %c0_i32_1, %c0_i32_2 : i32, i32, i32, i32
  }
  func.func @transform_2(%arg0: i32, %arg1: i32) -> (i32, i32) {
    %c0_i32 = arith.constant 0 : i32
    %c0_i32_0 = arith.constant 0 : i32
    %c0_i32_1 = arith.constant 0 : i32
    return %c0_i32, %c0_i32_0 : i32, i32
  }
  func.func @transform_3(%arg0: i32, %arg1: i32) -> (i32, i32, i32, i32) {
    %c0_i32 = arith.constant 0 : i32
    %c0_i32_0 = arith.constant 0 : i32
    %c0_i32_1 = arith.constant 0 : i32
    return %arg0, %arg1, %c0_i32, %c0_i32_0 : i32, i32, i32, i32
  }
}

</mosaic_0001>

<llo_original>
// kernel: tpu_custom_call.1
$region0: #{tpu_custom_call.1}
  #allocation0 [shape = 'u32[]', space=smem, size = 0x4, offset = 0x4, fixed_abs, tag = 'smem constant byte address 0x4 - core index']
  #allocation1 [shape = 'u32[144,128]{1,0:T(1,128)}', space=vmem, size = 0x12000, scoped, tag = 'internal scratch']
  #allocation2 [shape = 'bf16[34,34,3]{2,1,0:T(8,128)(2,1)}', space=vmem, size = 0x55000, scoped, tag = 'scratch operand']
  %s0 = inlined_call_operand.vmem [shape: bf16[2,32,32,3], index: 0, kind: input, shape index: {}]
  %s1 = inlined_call_operand.vmem [shape: bf16[3,3,3,64], index: 1, kind: input, shape index: {}]
  %s2 = inlined_call_operand.vmem [shape: f32[1,64], index: 2, kind: input, shape index: {}]
  %s3 = inlined_call_operand.hbm [shape: bf16[2,32,32,64], index: 3, kind: output, shape index: {}]
  %s4 = sld [smem:[#allocation0]]
  $region49: #{tpu_custom_call.1} parent=0
    _
  %s6 = ssub.s32 1, %s4
  %s7 = scalar_select 0, %s6, %s4
  $region1: #{tpu_custom_call.1} parent=0
    #allocation3 [shape = 'u8[131072]{0}', space=vmem, size = 0x20000, scoped, tag = 'output window, operand 0']
    #allocation4 [shape = 's32[2]{0}', space=sflag, size = 0x8, scoped, tag = 'scoped memory for tpu_custom_call.1']
    %8 = vsyncpa [#allocation4], 0
    %s9 = scalar_lea.sflag [#allocation4], 1
    %10 = vsyncpa %s9, 0
    loop: start=0, step=1, limit=10
    $region2: #{tpu_custom_call.1} parent=1 // loop_pre_header
      _
    $region3: #{tpu_custom_call.1} parent=1 // loop_header
      %s12 = sphi 0, %s16
      %p13 = scmp.ge.s32.totalorder %s12, 10
      %s19 = sphi 0, %s31
      %s20 = sphi 0, %s27
      %s21 = sphi 0, %s19
      %s22 = sphi 0, %s20
      %s23 = sphi 0, %s21
      %s24 = sphi 0, %s22
      %s34 = sphi 0, %s36
      %s37 = sphi 0, %s34
      %s38 = sphi 0, %s37
      %s54 = sphi 0, %s38
      %s58 = sphi 0, %s58
      %s60 = sphi 0, %s58
      %s61 = sphi 0, %s60
      %s75 = sphi 0, %s61
      %s79 = sphi 0, %s79
      %s81 = sphi 0, %s79
      %s82 = sphi 0, %s81
      %s96 = sphi 0, %s82
      %s104 = sphi 0, %s106
      %s107 = sphi 0, %s104
      %s108 = sphi 0, %s107
      %s124 = sphi 0, %s108
    $region4: #{tpu_custom_call.1} parent=1 // loop_header_branch
      %15 = sbr.rel (%p13) target = $region8
    $region5: #{tpu_custom_call.1} parent=1 // loop_body
      %s17 = ssub.s32 %s12, 1
      %s18 = ssub.s32 %s12, 2
      %s25 = sadd.s32 1, %s20
      %p26 = scmp.ge.s32.totalorder %s25, 4
      %s27 = scalar_select %p26, 0, %s25
      %s28 = sadd.s32 1, %s19
      %s29 = scalar_select %p26, %s28, %s19
      %p30 = scmp.ge.s32.totalorder %s29, 2
      %s31 = scalar_select %p30, 0, %s29
      %s32 = ssub.s32 %s19, %s31
      %p33 = scmp.eq.s32.totalorder %s32, 0
      %s35 = sadd.s32 %s34, 1
      %s36 = scalar_select %p33, %s34, %s35
      %p39 = pneg %p33
      %p40 = scmp.eq.s32.totalorder %s12, 7
      %p41 = por %p39, %p40
      %p42 = scmp.ne.s32.totalorder %s34, %s37
      %p43 = scmp.eq.s32.totalorder %s12, 0
      %p44 = por %p42, %p43
      %p45 = scmp.ne.s32.totalorder %s34, %s37
      %p46 = scmp.eq.s32.totalorder %s17, 7
      %p47 = por %p45, %p46
      %p48 = scmp.ne.s32.totalorder %s37, %s38
      %p49 = scmp.eq.s32.totalorder %s17, 0
      %p50 = por %p48, %p49
      %p51 = scmp.ne.s32.totalorder %s37, %s38
      %p52 = scmp.eq.s32.totalorder %s18, 7
      %p53 = por %p51, %p52
      %p55 = scmp.ne.s32.totalorder %s38, %s54
      %p56 = scmp.eq.s32.totalorder %s18, 0
      %p57 = por %p55, %p56
      %s59 = sadd.s32 %s58, 1
      %p62 = scmp.eq.s32.totalorder %s12, 7
      %p63 = scmp.ne.s32.totalorder %s58, %s60
      %p64 = scmp.eq.s32.totalorder %s12, 0
      %p65 = por %p63, %p64
      %p66 = scmp.ne.s32.totalorder %s58, %s60
      %p67 = scmp.eq.s32.totalorder %s17, 7
      %p68 = por %p66, %p67
      %p69 = scmp.ne.s32.totalorder %s60, %s61
      %p70 = scmp.eq.s32.totalorder %s17, 0
      %p71 = por %p69, %p70
      %p72 = scmp.ne.s32.totalorder %s60, %s61
      %p73 = scmp.eq.s32.totalorder %s18, 7
      %p74 = por %p72, %p73
      %p76 = scmp.ne.s32.totalorder %s61, %s75
      %p77 = scmp.eq.s32.totalorder %s18, 0
      %p78 = por %p76, %p77
      %s80 = sadd.s32 %s79, 1
      %p83 = scmp.eq.s32.totalorder %s12, 7
      %p84 = scmp.ne.s32.totalorder %s79, %s81
      %p85 = scmp.eq.s32.totalorder %s12, 0
      %p86 = por %p84, %p85
      %p87 = scmp.ne.s32.totalorder %s79, %s81
      %p88 = scmp.eq.s32.totalorder %s17, 7
      %p89 = por %p87, %p88
      %p90 = scmp.ne.s32.totalorder %s81, %s82
      %p91 = scmp.eq.s32.totalorder %s17, 0
      %p92 = por %p90, %p91
      %p93 = scmp.ne.s32.totalorder %s81, %s82
      %p94 = scmp.eq.s32.totalorder %s18, 7
      %p95 = por %p93, %p94
      %p97 = scmp.ne.s32.totalorder %s82, %s96
      %p98 = scmp.eq.s32.totalorder %s18, 0
      %p99 = por %p97, %p98
      %s100 = ssub.s32 %s19, %s31
      %s101 = ssub.s32 %s20, %s27
      %s102 = sor.u32 %s100, %s101
      %p103 = scmp.eq.s32.totalorder %s102, 0
      %s105 = sadd.s32 %s104, 1
      %s106 = scalar_select %p103, %s104, %s105
      %p109 = pneg %p103
      %p110 = scmp.eq.s32.totalorder %s12, 7
      %p111 = por %p109, %p110
      %p112 = scmp.ne.s32.totalorder %s104, %s107
      %p113 = scmp.eq.s32.totalorder %s12, 0
      %p114 = por %p112, %p113
      %p115 = scmp.ne.s32.totalorder %s104, %s107
      %p116 = scmp.eq.s32.totalorder %s17, 7
      %p117 = por %p115, %p116
      %p118 = scmp.ne.s32.totalorder %s107, %s108
      %p119 = scmp.eq.s32.totalorder %s17, 0
      %p120 = por %p118, %p119
      %p121 = scmp.ne.s32.totalorder %s107, %s108
      %p122 = scmp.eq.s32.totalorder %s18, 7
      %p123 = por %p121, %p122
      %p125 = scmp.ne.s32.totalorder %s108, %s124
      %p126 = scmp.eq.s32.totalorder %s18, 0
      %p127 = por %p125, %p126
      %p128 = scmp.le.s32.totalorder 1, %s12
      %p129 = scmp.lt.s32.totalorder %s12, 9
      %p130 = pnand %p128, %p129
      %p131 = pneg %p130
      // Predicated region
      $region9: #{tpu_custom_call.1} parent=5 // pred_check
        _
      $region10: #{tpu_custom_call.1} parent=5 // pred_check_branch
        %133 = sbr.rel (%p130) target = $region12
      $region11: #{tpu_custom_call.1} parent=5 // pred_region
        %s134 = ssub.s32 %s12, 1
        // Predicated region
        $region13: #{tpu_custom_call.1} parent=11 // pred_check
          %p135 = pneg %p71
        $region14: #{tpu_custom_call.1} parent=11 // pred_check_branch
          %137 = sbr.rel (%p135) target = $region16
        $region15: #{tpu_custom_call.1} parent=11 // pred_region
          _
        $region16: #{tpu_custom_call.1} parent=11 // pred_fallthru
          _
        // Predicated region
        $region17: #{tpu_custom_call.1} parent=11 // pred_check
          %p138 = pneg %p92
        $region18: #{tpu_custom_call.1} parent=11 // pred_check_branch
          %140 = sbr.rel (%p138) target = $region20
        $region19: #{tpu_custom_call.1} parent=11 // pred_region
          _
        $region20: #{tpu_custom_call.1} parent=11 // pred_fallthru
          _
      $region12: #{tpu_custom_call.1} parent=5 // pred_fallthru
        _
      %p141 = scmp.lt.s32.totalorder %s12, 8
      // Predicated region
      $region21: #{tpu_custom_call.1} parent=5 // pred_check
        %p142 = pneg %p141
      $region22: #{tpu_custom_call.1} parent=5 // pred_check_branch
        %144 = sbr.rel (%p142) target = $region24
      $region23: #{tpu_custom_call.1} parent=5 // pred_region
        // Predicated region
        $region25: #{tpu_custom_call.1} parent=23 // pred_check
          %p145 = pneg %p44
        $region26: #{tpu_custom_call.1} parent=23 // pred_check_branch
          %147 = sbr.rel (%p145) target = $region28
        $region27: #{tpu_custom_call.1} parent=23 // pred_region
          %p148 = scmp.lt.s32.totalorder %s19, 1
          %s149 = scalar_select %p148, %s19, 1
          %s150 = smul.addr %s149, 128
          %s151 = smul.addr %s150, 4
          %s152 = scalar_lea.vmem %s0, %s151
        $region28: #{tpu_custom_call.1} parent=23 // pred_fallthru
          _
      $region24: #{tpu_custom_call.1} parent=5 // pred_fallthru
        _
      %p153 = scmp.le.s32.totalorder 1, %s12
      %p154 = scmp.lt.s32.totalorder %s12, 9
      %p155 = pnand %p153, %p154
      %p156 = pneg %p155
      // Predicated region
      $region29: #{tpu_custom_call.1} parent=5 // pred_check
        _
      $region30: #{tpu_custom_call.1} parent=5 // pred_check_branch
        %158 = sbr.rel (%p155) target = $region32
      $region31: #{tpu_custom_call.1} parent=5 // pred_region
        %s159 = ssub.s32 %s12, 1
        %p160 = scmp.lt.s32.totalorder %s21, 1
        %s161 = scalar_select %p160, %s21, 1
        %s162 = smul.addr %s161, 128
        %s163 = smul.addr %s162, 4
        %s164 = scalar_lea.vmem %s0, %s163
        %p165 = pneg %p50
        %p166 = pneg %p47
        %p167 = pneg %p71
        %p168 = pneg %p68
        %p169 = pneg %p92
        %p170 = pneg %p89
        %p171 = pneg %p120
        %p172 = pneg %p117
        %s173 = sand.u32 %s107, 1
        %s174 = scalar_lea.sflag [#allocation4], %s173
        %s175 = sand.u32 %s107, 1
        %s176 = smul.addr %s175, 128
        %s177 = scalar_lea.vmem [#allocation3], %s176
        %p178 = scmp.lt.s32.totalorder %s21, 1
        %s179 = scalar_select %p178, %s21, 1
        %s180 = smul.addr %s179, 128
        %s181 = smul.addr %s180, 4
        %s182 = scalar_lea.vmem %s0, %s181
        %s183 = smul.u32 8, %s22
        %p185 = scmp.eq.s32.totalorder %s22, 0
        // Predicated region
        $region33: #{tpu_custom_call.1} parent=31 // pred_check
          %p186 = pneg %p185
        $region34: #{tpu_custom_call.1} parent=31 // pred_check_branch
          %188 = sbr.rel (%p186) target = $region36
        $region35: #{tpu_custom_call.1} parent=31 // pred_region
          %vm189 = vcmask 19456
          %190 = vst.msk [vmem:[#allocation2] sm:$0xf] %vm189, 0
          %191 = vst.msk [vmem:[#allocation2 + $0x4] sm:$0xf] %vm189, 0
          %192 = vst.msk [vmem:[#allocation2 + $0x8] sm:$0xf] %vm189, 0
          %193 = vst.msk [vmem:[#allocation2 + $0xc] sm:$0xf] %vm189, 0
          %vm194 = vcmask 16384
          %195 = vst.msk [vmem:[#allocation2 + $0x10] sm:$0x1] %vm194, 0
          %196 = vst.msk [vmem:[#allocation2 + $0x14] sm:$0xf] %vm189, 0
          %197 = vst.msk [vmem:[#allocation2 + $0x18] sm:$0xf] %vm189, 0
          %198 = vst.msk [vmem:[#allocation2 + $0x1c] sm:$0xf] %vm189, 0
          %199 = vst.msk [vmem:[#allocation2 + $0x20] sm:$0xf] %vm189, 0
          %200 = vst.msk [vmem:[#allocation2 + $0x24] sm:$0x1] %vm194, 0
          %201 = vst.msk [vmem:[#allocation2 + $0x28] sm:$0xf] %vm189, 0
          %202 = vst.msk [vmem:[#allocation2 + $0x2c] sm:$0xf] %vm189, 0
          %203 = vst.msk [vmem:[#allocation2 + $0x30] sm:$0xf] %vm189, 0
          %204 = vst.msk [vmem:[#allocation2 + $0x34] sm:$0xf] %vm189, 0
          %205 = vst.msk [vmem:[#allocation2 + $0x38] sm:$0x1] %vm194, 0
          %206 = vst.msk [vmem:[#allocation2 + $0x3c] sm:$0xf] %vm189, 0
          %207 = vst.msk [vmem:[#allocation2 + $0x40] sm:$0xf] %vm189, 0
          %208 = vst.msk [vmem:[#allocation2 + $0x44] sm:$0xf] %vm189, 0
          %209 = vst.msk [vmem:[#allocation2 + $0x48] sm:$0xf] %vm189, 0
          %210 = vst.msk [vmem:[#allocation2 + $0x4c] sm:$0x1] %vm194, 0
          %211 = vst.msk [vmem:[#allocation2 + $0x50] sm:$0xf] %vm189, 0
          %212 = vst.msk [vmem:[#allocation2 + $0x54] sm:$0xf] %vm189, 0
          %213 = vst.msk [vmem:[#allocation2 + $0x58] sm:$0xf] %vm189, 0
          %214 = vst.msk [vmem:[#allocation2 + $0x5c] sm:$0xf] %vm189, 0
          %215 = vst.msk [vmem:[#allocation2 + $0x60] sm:$0x1] %vm194, 0
          %216 = vst.msk [vmem:[#allocation2 + $0x64] sm:$0xf] %vm189, 0
          %217 = vst.msk [vmem:[#allocation2 + $0x68] sm:$0xf] %vm189, 0
          %218 = vst.msk [vmem:[#allocation2 + $0x6c] sm:$0xf] %vm189, 0
          %219 = vst.msk [vmem:[#allocation2 + $0x70] sm:$0xf] %vm189, 0
          %220 = vst.msk [vmem:[#allocation2 + $0x74] sm:$0x1] %vm194, 0
          %221 = vst.msk [vmem:[#allocation2 + $0x78] sm:$0xf] %vm189, 0
          %222 = vst.msk [vmem:[#allocation2 + $0x7c] sm:$0xf] %vm189, 0
          %223 = vst.msk [vmem:[#allocation2 + $0x80] sm:$0xf] %vm189, 0
          %224 = vst.msk [vmem:[#allocation2 + $0x84] sm:$0xf] %vm189, 0
          %225 = vst.msk [vmem:[#allocation2 + $0x88] sm:$0x1] %vm194, 0
          %226 = vst.msk [vmem:[#allocation2 + $0x8c] sm:$0xf] %vm189, 0
          %227 = vst.msk [vmem:[#allocation2 + $0x90] sm:$0xf] %vm189, 0
          %228 = vst.msk [vmem:[#allocation2 + $0x94] sm:$0xf] %vm189, 0
          %229 = vst.msk [vmem:[#allocation2 + $0x98] sm:$0xf] %vm189, 0
          %230 = vst.msk [vmem:[#allocation2 + $0x9c] sm:$0x1] %vm194, 0
          %231 = vst.msk [vmem:[#allocation2 + $0xa0] sm:$0xf] %vm189, 0
          %232 = vst.msk [vmem:[#allocation2 + $0xa4] sm:$0xf] %vm189, 0
          %233 = vst.msk [vmem:[#allocation2 + $0xa8] sm:$0xf] %vm189, 0
          %234 = vst.msk [vmem:[#allocation2 + $0xac] sm:$0xf] %vm189, 0
          %235 = vst.msk [vmem:[#allocation2 + $0xb0] sm:$0x1] %vm194, 0
          %236 = vst.msk [vmem:[#allocation2 + $0xb4] sm:$0xf] %vm189, 0
          %237 = vst.msk [vmem:[#allocation2 + $0xb8] sm:$0xf] %vm189, 0
          %238 = vst.msk [vmem:[#allocation2 + $0xbc] sm:$0xf] %vm189, 0
          %239 = vst.msk [vmem:[#allocation2 + $0xc0] sm:$0xf] %vm189, 0
          %240 = vst.msk [vmem:[#allocation2 + $0xc4] sm:$0x1] %vm194, 0
          %241 = vst.msk [vmem:[#allocation2 + $0xc8] sm:$0xf] %vm189, 0
          %242 = vst.msk [vmem:[#allocation2 + $0xcc] sm:$0xf] %vm189, 0
          %243 = vst.msk [vmem:[#allocation2 + $0xd0] sm:$0xf] %vm189, 0
          %244 = vst.msk [vmem:[#allocation2 + $0xd4] sm:$0xf] %vm189, 0
          %245 = vst.msk [vmem:[#allocation2 + $0xd8] sm:$0x1] %vm194, 0
          %246 = vst.msk [vmem:[#allocation2 + $0xdc] sm:$0xf] %vm189, 0
          %247 = vst.msk [vmem:[#allocation2 + $0xe0] sm:$0xf] %vm189, 0
          %248 = vst.msk [vmem:[#allocation2 + $0xe4] sm:$0xf] %vm189, 0
          %249 = vst.msk [vmem:[#allocation2 + $0xe8] sm:$0xf] %vm189, 0
          %250 = vst.msk [vmem:[#allocation2 + $0xec] sm:$0x1] %vm194, 0
          %251 = vst.msk [vmem:[#allocation2 + $0xf0] sm:$0xf] %vm189, 0
          %252 = vst.msk [vmem:[#allocation2 + $0xf4] sm:$0xf] %vm189, 0
          %253 = vst.msk [vmem:[#allocation2 + $0xf8] sm:$0xf] %vm189, 0
          %254 = vst.msk [vmem:[#allocation2 + $0xfc] sm:$0xf] %vm189, 0
          %255 = vst.msk [vmem:[#allocation2 + $0x100] sm:$0x1] %vm194, 0
          %256 = vst.msk [vmem:[#allocation2 + $0x104] sm:$0xf] %vm189, 0
          %257 = vst.msk [vmem:[#allocation2 + $0x108] sm:$0xf] %vm189, 0
          %258 = vst.msk [vmem:[#allocation2 + $0x10c] sm:$0xf] %vm189, 0
          %259 = vst.msk [vmem:[#allocation2 + $0x110] sm:$0xf] %vm189, 0
          %260 = vst.msk [vmem:[#allocation2 + $0x114] sm:$0x1] %vm194, 0
          %261 = vst.msk [vmem:[#allocation2 + $0x118] sm:$0xf] %vm189, 0
          %262 = vst.msk [vmem:[#allocation2 + $0x11c] sm:$0xf] %vm189, 0
          %263 = vst.msk [vmem:[#allocation2 + $0x120] sm:$0xf] %vm189, 0
          %264 = vst.msk [vmem:[#allocation2 + $0x124] sm:$0xf] %vm189, 0
          %265 = vst.msk [vmem:[#allocation2 + $0x128] sm:$0x1] %vm194, 0
          %266 = vst.msk [vmem:[#allocation2 + $0x12c] sm:$0xf] %vm189, 0
          %267 = vst.msk [vmem:[#allocation2 + $0x130] sm:$0xf] %vm189, 0
          %268 = vst.msk [vmem:[#allocation2 + $0x134] sm:$0xf] %vm189, 0
          %269 = vst.msk [vmem:[#allocation2 + $0x138] sm:$0xf] %vm189, 0
          %270 = vst.msk [vmem:[#allocation2 + $0x13c] sm:$0x1] %vm194, 0
          %271 = vst.msk [vmem:[#allocation2 + $0x140] sm:$0xf] %vm189, 0
          %272 = vst.msk [vmem:[#allocation2 + $0x144] sm:$0xf] %vm189, 0
          %273 = vst.msk [vmem:[#allocation2 + $0x148] sm:$0xf] %vm189, 0
          %274 = vst.msk [vmem:[#allocation2 + $0x14c] sm:$0xf] %vm189, 0
          %275 = vst.msk [vmem:[#allocation2 + $0x150] sm:$0x1] %vm194, 0
          %276 = vst.msk [vmem:[#allocation2 + $0x154] sm:$0xf] %vm189, 0
          %277 = vst.msk [vmem:[#allocation2 + $0x158] sm:$0xf] %vm189, 0
          %278 = vst.msk [vmem:[#allocation2 + $0x15c] sm:$0xf] %vm189, 0
          %279 = vst.msk [vmem:[#allocation2 + $0x160] sm:$0xf] %vm189, 0
          %280 = vst.msk [vmem:[#allocation2 + $0x164] sm:$0x1] %vm194, 0
          %281 = vst.msk [vmem:[#allocation2 + $0x168] sm:$0xf] %vm189, 0
          %282 = vst.msk [vmem:[#allocation2 + $0x16c] sm:$0xf] %vm189, 0
          %283 = vst.msk [vmem:[#allocation2 + $0x170] sm:$0xf] %vm189, 0
          %284 = vst.msk [vmem:[#allocation2 + $0x174] sm:$0xf] %vm189, 0
          %285 = vst.msk [vmem:[#allocation2 + $0x178] sm:$0x1] %vm194, 0
          %286 = vst.msk [vmem:[#allocation2 + $0x17c] sm:$0xf] %vm189, 0
          %287 = vst.msk [vmem:[#allocation2 + $0x180] sm:$0xf] %vm189, 0
          %288 = vst.msk [vmem:[#allocation2 + $0x184] sm:$0xf] %vm189, 0
          %289 = vst.msk [vmem:[#allocation2 + $0x188] sm:$0xf] %vm189, 0
          %290 = vst.msk [vmem:[#allocation2 + $0x18c] sm:$0x1] %vm194, 0
          %291 = vst.msk [vmem:[#allocation2 + $0x190] sm:$0xf] %vm189, 0
          %292 = vst.msk [vmem:[#allocation2 + $0x194] sm:$0xf] %vm189, 0
          %293 = vst.msk [vmem:[#allocation2 + $0x198] sm:$0xf] %vm189, 0
          %294 = vst.msk [vmem:[#allocation2 + $0x19c] sm:$0xf] %vm189, 0
          %295 = vst.msk [vmem:[#allocation2 + $0x1a0] sm:$0x1] %vm194, 0
          %296 = vst.msk [vmem:[#allocation2 + $0x1a4] sm:$0xf] %vm189, 0
          %297 = vst.msk [vmem:[#allocation2 + $0x1a8] sm:$0xf] %vm189, 0
          %298 = vst.msk [vmem:[#allocation2 + $0x1ac] sm:$0xf] %vm189, 0
          %299 = vst.msk [vmem:[#allocation2 + $0x1b0] sm:$0xf] %vm189, 0
          %300 = vst.msk [vmem:[#allocation2 + $0x1b4] sm:$0x1] %vm194, 0
          %301 = vst.msk [vmem:[#allocation2 + $0x1b8] sm:$0xf] %vm189, 0
          %302 = vst.msk [vmem:[#allocation2 + $0x1bc] sm:$0xf] %vm189, 0
          %303 = vst.msk [vmem:[#allocation2 + $0x1c0] sm:$0xf] %vm189, 0
          %304 = vst.msk [vmem:[#allocation2 + $0x1c4] sm:$0xf] %vm189, 0
          %305 = vst.msk [vmem:[#allocation2 + $0x1c8] sm:$0x1] %vm194, 0
          %306 = vst.msk [vmem:[#allocation2 + $0x1cc] sm:$0xf] %vm189, 0
          %307 = vst.msk [vmem:[#allocation2 + $0x1d0] sm:$0xf] %vm189, 0
          %308 = vst.msk [vmem:[#allocation2 + $0x1d4] sm:$0xf] %vm189, 0
          %309 = vst.msk [vmem:[#allocation2 + $0x1d8] sm:$0xf] %vm189, 0
          %310 = vst.msk [vmem:[#allocation2 + $0x1dc] sm:$0x1] %vm194, 0
          %311 = vst.msk [vmem:[#allocation2 + $0x1e0] sm:$0xf] %vm189, 0
          %312 = vst.msk [vmem:[#allocation2 + $0x1e4] sm:$0xf] %vm189, 0
          %313 = vst.msk [vmem:[#allocation2 + $0x1e8] sm:$0xf] %vm189, 0
          %314 = vst.msk [vmem:[#allocation2 + $0x1ec] sm:$0xf] %vm189, 0
          %315 = vst.msk [vmem:[#allocation2 + $0x1f0] sm:$0x1] %vm194, 0
          %316 = vst.msk [vmem:[#allocation2 + $0x1f4] sm:$0xf] %vm189, 0
          %317 = vst.msk [vmem:[#allocation2 + $0x1f8] sm:$0xf] %vm189, 0
          %318 = vst.msk [vmem:[#allocation2 + $0x1fc] sm:$0xf] %vm189, 0
          %319 = vst.msk [vmem:[#allocation2 + $0x200] sm:$0xf] %vm189, 0
          %320 = vst.msk [vmem:[#allocation2 + $0x204] sm:$0x1] %vm194, 0
          %321 = vst.msk [vmem:[#allocation2 + $0x208] sm:$0xf] %vm189, 0
          %322 = vst.msk [vmem:[#allocation2 + $0x20c] sm:$0xf] %vm189, 0
          %323 = vst.msk [vmem:[#allocation2 + $0x210] sm:$0xf] %vm189, 0
          %324 = vst.msk [vmem:[#allocation2 + $0x214] sm:$0xf] %vm189, 0
          %325 = vst.msk [vmem:[#allocation2 + $0x218] sm:$0x1] %vm194, 0
          %326 = vst.msk [vmem:[#allocation2 + $0x21c] sm:$0xf] %vm189, 0
          %327 = vst.msk [vmem:[#allocation2 + $0x220] sm:$0xf] %vm189, 0
          %328 = vst.msk [vmem:[#allocation2 + $0x224] sm:$0xf] %vm189, 0
          %329 = vst.msk [vmem:[#allocation2 + $0x228] sm:$0xf] %vm189, 0
          %330 = vst.msk [vmem:[#allocation2 + $0x22c] sm:$0x1] %vm194, 0
          %331 = vst.msk [vmem:[#allocation2 + $0x230] sm:$0xf] %vm189, 0
          %332 = vst.msk [vmem:[#allocation2 + $0x234] sm:$0xf] %vm189, 0
          %333 = vst.msk [vmem:[#allocation2 + $0x238] sm:$0xf] %vm189, 0
          %334 = vst.msk [vmem:[#allocation2 + $0x23c] sm:$0xf] %vm189, 0
          %335 = vst.msk [vmem:[#allocation2 + $0x240] sm:$0x1] %vm194, 0
          %336 = vst.msk [vmem:[#allocation2 + $0x244] sm:$0xf] %vm189, 0
          %337 = vst.msk [vmem:[#allocation2 + $0x248] sm:$0xf] %vm189, 0
          %338 = vst.msk [vmem:[#allocation2 + $0x24c] sm:$0xf] %vm189, 0
          %339 = vst.msk [vmem:[#allocation2 + $0x250] sm:$0xf] %vm189, 0
          %340 = vst.msk [vmem:[#allocation2 + $0x254] sm:$0x1] %vm194, 0
          %341 = vst.msk [vmem:[#allocation2 + $0x258] sm:$0xf] %vm189, 0
          %342 = vst.msk [vmem:[#allocation2 + $0x25c] sm:$0xf] %vm189, 0
          %343 = vst.msk [vmem:[#allocation2 + $0x260] sm:$0xf] %vm189, 0
          %344 = vst.msk [vmem:[#allocation2 + $0x264] sm:$0xf] %vm189, 0
          %345 = vst.msk [vmem:[#allocation2 + $0x268] sm:$0x1] %vm194, 0
          %346 = vst.msk [vmem:[#allocation2 + $0x26c] sm:$0xf] %vm189, 0
          %347 = vst.msk [vmem:[#allocation2 + $0x270] sm:$0xf] %vm189, 0
          %348 = vst.msk [vmem:[#allocation2 + $0x274] sm:$0xf] %vm189, 0
          %349 = vst.msk [vmem:[#allocation2 + $0x278] sm:$0xf] %vm189, 0
          %350 = vst.msk [vmem:[#allocation2 + $0x27c] sm:$0x1] %vm194, 0
          %351 = vst.msk [vmem:[#allocation2 + $0x280] sm:$0xf] %vm189, 0
          %352 = vst.msk [vmem:[#allocation2 + $0x284] sm:$0xf] %vm189, 0
          %353 = vst.msk [vmem:[#allocation2 + $0x288] sm:$0xf] %vm189, 0
          %354 = vst.msk [vmem:[#allocation2 + $0x28c] sm:$0xf] %vm189, 0
          %355 = vst.msk [vmem:[#allocation2 + $0x290] sm:$0x1] %vm194, 0
          %356 = vst.msk [vmem:[#allocation2 + $0x294] sm:$0xf] %vm189, 0
          %357 = vst.msk [vmem:[#allocation2 + $0x298] sm:$0xf] %vm189, 0
          %358 = vst.msk [vmem:[#allocation2 + $0x29c] sm:$0xf] %vm189, 0
          %359 = vst.msk [vmem:[#allocation2 + $0x2a0] sm:$0xf] %vm189, 0
          %360 = vst.msk [vmem:[#allocation2 + $0x2a4] sm:$0x1] %vm194, 0
          %v361 = vld [vmem:[%s182] sm:$0xf]
          %v362 = vld [vmem:[%s182 + $0x4] sm:$0xf]
          %v363 = vld [vmem:[%s182 + $0x8] sm:$0xf]
          %v364 = vld [vmem:[%s182 + $0xc] sm:$0xf]
          %v365 = vld [vmem:[%s182 + $0x10] sm:$0xf]
          %v366 = vld [vmem:[%s182 + $0x14] sm:$0xf]
          %v367 = vld [vmem:[%s182 + $0x18] sm:$0xf]
          %v368 = vld [vmem:[%s182 + $0x1c] sm:$0xf]
          %v369 = vld [vmem:[%s182 + $0x20] sm:$0xf]
          %v370 = vld [vmem:[%s182 + $0x24] sm:$0xf]
          %v371 = vld [vmem:[%s182 + $0x28] sm:$0xf]
          %v372 = vld [vmem:[%s182 + $0x2c] sm:$0xf]
          %v373 = vld [vmem:[%s182 + $0x30] sm:$0xf]
          %v374 = vld [vmem:[%s182 + $0x34] sm:$0xf]
          %v375 = vld [vmem:[%s182 + $0x38] sm:$0xf]
          %v376 = vld [vmem:[%s182 + $0x3c] sm:$0xf]
          %v377 = vld [vmem:[%s182 + $0x40] sm:$0xf]
          %v378 = vld [vmem:[%s182 + $0x44] sm:$0xf]
          %v379 = vld [vmem:[%s182 + $0x48] sm:$0xf]
          %v380 = vld [vmem:[%s182 + $0x4c] sm:$0xf]
          %v381 = vld [vmem:[%s182 + $0x50] sm:$0xf]
          %v382 = vld [vmem:[%s182 + $0x54] sm:$0xf]
          %v383 = vld [vmem:[%s182 + $0x58] sm:$0xf]
          %v384 = vld [vmem:[%s182 + $0x5c] sm:$0xf]
          %v385 = vld [vmem:[%s182 + $0x60] sm:$0xf]
          %v386 = vld [vmem:[%s182 + $0x64] sm:$0xf]
          %v387 = vld [vmem:[%s182 + $0x68] sm:$0xf]
          %v388 = vld [vmem:[%s182 + $0x6c] sm:$0xf]
          %v389 = vld [vmem:[%s182 + $0x70] sm:$0xf]
          %v390 = vld [vmem:[%s182 + $0x74] sm:$0xf]
          %v391 = vld [vmem:[%s182 + $0x78] sm:$0xf]
          %v392 = vld [vmem:[%s182 + $0x7c] sm:$0xf]
          %v393 = vld [vmem:[%s182 + $0x80] sm:$0xf]
          %v394 = vld [vmem:[%s182 + $0x84] sm:$0xf]
          %v395 = vld [vmem:[%s182 + $0x88] sm:$0xf]
          %v396 = vld [vmem:[%s182 + $0x8c] sm:$0xf]
          %v397 = vld [vmem:[%s182 + $0x90] sm:$0xf]
          %v398 = vld [vmem:[%s182 + $0x94] sm:$0xf]
          %v399 = vld [vmem:[%s182 + $0x98] sm:$0xf]
          %v400 = vld [vmem:[%s182 + $0x9c] sm:$0xf]
          %v401 = vld [vmem:[%s182 + $0xa0] sm:$0xf]
          %v402 = vld [vmem:[%s182 + $0xa4] sm:$0xf]
          %v403 = vld [vmem:[%s182 + $0xa8] sm:$0xf]
          %v404 = vld [vmem:[%s182 + $0xac] sm:$0xf]
          %v405 = vld [vmem:[%s182 + $0xb0] sm:$0xf]
          %v406 = vld [vmem:[%s182 + $0xb4] sm:$0xf]
          %v407 = vld [vmem:[%s182 + $0xb8] sm:$0xf]
          %v408 = vld [vmem:[%s182 + $0xbc] sm:$0xf]
          %v409 = vld [vmem:[%s182 + $0xc0] sm:$0xf]
          %v410 = vld [vmem:[%s182 + $0xc4] sm:$0xf]
          %v411 = vld [vmem:[%s182 + $0xc8] sm:$0xf]
          %v412 = vld [vmem:[%s182 + $0xcc] sm:$0xf]
          %v413 = vld [vmem:[%s182 + $0xd0] sm:$0xf]
          %v414 = vld [vmem:[%s182 + $0xd4] sm:$0xf]
          %v415 = vld [vmem:[%s182 + $0xd8] sm:$0xf]
          %v416 = vld [vmem:[%s182 + $0xdc] sm:$0xf]
          %v417 = vld [vmem:[%s182 + $0xe0] sm:$0xf]
          %v418 = vld [vmem:[%s182 + $0xe4] sm:$0xf]
          %v419 = vld [vmem:[%s182 + $0xe8] sm:$0xf]
          %v420 = vld [vmem:[%s182 + $0xec] sm:$0xf]
          %v421 = vld [vmem:[%s182 + $0xf0] sm:$0xf]
          %v422 = vld [vmem:[%s182 + $0xf4] sm:$0xf]
          %v423 = vld [vmem:[%s182 + $0xf8] sm:$0xf]
          %v424 = vld [vmem:[%s182 + $0xfc] sm:$0xf]
          %v425 = vld [vmem:[%s182 + $0x100] sm:$0xf]
          %v426 = vld [vmem:[%s182 + $0x104] sm:$0xf]
          %v427 = vld [vmem:[%s182 + $0x108] sm:$0xf]
          %v428 = vld [vmem:[%s182 + $0x10c] sm:$0xf]
          %v429 = vld [vmem:[%s182 + $0x110] sm:$0xf]
          %v430 = vld [vmem:[%s182 + $0x114] sm:$0xf]
          %v431 = vld [vmem:[%s182 + $0x118] sm:$0xf]
          %v432 = vld [vmem:[%s182 + $0x11c] sm:$0xf]
          %v433 = vld [vmem:[%s182 + $0x120] sm:$0xf]
          %v434 = vld [vmem:[%s182 + $0x124] sm:$0xf]
          %v435 = vld [vmem:[%s182 + $0x128] sm:$0xf]
          %v436 = vld [vmem:[%s182 + $0x12c] sm:$0xf]
          %v437 = vld [vmem:[%s182 + $0x130] sm:$0xf]
          %v438 = vld [vmem:[%s182 + $0x134] sm:$0xf]
          %v439 = vld [vmem:[%s182 + $0x138] sm:$0xf]
          %v440 = vld [vmem:[%s182 + $0x13c] sm:$0xf]
          %v441 = vld [vmem:[%s182 + $0x140] sm:$0xf]
          %v442 = vld [vmem:[%s182 + $0x144] sm:$0xf]
          %v443 = vld [vmem:[%s182 + $0x148] sm:$0xf]
          %v444 = vld [vmem:[%s182 + $0x14c] sm:$0xf]
          %v445 = vld [vmem:[%s182 + $0x150] sm:$0xf]
          %v446 = vld [vmem:[%s182 + $0x154] sm:$0xf]
          %v447 = vld [vmem:[%s182 + $0x158] sm:$0xf]
          %v448 = vld [vmem:[%s182 + $0x15c] sm:$0xf]
          %v449 = vld [vmem:[%s182 + $0x160] sm:$0xf]
          %v450 = vld [vmem:[%s182 + $0x164] sm:$0xf]
          %v451 = vld [vmem:[%s182 + $0x168] sm:$0xf]
          %v452 = vld [vmem:[%s182 + $0x16c] sm:$0xf]
          %v453 = vld [vmem:[%s182 + $0x170] sm:$0xf]
          %v454 = vld [vmem:[%s182 + $0x174] sm:$0xf]
          %v455 = vld [vmem:[%s182 + $0x178] sm:$0xf]
          %v456 = vld [vmem:[%s182 + $0x17c] sm:$0xf]
          %v457 = vld [vmem:[%s182 + $0x180] sm:$0xf]
          %v458 = vld [vmem:[%s182 + $0x184] sm:$0xf]
          %v459 = vld [vmem:[%s182 + $0x188] sm:$0xf]
          %v460 = vld [vmem:[%s182 + $0x18c] sm:$0xf]
          %v461 = vld [vmem:[%s182 + $0x190] sm:$0xf]
          %v462 = vld [vmem:[%s182 + $0x194] sm:$0xf]
          %v463 = vld [vmem:[%s182 + $0x198] sm:$0xf]
          %v464 = vld [vmem:[%s182 + $0x19c] sm:$0xf]
          %v465 = vld [vmem:[%s182 + $0x1a0] sm:$0xf]
          %v466 = vld [vmem:[%s182 + $0x1a4] sm:$0xf]
          %v467 = vld [vmem:[%s182 + $0x1a8] sm:$0xf]
          %v468 = vld [vmem:[%s182 + $0x1ac] sm:$0xf]
          %v469 = vld [vmem:[%s182 + $0x1b0] sm:$0xf]
          %v470 = vld [vmem:[%s182 + $0x1b4] sm:$0xf]
          %v471 = vld [vmem:[%s182 + $0x1b8] sm:$0xf]
          %v472 = vld [vmem:[%s182 + $0x1bc] sm:$0xf]
          %v473 = vld [vmem:[%s182 + $0x1c0] sm:$0xf]
          %v474 = vld [vmem:[%s182 + $0x1c4] sm:$0xf]
          %v475 = vld [vmem:[%s182 + $0x1c8] sm:$0xf]
          %v476 = vld [vmem:[%s182 + $0x1cc] sm:$0xf]
          %v477 = vld [vmem:[%s182 + $0x1d0] sm:$0xf]
          %v478 = vld [vmem:[%s182 + $0x1d4] sm:$0xf]
          %v479 = vld [vmem:[%s182 + $0x1d8] sm:$0xf]
          %v480 = vld [vmem:[%s182 + $0x1dc] sm:$0xf]
          %v481 = vld [vmem:[%s182 + $0x1e0] sm:$0xf]
          %v482 = vld [vmem:[%s182 + $0x1e4] sm:$0xf]
          %v483 = vld [vmem:[%s182 + $0x1e8] sm:$0xf]
          %v484 = vld [vmem:[%s182 + $0x1ec] sm:$0xf]
          %v485 = vld [vmem:[%s182 + $0x1f0] sm:$0xf]
          %v486 = vld [vmem:[%s182 + $0x1f4] sm:$0xf]
          %v487 = vld [vmem:[%s182 + $0x1f8] sm:$0xf]
          %v488 = vld [vmem:[%s182 + $0x1fc] sm:$0xf]
          %vm489 = vsmask.f32 256
          %vm490 = vsmask.f32 4368
          %vm491 = vmor %vm489, %vm490
          %v493 = vshrl.u32 %v361, 16
          %v495 = vrot.slane %v493, 7
          %v496 = vshll.u32 %v361, 16
          %v498 = vor.u32 %v495, %v496
          %v499 = vrot.slane %v495, 4
          %v501 = vshrl.u32 %v362, 16
          %v503 = vrot.slane %v501, 7
          %v504 = vshll.u32 %v362, 16
          %v506 = vor.u32 %v503, %v504
          %v507 = vsel %vm491, %v499, %v506
          %v508 = vrot.slane %v503, 4
          %v510 = vshrl.u32 %v363, 16
          %v512 = vrot.slane %v510, 7
          %v513 = vshll.u32 %v363, 16
          %v515 = vor.u32 %v512, %v513
          %v516 = vsel %vm491, %v508, %v515
          %v517 = vrot.slane %v512, 4
          %v519 = vshrl.u32 %v364, 16
          %v521 = vrot.slane %v519, 7
          %v522 = vshll.u32 %v364, 16
          %v524 = vor.u32 %v521, %v522
          %v525 = vsel %vm491, %v517, %v524
          %v526 = vrot.slane %v521, 4
          %v528 = vshrl.u32 %v365, 16
          %v530 = vrot.slane %v528, 7
          %v531 = vshll.u32 %v365, 16
          %v533 = vor.u32 %v530, %v531
          %v534 = vrot.slane %v530, 4
          %v536 = vshrl.u32 %v366, 16
          %v538 = vrot.slane %v536, 7
          %v539 = vshll.u32 %v366, 16
          %v541 = vor.u32 %v538, %v539
          %v542 = vsel %vm491, %v534, %v541
          %v543 = vrot.slane %v538, 4
          %v545 = vshrl.u32 %v367, 16
          %v547 = vrot.slane %v545, 7
          %v548 = vshll.u32 %v367, 16
          %v550 = vor.u32 %v547, %v548
          %v551 = vsel %vm491, %v543, %v550
          %v552 = vrot.slane %v547, 4
          %v554 = vshrl.u32 %v368, 16
          %v556 = vrot.slane %v554, 7
          %v557 = vshll.u32 %v368, 16
          %v559 = vor.u32 %v556, %v557
          %v560 = vsel %vm491, %v552, %v559
          %v561 = vrot.slane %v556, 4
          %v563 = vshrl.u32 %v369, 16
          %v565 = vrot.slane %v563, 7
          %v566 = vshll.u32 %v369, 16
          %v568 = vor.u32 %v565, %v566
          %v569 = vrot.slane %v565, 4
          %v571 = vshrl.u32 %v370, 16
          %v573 = vrot.slane %v571, 7
          %v574 = vshll.u32 %v370, 16
          %v576 = vor.u32 %v573, %v574
          %v577 = vsel %vm491, %v569, %v576
          %v578 = vrot.slane %v573, 4
          %v580 = vshrl.u32 %v371, 16
          %v582 = vrot.slane %v580, 7
          %v583 = vshll.u32 %v371, 16
          %v585 = vor.u32 %v582, %v583
          %v586 = vsel %vm491, %v578, %v585
          %v587 = vrot.slane %v582, 4
          %v589 = vshrl.u32 %v372, 16
          %v591 = vrot.slane %v589, 7
          %v592 = vshll.u32 %v372, 16
          %v594 = vor.u32 %v591, %v592
          %v595 = vsel %vm491, %v587, %v594
          %v596 = vrot.slane %v591, 4
          %v598 = vshrl.u32 %v373, 16
          %v600 = vrot.slane %v598, 7
          %v601 = vshll.u32 %v373, 16
          %v603 = vor.u32 %v600, %v601
          %v604 = vrot.slane %v600, 4
          %v606 = vshrl.u32 %v374, 16
          %v608 = vrot.slane %v606, 7
          %v609 = vshll.u32 %v374, 16
          %v611 = vor.u32 %v608, %v609
          %v612 = vsel %vm491, %v604, %v611
          %v613 = vrot.slane %v608, 4
          %v615 = vshrl.u32 %v375, 16
          %v617 = vrot.slane %v615, 7
          %v618 = vshll.u32 %v375, 16
          %v620 = vor.u32 %v617, %v618
          %v621 = vsel %vm491, %v613, %v620
          %v622 = vrot.slane %v617, 4
          %v624 = vshrl.u32 %v376, 16
          %v626 = vrot.slane %v624, 7
          %v627 = vshll.u32 %v376, 16
          %v629 = vor.u32 %v626, %v627
          %v630 = vsel %vm491, %v622, %v629
          %v631 = vrot.slane %v626, 4
          %v633 = vshrl.u32 %v377, 16
          %v635 = vrot.slane %v633, 7
          %v636 = vshll.u32 %v377, 16
          %v638 = vor.u32 %v635, %v636
          %v639 = vrot.slane %v635, 4
          %v641 = vshrl.u32 %v378, 16
          %v643 = vrot.slane %v641, 7
          %v644 = vshll.u32 %v378, 16
          %v646 = vor.u32 %v643, %v644
          %v647 = vsel %vm491, %v639, %v646
          %v648 = vrot.slane %v643, 4
          %v650 = vshrl.u32 %v379, 16
          %v652 = vrot.slane %v650, 7
          %v653 = vshll.u32 %v379, 16
          %v655 = vor.u32 %v652, %v653
          %v656 = vsel %vm491, %v648, %v655
          %v657 = vrot.slane %v652, 4
          %v659 = vshrl.u32 %v380, 16
          %v661 = vrot.slane %v659, 7
          %v662 = vshll.u32 %v380, 16
          %v664 = vor.u32 %v661, %v662
          %v665 = vsel %vm491, %v657, %v664
          %v666 = vrot.slane %v661, 4
          %v668 = vshrl.u32 %v381, 16
          %v670 = vrot.slane %v668, 7
          %v671 = vshll.u32 %v381, 16
          %v673 = vor.u32 %v670, %v671
          %v674 = vrot.slane %v670, 4
          %v676 = vshrl.u32 %v382, 16
          %v678 = vrot.slane %v676, 7
          %v679 = vshll.u32 %v382, 16
          %v681 = vor.u32 %v678, %v679
          %v682 = vsel %vm491, %v674, %v681
          %v683 = vrot.slane %v678, 4
          %v685 = vshrl.u32 %v383, 16
          %v687 = vrot.slane %v685, 7
          %v688 = vshll.u32 %v383, 16
          %v690 = vor.u32 %v687, %v688
          %v691 = vsel %vm491, %v683, %v690
          %v692 = vrot.slane %v687, 4
          %v694 = vshrl.u32 %v384, 16
          %v696 = vrot.slane %v694, 7
          %v697 = vshll.u32 %v384, 16
          %v699 = vor.u32 %v696, %v697
          %v700 = vsel %vm491, %v692, %v699
          %v701 = vrot.slane %v696, 4
          %v703 = vshrl.u32 %v385, 16
          %v705 = vrot.slane %v703, 7
          %v706 = vshll.u32 %v385, 16
          %v708 = vor.u32 %v705, %v706
          %v709 = vrot.slane %v705, 4
          %v711 = vshrl.u32 %v386, 16
          %v713 = vrot.slane %v711, 7
          %v714 = vshll.u32 %v386, 16
          %v716 = vor.u32 %v713, %v714
          %v717 = vsel %vm491, %v709, %v716
          %v718 = vrot.slane %v713, 4
          %v720 = vshrl.u32 %v387, 16
          %v722 = vrot.slane %v720, 7
          %v723 = vshll.u32 %v387, 16
          %v725 = vor.u32 %v722, %v723
          %v726 = vsel %vm491, %v718, %v725
          %v727 = vrot.slane %v722, 4
          %v729 = vshrl.u32 %v388, 16
          %v731 = vrot.slane %v729, 7
          %v732 = vshll.u32 %v388, 16
          %v734 = vor.u32 %v731, %v732
          %v735 = vsel %vm491, %v727, %v734
          %v736 = vrot.slane %v731, 4
          %v738 = vshrl.u32 %v389, 16
          %v740 = vrot.slane %v738, 7
          %v741 = vshll.u32 %v389, 16
          %v743 = vor.u32 %v740, %v741
          %v744 = vrot.slane %v740, 4
          %v746 = vshrl.u32 %v390, 16
          %v748 = vrot.slane %v746, 7
          %v749 = vshll.u32 %v390, 16
          %v751 = vor.u32 %v748, %v749
          %v752 = vsel %vm491, %v744, %v751
          %v753 = vrot.slane %v748, 4
          %v755 = vshrl.u32 %v391, 16
          %v757 = vrot.slane %v755, 7
          %v758 = vshll.u32 %v391, 16
          %v760 = vor.u32 %v757, %v758
          %v761 = vsel %vm491, %v753, %v760
          %v762 = vrot.slane %v757, 4
          %v764 = vshrl.u32 %v392, 16
          %v766 = vrot.slane %v764, 7
          %v767 = vshll.u32 %v392, 16
          %v769 = vor.u32 %v766, %v767
          %v770 = vsel %vm491, %v762, %v769
          %v771 = vrot.slane %v766, 4
          %v773 = vshrl.u32 %v393, 16
          %v775 = vrot.slane %v773, 7
          %v776 = vshll.u32 %v393, 16
          %v778 = vor.u32 %v775, %v776
          %v779 = vrot.slane %v775, 4
          %v781 = vshrl.u32 %v394, 16
          %v783 = vrot.slane %v781, 7
          %v784 = vshll.u32 %v394, 16
          %v786 = vor.u32 %v783, %v784
          %v787 = vsel %vm491, %v779, %v786
          %v788 = vrot.slane %v783, 4
          %v790 = vshrl.u32 %v395, 16
          %v792 = vrot.slane %v790, 7
          %v793 = vshll.u32 %v395, 16
          %v795 = vor.u32 %v792, %v793
          %v796 = vsel %vm491, %v788, %v795
          %v797 = vrot.slane %v792, 4
          %v799 = vshrl.u32 %v396, 16
          %v801 = vrot.slane %v799, 7
          %v802 = vshll.u32 %v396, 16
          %v804 = vor.u32 %v801, %v802
          %v805 = vsel %vm491, %v797, %v804
          %v806 = vrot.slane %v801, 4
          %v808 = vshrl.u32 %v397, 16
          %v810 = vrot.slane %v808, 7
          %v811 = vshll.u32 %v397, 16
          %v813 = vor.u32 %v810, %v811
          %v814 = vrot.slane %v810, 4
          %v816 = vshrl.u32 %v398, 16
          %v818 = vrot.slane %v816, 7
          %v819 = vshll.u32 %v398, 16
          %v821 = vor.u32 %v818, %v819
          %v822 = vsel %vm491, %v814, %v821
          %v823 = vrot.slane %v818, 4
          %v825 = vshrl.u32 %v399, 16
          %v827 = vrot.slane %v825, 7
          %v828 = vshll.u32 %v399, 16
          %v830 = vor.u32 %v827, %v828
          %v831 = vsel %vm491, %v823, %v830
          %v832 = vrot.slane %v827, 4
          %v834 = vshrl.u32 %v400, 16
          %v836 = vrot.slane %v834, 7
          %v837 = vshll.u32 %v400, 16
          %v839 = vor.u32 %v836, %v837
          %v840 = vsel %vm491, %v832, %v839
          %v841 = vrot.slane %v836, 4
          %v843 = vshrl.u32 %v401, 16
          %v845 = vrot.slane %v843, 7
          %v846 = vshll.u32 %v401, 16
          %v848 = vor.u32 %v845, %v846
          %v849 = vrot.slane %v845, 4
          %v851 = vshrl.u32 %v402, 16
          %v853 = vrot.slane %v851, 7
          %v854 = vshll.u32 %v402, 16
          %v856 = vor.u32 %v853, %v854
          %v857 = vsel %vm491, %v849, %v856
          %v858 = vrot.slane %v853, 4
          %v860 = vshrl.u32 %v403, 16
          %v862 = vrot.slane %v860, 7
          %v863 = vshll.u32 %v403, 16
          %v865 = vor.u32 %v862, %v863
          %v866 = vsel %vm491, %v858, %v865
          %v867 = vrot.slane %v862, 4
          %v869 = vshrl.u32 %v404, 16
          %v871 = vrot.slane %v869, 7
          %v872 = vshll.u32 %v404, 16
          %v874 = vor.u32 %v871, %v872
          %v875 = vsel %vm491, %v867, %v874
          %v876 = vrot.slane %v871, 4
          %v878 = vshrl.u32 %v405, 16
          %v880 = vrot.slane %v878, 7
          %v881 = vshll.u32 %v405, 16
          %v883 = vor.u32 %v880, %v881
          %v884 = vrot.slane %v880, 4
          %v886 = vshrl.u32 %v406, 16
          %v888 = vrot.slane %v886, 7
          %v889 = vshll.u32 %v406, 16
          %v891 = vor.u32 %v888, %v889
          %v892 = vsel %vm491, %v884, %v891
          %v893 = vrot.slane %v888, 4
          %v895 = vshrl.u32 %v407, 16
          %v897 = vrot.slane %v895, 7
          %v898 = vshll.u32 %v407, 16
          %v900 = vor.u32 %v897, %v898
          %v901 = vsel %vm491, %v893, %v900
          %v902 = vrot.slane %v897, 4
          %v904 = vshrl.u32 %v408, 16
          %v906 = vrot.slane %v904, 7
          %v907 = vshll.u32 %v408, 16
          %v909 = vor.u32 %v906, %v907
          %v910 = vsel %vm491, %v902, %v909
          %v911 = vrot.slane %v906, 4
          %v913 = vshrl.u32 %v409, 16
          %v915 = vrot.slane %v913, 7
          %v916 = vshll.u32 %v409, 16
          %v918 = vor.u32 %v915, %v916
          %v919 = vrot.slane %v915, 4
          %v921 = vshrl.u32 %v410, 16
          %v923 = vrot.slane %v921, 7
          %v924 = vshll.u32 %v410, 16
          %v926 = vor.u32 %v923, %v924
          %v927 = vsel %vm491, %v919, %v926
          %v928 = vrot.slane %v923, 4
          %v930 = vshrl.u32 %v411, 16
          %v932 = vrot.slane %v930, 7
          %v933 = vshll.u32 %v411, 16
          %v935 = vor.u32 %v932, %v933
          %v936 = vsel %vm491, %v928, %v935
          %v937 = vrot.slane %v932, 4
          %v939 = vshrl.u32 %v412, 16
          %v941 = vrot.slane %v939, 7
          %v942 = vshll.u32 %v412, 16
          %v944 = vor.u32 %v941, %v942
          %v945 = vsel %vm491, %v937, %v944
          %v946 = vrot.slane %v941, 4
          %v948 = vshrl.u32 %v413, 16
          %v950 = vrot.slane %v948, 7
          %v951 = vshll.u32 %v413, 16
          %v953 = vor.u32 %v950, %v951
          %v954 = vrot.slane %v950, 4
          %v956 = vshrl.u32 %v414, 16
          %v958 = vrot.slane %v956, 7
          %v959 = vshll.u32 %v414, 16
          %v961 = vor.u32 %v958, %v959
          %v962 = vsel %vm491, %v954, %v961
          %v963 = vrot.slane %v958, 4
          %v965 = vshrl.u32 %v415, 16
          %v967 = vrot.slane %v965, 7
          %v968 = vshll.u32 %v415, 16
          %v970 = vor.u32 %v967, %v968
          %v971 = vsel %vm491, %v963, %v970
          %v972 = vrot.slane %v967, 4
          %v974 = vshrl.u32 %v416, 16
          %v976 = vrot.slane %v974, 7
          %v977 = vshll.u32 %v416, 16
          %v979 = vor.u32 %v976, %v977
          %v980 = vsel %vm491, %v972, %v979
          %v981 = vrot.slane %v976, 4
          %v983 = vshrl.u32 %v417, 16
          %v985 = vrot.slane %v983, 7
          %v986 = vshll.u32 %v417, 16
          %v988 = vor.u32 %v985, %v986
          %v989 = vrot.slane %v985, 4
          %v991 = vshrl.u32 %v418, 16
          %v993 = vrot.slane %v991, 7
          %v994 = vshll.u32 %v418, 16
          %v996 = vor.u32 %v993, %v994
          %v997 = vsel %vm491, %v989, %v996
          %v998 = vrot.slane %v993, 4
          %v1000 = vshrl.u32 %v419, 16
          %v1002 = vrot.slane %v1000, 7
          %v1003 = vshll.u32 %v419, 16
          %v1005 = vor.u32 %v1002, %v1003
          %v1006 = vsel %vm491, %v998, %v1005
          %v1007 = vrot.slane %v1002, 4
          %v1009 = vshrl.u32 %v420, 16
          %v1011 = vrot.slane %v1009, 7
          %v1012 = vshll.u32 %v420, 16
          %v1014 = vor.u32 %v1011, %v1012
          %v1015 = vsel %vm491, %v1007, %v1014
          %v1016 = vrot.slane %v1011, 4
          %v1018 = vshrl.u32 %v421, 16
          %v1020 = vrot.slane %v1018, 7
          %v1021 = vshll.u32 %v421, 16
          %v1023 = vor.u32 %v1020, %v1021
          %v1024 = vrot.slane %v1020, 4
          %v1026 = vshrl.u32 %v422, 16
          %v1028 = vrot.slane %v1026, 7
          %v1029 = vshll.u32 %v422, 16
          %v1031 = vor.u32 %v1028, %v1029
          %v1032 = vsel %vm491, %v1024, %v1031
          %v1033 = vrot.slane %v1028, 4
          %v1035 = vshrl.u32 %v423, 16
          %v1037 = vrot.slane %v1035, 7
          %v1038 = vshll.u32 %v423, 16
          %v1040 = vor.u32 %v1037, %v1038
          %v1041 = vsel %vm491, %v1033, %v1040
          %v1042 = vrot.slane %v1037, 4
          %v1044 = vshrl.u32 %v424, 16
          %v1046 = vrot.slane %v1044, 7
          %v1047 = vshll.u32 %v424, 16
          %v1049 = vor.u32 %v1046, %v1047
          %v1050 = vsel %vm491, %v1042, %v1049
          %v1051 = vrot.slane %v1046, 4
          %v1053 = vshrl.u32 %v425, 16
          %v1055 = vrot.slane %v1053, 7
          %v1056 = vshll.u32 %v425, 16
          %v1058 = vor.u32 %v1055, %v1056
          %v1059 = vrot.slane %v1055, 4
          %v1061 = vshrl.u32 %v426, 16
          %v1063 = vrot.slane %v1061, 7
          %v1064 = vshll.u32 %v426, 16
          %v1066 = vor.u32 %v1063, %v1064
          %v1067 = vsel %vm491, %v1059, %v1066
          %v1068 = vrot.slane %v1063, 4
          %v1070 = vshrl.u32 %v427, 16
          %v1072 = vrot.slane %v1070, 7
          %v1073 = vshll.u32 %v427, 16
          %v1075 = vor.u32 %v1072, %v1073
          %v1076 = vsel %vm491, %v1068, %v1075
          %v1077 = vrot.slane %v1072, 4
          %v1079 = vshrl.u32 %v428, 16
          %v1081 = vrot.slane %v1079, 7
          %v1082 = vshll.u32 %v428, 16
          %v1084 = vor.u32 %v1081, %v1082
          %v1085 = vsel %vm491, %v1077, %v1084
          %v1086 = vrot.slane %v1081, 4
          %v1088 = vshrl.u32 %v429, 16
          %v1090 = vrot.slane %v1088, 7
          %v1091 = vshll.u32 %v429, 16
          %v1093 = vor.u32 %v1090, %v1091
          %v1094 = vrot.slane %v1090, 4
          %v1096 = vshrl.u32 %v430, 16
          %v1098 = vrot.slane %v1096, 7
          %v1099 = vshll.u32 %v430, 16
          %v1101 = vor.u32 %v1098, %v1099
          %v1102 = vsel %vm491, %v1094, %v1101
          %v1103 = vrot.slane %v1098, 4
          %v1105 = vshrl.u32 %v431, 16
          %v1107 = vrot.slane %v1105, 7
          %v1108 = vshll.u32 %v431, 16
          %v1110 = vor.u32 %v1107, %v1108
          %v1111 = vsel %vm491, %v1103, %v1110
          %v1112 = vrot.slane %v1107, 4
          %v1114 = vshrl.u32 %v432, 16
          %v1116 = vrot.slane %v1114, 7
          %v1117 = vshll.u32 %v432, 16
          %v1119 = vor.u32 %v1116, %v1117
          %v1120 = vsel %vm491, %v1112, %v1119
          %v1121 = vrot.slane %v1116, 4
          %v1123 = vshrl.u32 %v433, 16
          %v1125 = vrot.slane %v1123, 7
          %v1126 = vshll.u32 %v433, 16
          %v1128 = vor.u32 %v1125, %v1126
          %v1129 = vrot.slane %v1125, 4
          %v1131 = vshrl.u32 %v434, 16
          %v1133 = vrot.slane %v1131, 7
          %v1134 = vshll.u32 %v434, 16
          %v1136 = vor.u32 %v1133, %v1134
          %v1137 = vsel %vm491, %v1129, %v1136
          %v1138 = vrot.slane %v1133, 4
          %v1140 = vshrl.u32 %v435, 16
          %v1142 = vrot.slane %v1140, 7
          %v1143 = vshll.u32 %v435, 16
          %v1145 = vor.u32 %v1142, %v1143
          %v1146 = vsel %vm491, %v1138, %v1145
          %v1147 = vrot.slane %v1142, 4
          %v1149 = vshrl.u32 %v436, 16
          %v1151 = vrot.slane %v1149, 7
          %v1152 = vshll.u32 %v436, 16
          %v1154 = vor.u32 %v1151, %v1152
          %v1155 = vsel %vm491, %v1147, %v1154
          %v1156 = vrot.slane %v1151, 4
          %v1158 = vshrl.u32 %v437, 16
          %v1160 = vrot.slane %v1158, 7
          %v1161 = vshll.u32 %v437, 16
          %v1163 = vor.u32 %v1160, %v1161
          %v1164 = vrot.slane %v1160, 4
          %v1166 = vshrl.u32 %v438, 16
          %v1168 = vrot.slane %v1166, 7
          %v1169 = vshll.u32 %v438, 16
          %v1171 = vor.u32 %v1168, %v1169
          %v1172 = vsel %vm491, %v1164, %v1171
          %v1173 = vrot.slane %v1168, 4
          %v1175 = vshrl.u32 %v439, 16
          %v1177 = vrot.slane %v1175, 7
          %v1178 = vshll.u32 %v439, 16
          %v1180 = vor.u32 %v1177, %v1178
          %v1181 = vsel %vm491, %v1173, %v1180
          %v1182 = vrot.slane %v1177, 4
          %v1184 = vshrl.u32 %v440, 16
          %v1186 = vrot.slane %v1184, 7
          %v1187 = vshll.u32 %v440, 16
          %v1189 = vor.u32 %v1186, %v1187
          %v1190 = vsel %vm491, %v1182, %v1189
          %v1191 = vrot.slane %v1186, 4
          %v1193 = vshrl.u32 %v441, 16
          %v1195 = vrot.slane %v1193, 7
          %v1196 = vshll.u32 %v441, 16
          %v1198 = vor.u32 %v1195, %v1196
          %v1199 = vrot.slane %v1195, 4
          %v1201 = vshrl.u32 %v442, 16
          %v1203 = vrot.slane %v1201, 7
          %v1204 = vshll.u32 %v442, 16
          %v1206 = vor.u32 %v1203, %v1204
          %v1207 = vsel %vm491, %v1199, %v1206
          %v1208 = vrot.slane %v1203, 4
          %v1210 = vshrl.u32 %v443, 16
          %v1212 = vrot.slane %v1210, 7
          %v1213 = vshll.u32 %v443, 16
          %v1215 = vor.u32 %v1212, %v1213
          %v1216 = vsel %vm491, %v1208, %v1215
          %v1217 = vrot.slane %v1212, 4
          %v1219 = vshrl.u32 %v444, 16
          %v1221 = vrot.slane %v1219, 7
          %v1222 = vshll.u32 %v444, 16
          %v1224 = vor.u32 %v1221, %v1222
          %v1225 = vsel %vm491, %v1217, %v1224
          %v1226 = vrot.slane %v1221, 4
          %v1228 = vshrl.u32 %v445, 16
          %v1230 = vrot.slane %v1228, 7
          %v1231 = vshll.u32 %v445, 16
          %v1233 = vor.u32 %v1230, %v1231
          %v1234 = vrot.slane %v1230, 4
          %v1236 = vshrl.u32 %v446, 16
          %v1238 = vrot.slane %v1236, 7
          %v1239 = vshll.u32 %v446, 16
          %v1241 = vor.u32 %v1238, %v1239
          %v1242 = vsel %vm491, %v1234, %v1241
          %v1243 = vrot.slane %v1238, 4
          %v1245 = vshrl.u32 %v447, 16
          %v1247 = vrot.slane %v1245, 7
          %v1248 = vshll.u32 %v447, 16
          %v1250 = vor.u32 %v1247, %v1248
          %v1251 = vsel %vm491, %v1243, %v1250
          %v1252 = vrot.slane %v1247, 4
          %v1254 = vshrl.u32 %v448, 16
          %v1256 = vrot.slane %v1254, 7
          %v1257 = vshll.u32 %v448, 16
          %v1259 = vor.u32 %v1256, %v1257
          %v1260 = vsel %vm491, %v1252, %v1259
          %v1261 = vrot.slane %v1256, 4
          %v1263 = vshrl.u32 %v449, 16
          %v1265 = vrot.slane %v1263, 7
          %v1266 = vshll.u32 %v449, 16
          %v1268 = vor.u32 %v1265, %v1266
          %v1269 = vrot.slane %v1265, 4
          %v1271 = vshrl.u32 %v450, 16
          %v1273 = vrot.slane %v1271, 7
          %v1274 = vshll.u32 %v450, 16
          %v1276 = vor.u32 %v1273, %v1274
          %v1277 = vsel %vm491, %v1269, %v1276
          %v1278 = vrot.slane %v1273, 4
          %v1280 = vshrl.u32 %v451, 16
          %v1282 = vrot.slane %v1280, 7
          %v1283 = vshll.u32 %v451, 16
          %v1285 = vor.u32 %v1282, %v1283
          %v1286 = vsel %vm491, %v1278, %v1285
          %v1287 = vrot.slane %v1282, 4
          %v1289 = vshrl.u32 %v452, 16
          %v1291 = vrot.slane %v1289, 7
          %v1292 = vshll.u32 %v452, 16
          %v1294 = vor.u32 %v1291, %v1292
          %v1295 = vsel %vm491, %v1287, %v1294
          %v1296 = vrot.slane %v1291, 4
          %v1298 = vshrl.u32 %v453, 16
          %v1300 = vrot.slane %v1298, 7
          %v1301 = vshll.u32 %v453, 16
          %v1303 = vor.u32 %v1300, %v1301
          %v1304 = vrot.slane %v1300, 4
          %v1306 = vshrl.u32 %v454, 16
          %v1308 = vrot.slane %v1306, 7
          %v1309 = vshll.u32 %v454, 16
          %v1311 = vor.u32 %v1308, %v1309
          %v1312 = vsel %vm491, %v1304, %v1311
          %v1313 = vrot.slane %v1308, 4
          %v1315 = vshrl.u32 %v455, 16
          %v1317 = vrot.slane %v1315, 7
          %v1318 = vshll.u32 %v455, 16
          %v1320 = vor.u32 %v1317, %v1318
          %v1321 = vsel %vm491, %v1313, %v1320
          %v1322 = vrot.slane %v1317, 4
          %v1324 = vshrl.u32 %v456, 16
          %v1326 = vrot.slane %v1324, 7
          %v1327 = vshll.u32 %v456, 16
          %v1329 = vor.u32 %v1326, %v1327
          %v1330 = vsel %vm491, %v1322, %v1329
          %v1331 = vrot.slane %v1326, 4
          %v1333 = vshrl.u32 %v457, 16
          %v1335 = vrot.slane %v1333, 7
          %v1336 = vshll.u32 %v457, 16
          %v1338 = vor.u32 %v1335, %v1336
          %v1339 = vrot.slane %v1335, 4
          %v1341 = vshrl.u32 %v458, 16
          %v1343 = vrot.slane %v1341, 7
          %v1344 = vshll.u32 %v458, 16
          %v1346 = vor.u32 %v1343, %v1344
          %v1347 = vsel %vm491, %v1339, %v1346
          %v1348 = vrot.slane %v1343, 4
          %v1350 = vshrl.u32 %v459, 16
          %v1352 = vrot.slane %v1350, 7
          %v1353 = vshll.u32 %v459, 16
          %v1355 = vor.u32 %v1352, %v1353
          %v1356 = vsel %vm491, %v1348, %v1355
          %v1357 = vrot.slane %v1352, 4
          %v1359 = vshrl.u32 %v460, 16
          %v1361 = vrot.slane %v1359, 7
          %v1362 = vshll.u32 %v460, 16
          %v1364 = vor.u32 %v1361, %v1362
          %v1365 = vsel %vm491, %v1357, %v1364
          %v1366 = vrot.slane %v1361, 4
          %v1368 = vshrl.u32 %v461, 16
          %v1370 = vrot.slane %v1368, 7
          %v1371 = vshll.u32 %v461, 16
          %v1373 = vor.u32 %v1370, %v1371
          %v1374 = vrot.slane %v1370, 4
          %v1376 = vshrl.u32 %v462, 16
          %v1378 = vrot.slane %v1376, 7
          %v1379 = vshll.u32 %v462, 16
          %v1381 = vor.u32 %v1378, %v1379
          %v1382 = vsel %vm491, %v1374, %v1381
          %v1383 = vrot.slane %v1378, 4
          %v1385 = vshrl.u32 %v463, 16
          %v1387 = vrot.slane %v1385, 7
          %v1388 = vshll.u32 %v463, 16
          %v1390 = vor.u32 %v1387, %v1388
          %v1391 = vsel %vm491, %v1383, %v1390
          %v1392 = vrot.slane %v1387, 4
          %v1394 = vshrl.u32 %v464, 16
          %v1396 = vrot.slane %v1394, 7
          %v1397 = vshll.u32 %v464, 16
          %v1399 = vor.u32 %v1396, %v1397
          %v1400 = vsel %vm491, %v1392, %v1399
          %v1401 = vrot.slane %v1396, 4
          %v1403 = vshrl.u32 %v465, 16
          %v1405 = vrot.slane %v1403, 7
          %v1406 = vshll.u32 %v465, 16
          %v1408 = vor.u32 %v1405, %v1406
          %v1409 = vrot.slane %v1405, 4
          %v1411 = vshrl.u32 %v466, 16
          %v1413 = vrot.slane %v1411, 7
          %v1414 = vshll.u32 %v466, 16
          %v1416 = vor.u32 %v1413, %v1414
          %v1417 = vsel %vm491, %v1409, %v1416
          %v1418 = vrot.slane %v1413, 4
          %v1420 = vshrl.u32 %v467, 16
          %v1422 = vrot.slane %v1420, 7
          %v1423 = vshll.u32 %v467, 16
          %v1425 = vor.u32 %v1422, %v1423
          %v1426 = vsel %vm491, %v1418, %v1425
          %v1427 = vrot.slane %v1422, 4
          %v1429 = vshrl.u32 %v468, 16
          %v1431 = vrot.slane %v1429, 7
          %v1432 = vshll.u32 %v468, 16
          %v1434 = vor.u32 %v1431, %v1432
          %v1435 = vsel %vm491, %v1427, %v1434
          %v1436 = vrot.slane %v1431, 4
          %v1438 = vshrl.u32 %v469, 16
          %v1440 = vrot.slane %v1438, 7
          %v1441 = vshll.u32 %v469, 16
          %v1443 = vor.u32 %v1440, %v1441
          %v1444 = vrot.slane %v1440, 4
          %v1446 = vshrl.u32 %v470, 16
          %v1448 = vrot.slane %v1446, 7
          %v1449 = vshll.u32 %v470, 16
          %v1451 = vor.u32 %v1448, %v1449
          %v1452 = vsel %vm491, %v1444, %v1451
          %v1453 = vrot.slane %v1448, 4
          %v1455 = vshrl.u32 %v471, 16
          %v1457 = vrot.slane %v1455, 7
          %v1458 = vshll.u32 %v471, 16
          %v1460 = vor.u32 %v1457, %v1458
          %v1461 = vsel %vm491, %v1453, %v1460
          %v1462 = vrot.slane %v1457, 4
          %v1464 = vshrl.u32 %v472, 16
          %v1466 = vrot.slane %v1464, 7
          %v1467 = vshll.u32 %v472, 16
          %v1469 = vor.u32 %v1466, %v1467
          %v1470 = vsel %vm491, %v1462, %v1469
          %v1471 = vrot.slane %v1466, 4
          %v1473 = vshrl.u32 %v473, 16
          %v1475 = vrot.slane %v1473, 7
          %v1476 = vshll.u32 %v473, 16
          %v1478 = vor.u32 %v1475, %v1476
          %v1479 = vrot.slane %v1475, 4
          %v1481 = vshrl.u32 %v474, 16
          %v1483 = vrot.slane %v1481, 7
          %v1484 = vshll.u32 %v474, 16
          %v1486 = vor.u32 %v1483, %v1484
          %v1487 = vsel %vm491, %v1479, %v1486
          %v1488 = vrot.slane %v1483, 4
          %v1490 = vshrl.u32 %v475, 16
          %v1492 = vrot.slane %v1490, 7
          %v1493 = vshll.u32 %v475, 16
          %v1495 = vor.u32 %v1492, %v1493
          %v1496 = vsel %vm491, %v1488, %v1495
          %v1497 = vrot.slane %v1492, 4
          %v1499 = vshrl.u32 %v476, 16
          %v1501 = vrot.slane %v1499, 7
          %v1502 = vshll.u32 %v476, 16
          %v1504 = vor.u32 %v1501, %v1502
          %v1505 = vsel %vm491, %v1497, %v1504
          %v1506 = vrot.slane %v1501, 4
          %v1508 = vshrl.u32 %v477, 16
          %v1510 = vrot.slane %v1508, 7
          %v1511 = vshll.u32 %v477, 16
          %v1513 = vor.u32 %v1510, %v1511
          %v1514 = vrot.slane %v1510, 4
          %v1516 = vshrl.u32 %v478, 16
          %v1518 = vrot.slane %v1516, 7
          %v1519 = vshll.u32 %v478, 16
          %v1521 = vor.u32 %v1518, %v1519
          %v1522 = vsel %vm491, %v1514, %v1521
          %v1523 = vrot.slane %v1518, 4
          %v1525 = vshrl.u32 %v479, 16
          %v1527 = vrot.slane %v1525, 7
          %v1528 = vshll.u32 %v479, 16
          %v1530 = vor.u32 %v1527, %v1528
          %v1531 = vsel %vm491, %v1523, %v1530
          %v1532 = vrot.slane %v1527, 4
          %v1534 = vshrl.u32 %v480, 16
          %v1536 = vrot.slane %v1534, 7
          %v1537 = vshll.u32 %v480, 16
          %v1539 = vor.u32 %v1536, %v1537
          %v1540 = vsel %vm491, %v1532, %v1539
          %v1541 = vrot.slane %v1536, 4
          %v1543 = vshrl.u32 %v481, 16
          %v1545 = vrot.slane %v1543, 7
          %v1546 = vshll.u32 %v481, 16
          %v1548 = vor.u32 %v1545, %v1546
          %v1549 = vrot.slane %v1545, 4
          %v1551 = vshrl.u32 %v482, 16
          %v1553 = vrot.slane %v1551, 7
          %v1554 = vshll.u32 %v482, 16
          %v1556 = vor.u32 %v1553, %v1554
          %v1557 = vsel %vm491, %v1549, %v1556
          %v1558 = vrot.slane %v1553, 4
          %v1560 = vshrl.u32 %v483, 16
          %v1562 = vrot.slane %v1560, 7
          %v1563 = vshll.u32 %v483, 16
          %v1565 = vor.u32 %v1562, %v1563
          %v1566 = vsel %vm491, %v1558, %v1565
          %v1567 = vrot.slane %v1562, 4
          %v1569 = vshrl.u32 %v484, 16
          %v1571 = vrot.slane %v1569, 7
          %v1572 = vshll.u32 %v484, 16
          %v1574 = vor.u32 %v1571, %v1572
          %v1575 = vsel %vm491, %v1567, %v1574
          %v1576 = vrot.slane %v1571, 4
          %v1578 = vshrl.u32 %v485, 16
          %v1580 = vrot.slane %v1578, 7
          %v1581 = vshll.u32 %v485, 16
          %v1583 = vor.u32 %v1580, %v1581
          %v1584 = vrot.slane %v1580, 4
          %v1586 = vshrl.u32 %v486, 16
          %v1588 = vrot.slane %v1586, 7
          %v1589 = vshll.u32 %v486, 16
          %v1591 = vor.u32 %v1588, %v1589
          %v1592 = vsel %vm491, %v1584, %v1591
          %v1593 = vrot.slane %v1588, 4
          %v1595 = vshrl.u32 %v487, 16
          %v1597 = vrot.slane %v1595, 7
          %v1598 = vshll.u32 %v487, 16
          %v1600 = vor.u32 %v1597, %v1598
          %v1601 = vsel %vm491, %v1593, %v1600
          %v1602 = vrot.slane %v1597, 4
          %v1604 = vshrl.u32 %v488, 16
          %v1606 = vrot.slane %v1604, 7
          %v1607 = vshll.u32 %v488, 16
          %v1609 = vor.u32 %v1606, %v1607
          %v1610 = vsel %vm491, %v1602, %v1609
          %v1611 = vrot.slane %v1606, 4
          %s1772 = scalar_lea.vmem [#allocation2], 20
          %vm1773 = vcmask 19456
          %vm1774 = vsmask.f32 7938
          %vm1775 = vmand %vm1773, %vm1774
          %v1776 = vld [vmem:[%s1772] sm:$0xf]
          %v1777 = vsel %vm1775, %v498, %v1776
          %1778 = vst [vmem:[%s1772] sm:$0xf] %v1777
          %1779 = vst.msk [vmem:[%s1772 + $0x4] sm:$0xf] %vm189, %v507
          %1780 = vst.msk [vmem:[%s1772 + $0x8] sm:$0xf] %vm189, %v516
          %1781 = vst.msk [vmem:[%s1772 + $0xc] sm:$0xf] %vm189, %v525
          %vm1782 = vcmask 16384
          %vm1783 = vmand %vm1782, %vm489
          %v1784 = vld [vmem:[%s1772 + $0x10] sm:$0x1]
          %v1785 = vsel %vm1783, %v526, %v1784
          %1786 = vst [vmem:[%s1772 + $0x10] sm:$0x1] %v1785
          %v1787 = vld [vmem:[%s1772 + $0x14] sm:$0xf]
          %v1788 = vsel %vm1775, %v533, %v1787
          %1789 = vst [vmem:[%s1772 + $0x14] sm:$0xf] %v1788
          %1790 = vst.msk [vmem:[%s1772 + $0x18] sm:$0xf] %vm189, %v542
          %1791 = vst.msk [vmem:[%s1772 + $0x1c] sm:$0xf] %vm189, %v551
          %1792 = vst.msk [vmem:[%s1772 + $0x20] sm:$0xf] %vm189, %v560
          %v1793 = vld [vmem:[%s1772 + $0x24] sm:$0x1]
          %v1794 = vsel %vm1783, %v561, %v1793
          %1795 = vst [vmem:[%s1772 + $0x24] sm:$0x1] %v1794
          %v1796 = vld [vmem:[%s1772 + $0x28] sm:$0xf]
          %v1797 = vsel %vm1775, %v568, %v1796
          %1798 = vst [vmem:[%s1772 + $0x28] sm:$0xf] %v1797
          %1799 = vst.msk [vmem:[%s1772 + $0x2c] sm:$0xf] %vm189, %v577
          %1800 = vst.msk [vmem:[%s1772 + $0x30] sm:$0xf] %vm189, %v586
          %1801 = vst.msk [vmem:[%s1772 + $0x34] sm:$0xf] %vm189, %v595
          %v1802 = vld [vmem:[%s1772 + $0x38] sm:$0x1]
          %v1803 = vsel %vm1783, %v596, %v1802
          %1804 = vst [vmem:[%s1772 + $0x38] sm:$0x1] %v1803
          %v1805 = vld [vmem:[%s1772 + $0x3c] sm:$0xf]
          %v1806 = vsel %vm1775, %v603, %v1805
          %1807 = vst [vmem:[%s1772 + $0x3c] sm:$0xf] %v1806
          %1808 = vst.msk [vmem:[%s1772 + $0x40] sm:$0xf] %vm189, %v612
          %1809 = vst.msk [vmem:[%s1772 + $0x44] sm:$0xf] %vm189, %v621
          %1810 = vst.msk [vmem:[%s1772 + $0x48] sm:$0xf] %vm189, %v630
          %v1811 = vld [vmem:[%s1772 + $0x4c] sm:$0x1]
          %v1812 = vsel %vm1783, %v631, %v1811
          %1813 = vst [vmem:[%s1772 + $0x4c] sm:$0x1] %v1812
          %v1814 = vld [vmem:[%s1772 + $0x50] sm:$0xf]
          %v1815 = vsel %vm1775, %v638, %v1814
          %1816 = vst [vmem:[%s1772 + $0x50] sm:$0xf] %v1815
          %1817 = vst.msk [vmem:[%s1772 + $0x54] sm:$0xf] %vm189, %v647
          %1818 = vst.msk [vmem:[%s1772 + $0x58] sm:$0xf] %vm189, %v656
          %1819 = vst.msk [vmem:[%s1772 + $0x5c] sm:$0xf] %vm189, %v665
          %v1820 = vld [vmem:[%s1772 + $0x60] sm:$0x1]
          %v1821 = vsel %vm1783, %v666, %v1820
          %1822 = vst [vmem:[%s1772 + $0x60] sm:$0x1] %v1821
          %v1823 = vld [vmem:[%s1772 + $0x64] sm:$0xf]
          %v1824 = vsel %vm1775, %v673, %v1823
          %1825 = vst [vmem:[%s1772 + $0x64] sm:$0xf] %v1824
          %1826 = vst.msk [vmem:[%s1772 + $0x68] sm:$0xf] %vm189, %v682
          %1827 = vst.msk [vmem:[%s1772 + $0x6c] sm:$0xf] %vm189, %v691
          %1828 = vst.msk [vmem:[%s1772 + $0x70] sm:$0xf] %vm189, %v700
          %v1829 = vld [vmem:[%s1772 + $0x74] sm:$0x1]
          %v1830 = vsel %vm1783, %v701, %v1829
          %1831 = vst [vmem:[%s1772 + $0x74] sm:$0x1] %v1830
          %v1832 = vld [vmem:[%s1772 + $0x78] sm:$0xf]
          %v1833 = vsel %vm1775, %v708, %v1832
          %1834 = vst [vmem:[%s1772 + $0x78] sm:$0xf] %v1833
          %1835 = vst.msk [vmem:[%s1772 + $0x7c] sm:$0xf] %vm189, %v717
          %1836 = vst.msk [vmem:[%s1772 + $0x80] sm:$0xf] %vm189, %v726
          %1837 = vst.msk [vmem:[%s1772 + $0x84] sm:$0xf] %vm189, %v735
          %v1838 = vld [vmem:[%s1772 + $0x88] sm:$0x1]
          %v1839 = vsel %vm1783, %v736, %v1838
          %1840 = vst [vmem:[%s1772 + $0x88] sm:$0x1] %v1839
          %v1841 = vld [vmem:[%s1772 + $0x8c] sm:$0xf]
          %v1842 = vsel %vm1775, %v743, %v1841
          %1843 = vst [vmem:[%s1772 + $0x8c] sm:$0xf] %v1842
          %1844 = vst.msk [vmem:[%s1772 + $0x90] sm:$0xf] %vm189, %v752
          %1845 = vst.msk [vmem:[%s1772 + $0x94] sm:$0xf] %vm189, %v761
          %1846 = vst.msk [vmem:[%s1772 + $0x98] sm:$0xf] %vm189, %v770
          %v1847 = vld [vmem:[%s1772 + $0x9c] sm:$0x1]
          %v1848 = vsel %vm1783, %v771, %v1847
          %1849 = vst [vmem:[%s1772 + $0x9c] sm:$0x1] %v1848
          %v1850 = vld [vmem:[%s1772 + $0xa0] sm:$0xf]
          %v1851 = vsel %vm1775, %v778, %v1850
          %1852 = vst [vmem:[%s1772 + $0xa0] sm:$0xf] %v1851
          %1853 = vst.msk [vmem:[%s1772 + $0xa4] sm:$0xf] %vm189, %v787
          %1854 = vst.msk [vmem:[%s1772 + $0xa8] sm:$0xf] %vm189, %v796
          %1855 = vst.msk [vmem:[%s1772 + $0xac] sm:$0xf] %vm189, %v805
          %v1856 = vld [vmem:[%s1772 + $0xb0] sm:$0x1]
          %v1857 = vsel %vm1783, %v806, %v1856
          %1858 = vst [vmem:[%s1772 + $0xb0] sm:$0x1] %v1857
          %v1859 = vld [vmem:[%s1772 + $0xb4] sm:$0xf]
          %v1860 = vsel %vm1775, %v813, %v1859
          %1861 = vst [vmem:[%s1772 + $0xb4] sm:$0xf] %v1860
          %1862 = vst.msk [vmem:[%s1772 + $0xb8] sm:$0xf] %vm189, %v822
          %1863 = vst.msk [vmem:[%s1772 + $0xbc] sm:$0xf] %vm189, %v831
          %1864 = vst.msk [vmem:[%s1772 + $0xc0] sm:$0xf] %vm189, %v840
          %v1865 = vld [vmem:[%s1772 + $0xc4] sm:$0x1]
          %v1866 = vsel %vm1783, %v841, %v1865
          %1867 = vst [vmem:[%s1772 + $0xc4] sm:$0x1] %v1866
          %v1868 = vld [vmem:[%s1772 + $0xc8] sm:$0xf]
          %v1869 = vsel %vm1775, %v848, %v1868
          %1870 = vst [vmem:[%s1772 + $0xc8] sm:$0xf] %v1869
          %1871 = vst.msk [vmem:[%s1772 + $0xcc] sm:$0xf] %vm189, %v857
          %1872 = vst.msk [vmem:[%s1772 + $0xd0] sm:$0xf] %vm189, %v866
          %1873 = vst.msk [vmem:[%s1772 + $0xd4] sm:$0xf] %vm189, %v875
          %v1874 = vld [vmem:[%s1772 + $0xd8] sm:$0x1]
          %v1875 = vsel %vm1783, %v876, %v1874
          %1876 = vst [vmem:[%s1772 + $0xd8] sm:$0x1] %v1875
          %v1877 = vld [vmem:[%s1772 + $0xdc] sm:$0xf]
          %v1878 = vsel %vm1775, %v883, %v1877
          %1879 = vst [vmem:[%s1772 + $0xdc] sm:$0xf] %v1878
          %1880 = vst.msk [vmem:[%s1772 + $0xe0] sm:$0xf] %vm189, %v892
          %1881 = vst.msk [vmem:[%s1772 + $0xe4] sm:$0xf] %vm189, %v901
          %1882 = vst.msk [vmem:[%s1772 + $0xe8] sm:$0xf] %vm189, %v910
          %v1883 = vld [vmem:[%s1772 + $0xec] sm:$0x1]
          %v1884 = vsel %vm1783, %v911, %v1883
          %1885 = vst [vmem:[%s1772 + $0xec] sm:$0x1] %v1884
          %v1886 = vld [vmem:[%s1772 + $0xf0] sm:$0xf]
          %v1887 = vsel %vm1775, %v918, %v1886
          %1888 = vst [vmem:[%s1772 + $0xf0] sm:$0xf] %v1887
          %1889 = vst.msk [vmem:[%s1772 + $0xf4] sm:$0xf] %vm189, %v927
          %1890 = vst.msk [vmem:[%s1772 + $0xf8] sm:$0xf] %vm189, %v936
          %1891 = vst.msk [vmem:[%s1772 + $0xfc] sm:$0xf] %vm189, %v945
          %v1892 = vld [vmem:[%s1772 + $0x100] sm:$0x1]
          %v1893 = vsel %vm1783, %v946, %v1892
          %1894 = vst [vmem:[%s1772 + $0x100] sm:$0x1] %v1893
          %v1895 = vld [vmem:[%s1772 + $0x104] sm:$0xf]
          %v1896 = vsel %vm1775, %v953, %v1895
          %1897 = vst [vmem:[%s1772 + $0x104] sm:$0xf] %v1896
          %1898 = vst.msk [vmem:[%s1772 + $0x108] sm:$0xf] %vm189, %v962
          %1899 = vst.msk [vmem:[%s1772 + $0x10c] sm:$0xf] %vm189, %v971
          %1900 = vst.msk [vmem:[%s1772 + $0x110] sm:$0xf] %vm189, %v980
          %v1901 = vld [vmem:[%s1772 + $0x114] sm:$0x1]
          %v1902 = vsel %vm1783, %v981, %v1901
          %1903 = vst [vmem:[%s1772 + $0x114] sm:$0x1] %v1902
          %v1904 = vld [vmem:[%s1772 + $0x118] sm:$0xf]
          %v1905 = vsel %vm1775, %v988, %v1904
          %1906 = vst [vmem:[%s1772 + $0x118] sm:$0xf] %v1905
          %1907 = vst.msk [vmem:[%s1772 + $0x11c] sm:$0xf] %vm189, %v997
          %1908 = vst.msk [vmem:[%s1772 + $0x120] sm:$0xf] %vm189, %v1006
          %1909 = vst.msk [vmem:[%s1772 + $0x124] sm:$0xf] %vm189, %v1015
          %v1910 = vld [vmem:[%s1772 + $0x128] sm:$0x1]
          %v1911 = vsel %vm1783, %v1016, %v1910
          %1912 = vst [vmem:[%s1772 + $0x128] sm:$0x1] %v1911
          %v1913 = vld [vmem:[%s1772 + $0x12c] sm:$0xf]
          %v1914 = vsel %vm1775, %v1023, %v1913
          %1915 = vst [vmem:[%s1772 + $0x12c] sm:$0xf] %v1914
          %1916 = vst.msk [vmem:[%s1772 + $0x130] sm:$0xf] %vm189, %v1032
          %1917 = vst.msk [vmem:[%s1772 + $0x134] sm:$0xf] %vm189, %v1041
          %1918 = vst.msk [vmem:[%s1772 + $0x138] sm:$0xf] %vm189, %v1050
          %v1919 = vld [vmem:[%s1772 + $0x13c] sm:$0x1]
          %v1920 = vsel %vm1783, %v1051, %v1919
          %1921 = vst [vmem:[%s1772 + $0x13c] sm:$0x1] %v1920
          %v1922 = vld [vmem:[%s1772 + $0x140] sm:$0xf]
          %v1923 = vsel %vm1775, %v1058, %v1922
          %1924 = vst [vmem:[%s1772 + $0x140] sm:$0xf] %v1923
          %1925 = vst.msk [vmem:[%s1772 + $0x144] sm:$0xf] %vm189, %v1067
          %1926 = vst.msk [vmem:[%s1772 + $0x148] sm:$0xf] %vm189, %v1076
          %1927 = vst.msk [vmem:[%s1772 + $0x14c] sm:$0xf] %vm189, %v1085
          %v1928 = vld [vmem:[%s1772 + $0x150] sm:$0x1]
          %v1929 = vsel %vm1783, %v1086, %v1928
          %1930 = vst [vmem:[%s1772 + $0x150] sm:$0x1] %v1929
          %v1931 = vld [vmem:[%s1772 + $0x154] sm:$0xf]
          %v1932 = vsel %vm1775, %v1093, %v1931
          %1933 = vst [vmem:[%s1772 + $0x154] sm:$0xf] %v1932
          %1934 = vst.msk [vmem:[%s1772 + $0x158] sm:$0xf] %vm189, %v1102
          %1935 = vst.msk [vmem:[%s1772 + $0x15c] sm:$0xf] %vm189, %v1111
          %1936 = vst.msk [vmem:[%s1772 + $0x160] sm:$0xf] %vm189, %v1120
          %v1937 = vld [vmem:[%s1772 + $0x164] sm:$0x1]
          %v1938 = vsel %vm1783, %v1121, %v1937
          %1939 = vst [vmem:[%s1772 + $0x164] sm:$0x1] %v1938
          %v1940 = vld [vmem:[%s1772 + $0x168] sm:$0xf]
          %v1941 = vsel %vm1775, %v1128, %v1940
          %1942 = vst [vmem:[%s1772 + $0x168] sm:$0xf] %v1941
          %1943 = vst.msk [vmem:[%s1772 + $0x16c] sm:$0xf] %vm189, %v1137
          %1944 = vst.msk [vmem:[%s1772 + $0x170] sm:$0xf] %vm189, %v1146
          %1945 = vst.msk [vmem:[%s1772 + $0x174] sm:$0xf] %vm189, %v1155
          %v1946 = vld [vmem:[%s1772 + $0x178] sm:$0x1]
          %v1947 = vsel %vm1783, %v1156, %v1946
          %1948 = vst [vmem:[%s1772 + $0x178] sm:$0x1] %v1947
          %v1949 = vld [vmem:[%s1772 + $0x17c] sm:$0xf]
          %v1950 = vsel %vm1775, %v1163, %v1949
          %1951 = vst [vmem:[%s1772 + $0x17c] sm:$0xf] %v1950
          %1952 = vst.msk [vmem:[%s1772 + $0x180] sm:$0xf] %vm189, %v1172
          %1953 = vst.msk [vmem:[%s1772 + $0x184] sm:$0xf] %vm189, %v1181
          %1954 = vst.msk [vmem:[%s1772 + $0x188] sm:$0xf] %vm189, %v1190
          %v1955 = vld [vmem:[%s1772 + $0x18c] sm:$0x1]
          %v1956 = vsel %vm1783, %v1191, %v1955
          %1957 = vst [vmem:[%s1772 + $0x18c] sm:$0x1] %v1956
          %v1958 = vld [vmem:[%s1772 + $0x190] sm:$0xf]
          %v1959 = vsel %vm1775, %v1198, %v1958
          %1960 = vst [vmem:[%s1772 + $0x190] sm:$0xf] %v1959
          %1961 = vst.msk [vmem:[%s1772 + $0x194] sm:$0xf] %vm189, %v1207
          %1962 = vst.msk [vmem:[%s1772 + $0x198] sm:$0xf] %vm189, %v1216
          %1963 = vst.msk [vmem:[%s1772 + $0x19c] sm:$0xf] %vm189, %v1225
          %v1964 = vld [vmem:[%s1772 + $0x1a0] sm:$0x1]
          %v1965 = vsel %vm1783, %v1226, %v1964
          %1966 = vst [vmem:[%s1772 + $0x1a0] sm:$0x1] %v1965
          %v1967 = vld [vmem:[%s1772 + $0x1a4] sm:$0xf]
          %v1968 = vsel %vm1775, %v1233, %v1967
          %1969 = vst [vmem:[%s1772 + $0x1a4] sm:$0xf] %v1968
          %1970 = vst.msk [vmem:[%s1772 + $0x1a8] sm:$0xf] %vm189, %v1242
          %1971 = vst.msk [vmem:[%s1772 + $0x1ac] sm:$0xf] %vm189, %v1251
          %1972 = vst.msk [vmem:[%s1772 + $0x1b0] sm:$0xf] %vm189, %v1260
          %v1973 = vld [vmem:[%s1772 + $0x1b4] sm:$0x1]
          %v1974 = vsel %vm1783, %v1261, %v1973
          %1975 = vst [vmem:[%s1772 + $0x1b4] sm:$0x1] %v1974
          %v1976 = vld [vmem:[%s1772 + $0x1b8] sm:$0xf]
          %v1977 = vsel %vm1775, %v1268, %v1976
          %1978 = vst [vmem:[%s1772 + $0x1b8] sm:$0xf] %v1977
          %1979 = vst.msk [vmem:[%s1772 + $0x1bc] sm:$0xf] %vm189, %v1277
          %1980 = vst.msk [vmem:[%s1772 + $0x1c0] sm:$0xf] %vm189, %v1286
          %1981 = vst.msk [vmem:[%s1772 + $0x1c4] sm:$0xf] %vm189, %v1295
          %v1982 = vld [vmem:[%s1772 + $0x1c8] sm:$0x1]
          %v1983 = vsel %vm1783, %v1296, %v1982
          %1984 = vst [vmem:[%s1772 + $0x1c8] sm:$0x1] %v1983
          %v1985 = vld [vmem:[%s1772 + $0x1cc] sm:$0xf]
          %v1986 = vsel %vm1775, %v1303, %v1985
          %1987 = vst [vmem:[%s1772 + $0x1cc] sm:$0xf] %v1986
          %1988 = vst.msk [vmem:[%s1772 + $0x1d0] sm:$0xf] %vm189, %v1312
          %1989 = vst.msk [vmem:[%s1772 + $0x1d4] sm:$0xf] %vm189, %v1321
          %1990 = vst.msk [vmem:[%s1772 + $0x1d8] sm:$0xf] %vm189, %v1330
          %v1991 = vld [vmem:[%s1772 + $0x1dc] sm:$0x1]
          %v1992 = vsel %vm1783, %v1331, %v1991
          %1993 = vst [vmem:[%s1772 + $0x1dc] sm:$0x1] %v1992
          %v1994 = vld [vmem:[%s1772 + $0x1e0] sm:$0xf]
          %v1995 = vsel %vm1775, %v1338, %v1994
          %1996 = vst [vmem:[%s1772 + $0x1e0] sm:$0xf] %v1995
          %1997 = vst.msk [vmem:[%s1772 + $0x1e4] sm:$0xf] %vm189, %v1347
          %1998 = vst.msk [vmem:[%s1772 + $0x1e8] sm:$0xf] %vm189, %v1356
          %1999 = vst.msk [vmem:[%s1772 + $0x1ec] sm:$0xf] %vm189, %v1365
          %v2000 = vld [vmem:[%s1772 + $0x1f0] sm:$0x1]
          %v2001 = vsel %vm1783, %v1366, %v2000
          %2002 = vst [vmem:[%s1772 + $0x1f0] sm:$0x1] %v2001
          %v2003 = vld [vmem:[%s1772 + $0x1f4] sm:$0xf]
          %v2004 = vsel %vm1775, %v1373, %v2003
          %2005 = vst [vmem:[%s1772 + $0x1f4] sm:$0xf] %v2004
          %2006 = vst.msk [vmem:[%s1772 + $0x1f8] sm:$0xf] %vm189, %v1382
          %2007 = vst.msk [vmem:[%s1772 + $0x1fc] sm:$0xf] %vm189, %v1391
          %2008 = vst.msk [vmem:[%s1772 + $0x200] sm:$0xf] %vm189, %v1400
          %v2009 = vld [vmem:[%s1772 + $0x204] sm:$0x1]
          %v2010 = vsel %vm1783, %v1401, %v2009
          %2011 = vst [vmem:[%s1772 + $0x204] sm:$0x1] %v2010
          %v2012 = vld [vmem:[%s1772 + $0x208] sm:$0xf]
          %v2013 = vsel %vm1775, %v1408, %v2012
          %2014 = vst [vmem:[%s1772 + $0x208] sm:$0xf] %v2013
          %2015 = vst.msk [vmem:[%s1772 + $0x20c] sm:$0xf] %vm189, %v1417
          %2016 = vst.msk [vmem:[%s1772 + $0x210] sm:$0xf] %vm189, %v1426
          %2017 = vst.msk [vmem:[%s1772 + $0x214] sm:$0xf] %vm189, %v1435
          %v2018 = vld [vmem:[%s1772 + $0x218] sm:$0x1]
          %v2019 = vsel %vm1783, %v1436, %v2018
          %2020 = vst [vmem:[%s1772 + $0x218] sm:$0x1] %v2019
          %v2021 = vld [vmem:[%s1772 + $0x21c] sm:$0xf]
          %v2022 = vsel %vm1775, %v1443, %v2021
          %2023 = vst [vmem:[%s1772 + $0x21c] sm:$0xf] %v2022
          %2024 = vst.msk [vmem:[%s1772 + $0x220] sm:$0xf] %vm189, %v1452
          %2025 = vst.msk [vmem:[%s1772 + $0x224] sm:$0xf] %vm189, %v1461
          %2026 = vst.msk [vmem:[%s1772 + $0x228] sm:$0xf] %vm189, %v1470
          %v2027 = vld [vmem:[%s1772 + $0x22c] sm:$0x1]
          %v2028 = vsel %vm1783, %v1471, %v2027
          %2029 = vst [vmem:[%s1772 + $0x22c] sm:$0x1] %v2028
          %v2030 = vld [vmem:[%s1772 + $0x230] sm:$0xf]
          %v2031 = vsel %vm1775, %v1478, %v2030
          %2032 = vst [vmem:[%s1772 + $0x230] sm:$0xf] %v2031
          %2033 = vst.msk [vmem:[%s1772 + $0x234] sm:$0xf] %vm189, %v1487
          %2034 = vst.msk [vmem:[%s1772 + $0x238] sm:$0xf] %vm189, %v1496
          %2035 = vst.msk [vmem:[%s1772 + $0x23c] sm:$0xf] %vm189, %v1505
          %v2036 = vld [vmem:[%s1772 + $0x240] sm:$0x1]
          %v2037 = vsel %vm1783, %v1506, %v2036
          %2038 = vst [vmem:[%s1772 + $0x240] sm:$0x1] %v2037
          %v2039 = vld [vmem:[%s1772 + $0x244] sm:$0xf]
          %v2040 = vsel %vm1775, %v1513, %v2039
          %2041 = vst [vmem:[%s1772 + $0x244] sm:$0xf] %v2040
          %2042 = vst.msk [vmem:[%s1772 + $0x248] sm:$0xf] %vm189, %v1522
          %2043 = vst.msk [vmem:[%s1772 + $0x24c] sm:$0xf] %vm189, %v1531
          %2044 = vst.msk [vmem:[%s1772 + $0x250] sm:$0xf] %vm189, %v1540
          %v2045 = vld [vmem:[%s1772 + $0x254] sm:$0x1]
          %v2046 = vsel %vm1783, %v1541, %v2045
          %2047 = vst [vmem:[%s1772 + $0x254] sm:$0x1] %v2046
          %v2048 = vld [vmem:[%s1772 + $0x258] sm:$0xf]
          %v2049 = vsel %vm1775, %v1548, %v2048
          %2050 = vst [vmem:[%s1772 + $0x258] sm:$0xf] %v2049
          %2051 = vst.msk [vmem:[%s1772 + $0x25c] sm:$0xf] %vm189, %v1557
          %2052 = vst.msk [vmem:[%s1772 + $0x260] sm:$0xf] %vm189, %v1566
          %2053 = vst.msk [vmem:[%s1772 + $0x264] sm:$0xf] %vm189, %v1575
          %v2054 = vld [vmem:[%s1772 + $0x268] sm:$0x1]
          %v2055 = vsel %vm1783, %v1576, %v2054
          %2056 = vst [vmem:[%s1772 + $0x268] sm:$0x1] %v2055
          %v2057 = vld [vmem:[%s1772 + $0x26c] sm:$0xf]
          %v2058 = vsel %vm1775, %v1583, %v2057
          %2059 = vst [vmem:[%s1772 + $0x26c] sm:$0xf] %v2058
          %2060 = vst.msk [vmem:[%s1772 + $0x270] sm:$0xf] %vm189, %v1592
          %2061 = vst.msk [vmem:[%s1772 + $0x274] sm:$0xf] %vm189, %v1601
          %2062 = vst.msk [vmem:[%s1772 + $0x278] sm:$0xf] %vm189, %v1610
          %v2063 = vld [vmem:[%s1772 + $0x27c] sm:$0x1]
          %v2064 = vsel %vm1783, %v1611, %v2063
          %2065 = vst [vmem:[%s1772 + $0x27c] sm:$0x1] %v2064
        $region36: #{tpu_custom_call.1} parent=31 // pred_fallthru
          _
        %s2066 = smul.u32 %s22, 8
        %s2067 = smul.u32 %s2066, 5
        %s2068 = smul.addr %s2067, 4
        %s2069 = scalar_lea.vmem [#allocation2], %s2068
        %v2070 = vld [vmem:[%s2069] sm:$0xf]
        %v2071 = vld [vmem:[%s2069 + $0x4] sm:$0xf]
        %v2072 = vld [vmem:[%s2069 + $0x8] sm:$0xf]
        %v2073 = vld [vmem:[%s2069 + $0xc] sm:$0xf]
        %v2074 = vld [vmem:[%s2069 + $0x14] sm:$0xf]
        %v2075 = vld [vmem:[%s2069 + $0x18] sm:$0xf]
        %v2076 = vld [vmem:[%s2069 + $0x1c] sm:$0xf]
        %v2077 = vld [vmem:[%s2069 + $0x20] sm:$0xf]
        %v2078 = vld [vmem:[%s2069 + $0x28] sm:$0xf]
        %v2079 = vld [vmem:[%s2069 + $0x2c] sm:$0xf]
        %v2080 = vld [vmem:[%s2069 + $0x30] sm:$0xf]
        %v2081 = vld [vmem:[%s2069 + $0x34] sm:$0xf]
        %v2082 = vld [vmem:[%s2069 + $0x3c] sm:$0xf]
        %v2083 = vld [vmem:[%s2069 + $0x40] sm:$0xf]
        %v2084 = vld [vmem:[%s2069 + $0x44] sm:$0xf]
        %v2085 = vld [vmem:[%s2069 + $0x48] sm:$0xf]
        %v2086 = vld [vmem:[%s2069 + $0x50] sm:$0xf]
        %v2087 = vld [vmem:[%s2069 + $0x54] sm:$0xf]
        %v2088 = vld [vmem:[%s2069 + $0x58] sm:$0xf]
        %v2089 = vld [vmem:[%s2069 + $0x5c] sm:$0xf]
        %v2090 = vld [vmem:[%s2069 + $0x64] sm:$0xf]
        %v2091 = vld [vmem:[%s2069 + $0x68] sm:$0xf]
        %v2092 = vld [vmem:[%s2069 + $0x6c] sm:$0xf]
        %v2093 = vld [vmem:[%s2069 + $0x70] sm:$0xf]
        %v2094 = vld [vmem:[%s2069 + $0x78] sm:$0xf]
        %v2095 = vld [vmem:[%s2069 + $0x7c] sm:$0xf]
        %v2096 = vld [vmem:[%s2069 + $0x80] sm:$0xf]
        %v2097 = vld [vmem:[%s2069 + $0x84] sm:$0xf]
        %v2098 = vld [vmem:[%s2069 + $0x8c] sm:$0xf]
        %v2099 = vld [vmem:[%s2069 + $0x90] sm:$0xf]
        %v2100 = vld [vmem:[%s2069 + $0x94] sm:$0xf]
        %v2101 = vld [vmem:[%s2069 + $0x98] sm:$0xf]
        %v2102 = vld [vmem:[%s1] sm:$0x3]
        %v2103 = vld [vmem:[%s2069 + $0x10] sm:$0x1]
        %v2104 = vld [vmem:[%s2069 + $0x24] sm:$0x1]
        %v2105 = vld [vmem:[%s2069 + $0x38] sm:$0x1]
        %v2106 = vld [vmem:[%s2069 + $0x4c] sm:$0x1]
        %v2107 = vld [vmem:[%s2069 + $0x60] sm:$0x1]
        %v2108 = vld [vmem:[%s2069 + $0x74] sm:$0x1]
        %v2109 = vld [vmem:[%s2069 + $0x88] sm:$0x1]
        %v2110 = vld [vmem:[%s2069 + $0x9c] sm:$0x1]
        %vm2111 = vsmask.f32 3328
        %vm2112 = vsmask.f32 7440
        %vm2113 = vmor %vm2111, %vm2112
        %v2115 = vshrl.u32 %v2070, 16
        %v2117 = vrot.slane %v2115, 4
        %v2118 = vshll.u32 %v2070, 16
        %v2120 = vrot.slane %v2118, 5
        %v2121 = vor.u32 %v2117, %v2120
        %v2122 = vrot.slane %v2121, 4
        %v2124 = vshll.u32 %v2071, 16
        %v2126 = vrot.slane %v2124, 5
        %v2127 = vsel %vm2113, %v2122, %v2126
        %v2128 = vshrl.u32 %v2071, 16
        %v2130 = vrot.slane %v2128, 4
        %v2131 = vor.u32 %v2130, %v2126
        %v2132 = vrot.slane %v2131, 4
        %v2134 = vshll.u32 %v2072, 16
        %v2136 = vrot.slane %v2134, 5
        %v2137 = vsel %vm2113, %v2132, %v2136
        %v2138 = vshrl.u32 %v2072, 16
        %v2140 = vrot.slane %v2138, 4
        %v2141 = vor.u32 %v2140, %v2136
        %v2142 = vrot.slane %v2141, 4
        %v2144 = vshll.u32 %v2073, 16
        %v2146 = vrot.slane %v2144, 5
        %v2147 = vsel %vm2113, %v2142, %v2146
        %v2148 = vshrl.u32 %v2073, 16
        %v2150 = vrot.slane %v2148, 4
        %v2151 = vor.u32 %v2150, %v2146
        %v2152 = vrot.slane %v2151, 4
        %v2154 = vshll.u32 %v2103, 16
        %v2156 = vrot.slane %v2154, 5
        %v2157 = vsel %vm2113, %v2152, %v2156
        %v2159 = vshrl.u32 %v2074, 16
        %v2161 = vrot.slane %v2159, 4
        %v2162 = vshll.u32 %v2074, 16
        %v2164 = vrot.slane %v2162, 5
        %v2165 = vor.u32 %v2161, %v2164
        %v2166 = vrot.slane %v2165, 4
        %v2168 = vshll.u32 %v2075, 16
        %v2170 = vrot.slane %v2168, 5
        %v2171 = vsel %vm2113, %v2166, %v2170
        %v2172 = vshrl.u32 %v2075, 16
        %v2174 = vrot.slane %v2172, 4
        %v2175 = vor.u32 %v2174, %v2170
        %v2176 = vrot.slane %v2175, 4
        %v2178 = vshll.u32 %v2076, 16
        %v2180 = vrot.slane %v2178, 5
        %v2181 = vsel %vm2113, %v2176, %v2180
        %v2182 = vshrl.u32 %v2076, 16
        %v2184 = vrot.slane %v2182, 4
        %v2185 = vor.u32 %v2184, %v2180
        %v2186 = vrot.slane %v2185, 4
        %v2188 = vshll.u32 %v2077, 16
        %v2190 = vrot.slane %v2188, 5
        %v2191 = vsel %vm2113, %v2186, %v2190
        %v2192 = vshrl.u32 %v2077, 16
        %v2194 = vrot.slane %v2192, 4
        %v2195 = vor.u32 %v2194, %v2190
        %v2196 = vrot.slane %v2195, 4
        %v2198 = vshll.u32 %v2104, 16
        %v2200 = vrot.slane %v2198, 5
        %v2201 = vsel %vm2113, %v2196, %v2200
        %v2203 = vshrl.u32 %v2078, 16
        %v2205 = vrot.slane %v2203, 4
        %v2206 = vshll.u32 %v2078, 16
        %v2208 = vrot.slane %v2206, 5
        %v2209 = vor.u32 %v2205, %v2208
        %v2210 = vrot.slane %v2209, 4
        %v2212 = vshll.u32 %v2079, 16
        %v2214 = vrot.slane %v2212, 5
        %v2215 = vsel %vm2113, %v2210, %v2214
        %v2216 = vshrl.u32 %v2079, 16
        %v2218 = vrot.slane %v2216, 4
        %v2219 = vor.u32 %v2218, %v2214
        %v2220 = vrot.slane %v2219, 4
        %v2222 = vshll.u32 %v2080, 16
        %v2224 = vrot.slane %v2222, 5
        %v2225 = vsel %vm2113, %v2220, %v2224
        %v2226 = vshrl.u32 %v2080, 16
        %v2228 = vrot.slane %v2226, 4
        %v2229 = vor.u32 %v2228, %v2224
        %v2230 = vrot.slane %v2229, 4
        %v2232 = vshll.u32 %v2081, 16
        %v2234 = vrot.slane %v2232, 5
        %v2235 = vsel %vm2113, %v2230, %v2234
        %v2236 = vshrl.u32 %v2081, 16
        %v2238 = vrot.slane %v2236, 4
        %v2239 = vor.u32 %v2238, %v2234
        %v2240 = vrot.slane %v2239, 4
        %v2242 = vshll.u32 %v2105, 16
        %v2244 = vrot.slane %v2242, 5
        %v2245 = vsel %vm2113, %v2240, %v2244
        %v2247 = vshrl.u32 %v2082, 16
        %v2249 = vrot.slane %v2247, 4
        %v2250 = vshll.u32 %v2082, 16
        %v2252 = vrot.slane %v2250, 5
        %v2253 = vor.u32 %v2249, %v2252
        %v2254 = vrot.slane %v2253, 4
        %v2256 = vshll.u32 %v2083, 16
        %v2258 = vrot.slane %v2256, 5
        %v2259 = vsel %vm2113, %v2254, %v2258
        %v2260 = vshrl.u32 %v2083, 16
        %v2262 = vrot.slane %v2260, 4
        %v2263 = vor.u32 %v2262, %v2258
        %v2264 = vrot.slane %v2263, 4
        %v2266 = vshll.u32 %v2084, 16
        %v2268 = vrot.slane %v2266, 5
        %v2269 = vsel %vm2113, %v2264, %v2268
        %v2270 = vshrl.u32 %v2084, 16
        %v2272 = vrot.slane %v2270, 4
        %v2273 = vor.u32 %v2272, %v2268
        %v2274 = vrot.slane %v2273, 4
        %v2276 = vshll.u32 %v2085, 16
        %v2278 = vrot.slane %v2276, 5
        %v2279 = vsel %vm2113, %v2274, %v2278
        %v2280 = vshrl.u32 %v2085, 16
        %v2282 = vrot.slane %v2280, 4
        %v2283 = vor.u32 %v2282, %v2278
        %v2284 = vrot.slane %v2283, 4
        %v2286 = vshll.u32 %v2106, 16
        %v2288 = vrot.slane %v2286, 5
        %v2289 = vsel %vm2113, %v2284, %v2288
        %v2291 = vshrl.u32 %v2086, 16
        %v2293 = vrot.slane %v2291, 4
        %v2294 = vshll.u32 %v2086, 16
        %v2296 = vrot.slane %v2294, 5
        %v2297 = vor.u32 %v2293, %v2296
        %v2298 = vrot.slane %v2297, 4
        %v2300 = vshll.u32 %v2087, 16
        %v2302 = vrot.slane %v2300, 5
        %v2303 = vsel %vm2113, %v2298, %v2302
        %v2304 = vshrl.u32 %v2087, 16
        %v2306 = vrot.slane %v2304, 4
        %v2307 = vor.u32 %v2306, %v2302
        %v2308 = vrot.slane %v2307, 4
        %v2310 = vshll.u32 %v2088, 16
        %v2312 = vrot.slane %v2310, 5
        %v2313 = vsel %vm2113, %v2308, %v2312
        %v2314 = vshrl.u32 %v2088, 16
        %v2316 = vrot.slane %v2314, 4
        %v2317 = vor.u32 %v2316, %v2312
        %v2318 = vrot.slane %v2317, 4
        %v2320 = vshll.u32 %v2089, 16
        %v2322 = vrot.slane %v2320, 5
        %v2323 = vsel %vm2113, %v2318, %v2322
        %v2324 = vshrl.u32 %v2089, 16
        %v2326 = vrot.slane %v2324, 4
        %v2327 = vor.u32 %v2326, %v2322
        %v2328 = vrot.slane %v2327, 4
        %v2330 = vshll.u32 %v2107, 16
        %v2332 = vrot.slane %v2330, 5
        %v2333 = vsel %vm2113, %v2328, %v2332
        %v2335 = vshrl.u32 %v2090, 16
        %v2337 = vrot.slane %v2335, 4
        %v2338 = vshll.u32 %v2090, 16
        %v2340 = vrot.slane %v2338, 5
        %v2341 = vor.u32 %v2337, %v2340
        %v2342 = vrot.slane %v2341, 4
        %v2344 = vshll.u32 %v2091, 16
        %v2346 = vrot.slane %v2344, 5
        %v2347 = vsel %vm2113, %v2342, %v2346
        %v2348 = vshrl.u32 %v2091, 16
        %v2350 = vrot.slane %v2348, 4
        %v2351 = vor.u32 %v2350, %v2346
        %v2352 = vrot.slane %v2351, 4
        %v2354 = vshll.u32 %v2092, 16
        %v2356 = vrot.slane %v2354, 5
        %v2357 = vsel %vm2113, %v2352, %v2356
        %v2358 = vshrl.u32 %v2092, 16
        %v2360 = vrot.slane %v2358, 4
        %v2361 = vor.u32 %v2360, %v2356
        %v2362 = vrot.slane %v2361, 4
        %v2364 = vshll.u32 %v2093, 16
        %v2366 = vrot.slane %v2364, 5
        %v2367 = vsel %vm2113, %v2362, %v2366
        %v2368 = vshrl.u32 %v2093, 16
        %v2370 = vrot.slane %v2368, 4
        %v2371 = vor.u32 %v2370, %v2366
        %v2372 = vrot.slane %v2371, 4
        %v2374 = vshll.u32 %v2108, 16
        %v2376 = vrot.slane %v2374, 5
        %v2377 = vsel %vm2113, %v2372, %v2376
        %v2379 = vshrl.u32 %v2094, 16
        %v2381 = vrot.slane %v2379, 4
        %v2382 = vshll.u32 %v2094, 16
        %v2384 = vrot.slane %v2382, 5
        %v2385 = vor.u32 %v2381, %v2384
        %v2386 = vrot.slane %v2385, 4
        %v2388 = vshll.u32 %v2095, 16
        %v2390 = vrot.slane %v2388, 5
        %v2391 = vsel %vm2113, %v2386, %v2390
        %v2392 = vshrl.u32 %v2095, 16
        %v2394 = vrot.slane %v2392, 4
        %v2395 = vor.u32 %v2394, %v2390
        %v2396 = vrot.slane %v2395, 4
        %v2398 = vshll.u32 %v2096, 16
        %v2400 = vrot.slane %v2398, 5
        %v2401 = vsel %vm2113, %v2396, %v2400
        %v2402 = vshrl.u32 %v2096, 16
        %v2404 = vrot.slane %v2402, 4
        %v2405 = vor.u32 %v2404, %v2400
        %v2406 = vrot.slane %v2405, 4
        %v2408 = vshll.u32 %v2097, 16
        %v2410 = vrot.slane %v2408, 5
        %v2411 = vsel %vm2113, %v2406, %v2410
        %v2412 = vshrl.u32 %v2097, 16
        %v2414 = vrot.slane %v2412, 4
        %v2415 = vor.u32 %v2414, %v2410
        %v2416 = vrot.slane %v2415, 4
        %v2418 = vshll.u32 %v2109, 16
        %v2420 = vrot.slane %v2418, 5
        %v2421 = vsel %vm2113, %v2416, %v2420
        %v2423 = vshrl.u32 %v2098, 16
        %v2425 = vrot.slane %v2423, 4
        %v2426 = vshll.u32 %v2098, 16
        %v2428 = vrot.slane %v2426, 5
        %v2429 = vor.u32 %v2425, %v2428
        %v2430 = vrot.slane %v2429, 4
        %v2432 = vshll.u32 %v2099, 16
        %v2434 = vrot.slane %v2432, 5
        %v2435 = vsel %vm2113, %v2430, %v2434
        %v2436 = vshrl.u32 %v2099, 16
        %v2438 = vrot.slane %v2436, 4
        %v2439 = vor.u32 %v2438, %v2434
        %v2440 = vrot.slane %v2439, 4
        %v2442 = vshll.u32 %v2100, 16
        %v2444 = vrot.slane %v2442, 5
        %v2445 = vsel %vm2113, %v2440, %v2444
        %v2446 = vshrl.u32 %v2100, 16
        %v2448 = vrot.slane %v2446, 4
        %v2449 = vor.u32 %v2448, %v2444
        %v2450 = vrot.slane %v2449, 4
        %v2452 = vshll.u32 %v2101, 16
        %v2454 = vrot.slane %v2452, 5
        %v2455 = vsel %vm2113, %v2450, %v2454
        %v2456 = vshrl.u32 %v2101, 16
        %v2458 = vrot.slane %v2456, 4
        %v2459 = vor.u32 %v2458, %v2454
        %v2460 = vrot.slane %v2459, 4
        %v2462 = vshll.u32 %v2110, 16
        %v2464 = vrot.slane %v2462, 5
        %v2465 = vsel %vm2113, %v2460, %v2464
        %s2466 = scalar_lea.vmem %s1, 2
        %v2467 = vld [vmem:[%s2466] sm:$0x3]
        %v2468 = vunpack.c.l.b16 %v2127
        %v2469 = vunpack.c.l.b16 %v2137
        %v2470 = vunpack.c.l.b16 %v2147
        %v2471 = vunpack.c.l.b16 %v2157
        %v2472 = vunpack.c.l.b16 %v2171
        %v2473 = vunpack.c.l.b16 %v2181
        %v2474 = vunpack.c.l.b16 %v2191
        %v2475 = vunpack.c.l.b16 %v2201
        %v2476 = vunpack.c.l.b16 %v2215
        %v2477 = vunpack.c.l.b16 %v2225
        %v2478 = vunpack.c.l.b16 %v2235
        %v2479 = vunpack.c.l.b16 %v2245
        %v2480 = vunpack.c.l.b16 %v2259
        %v2481 = vunpack.c.l.b16 %v2269
        %v2482 = vunpack.c.l.b16 %v2279
        %v2483 = vunpack.c.l.b16 %v2289
        %v2484 = vunpack.c.l.b16 %v2303
        %v2485 = vunpack.c.l.b16 %v2313
        %v2486 = vunpack.c.l.b16 %v2323
        %v2487 = vunpack.c.l.b16 %v2333
        %v2488 = vunpack.c.l.b16 %v2347
        %v2489 = vunpack.c.l.b16 %v2357
        %v2490 = vunpack.c.l.b16 %v2367
        %v2491 = vunpack.c.l.b16 %v2377
        %v2492 = vunpack.c.l.b16 %v2391
        %v2493 = vunpack.c.l.b16 %v2401
        %v2494 = vunpack.c.l.b16 %v2411
        %v2495 = vunpack.c.l.b16 %v2421
        %v2496 = vunpack.c.l.b16 %v2435
        %v2497 = vunpack.c.l.b16 %v2445
        %v2498 = vunpack.c.l.b16 %v2455
        %v2499 = vunpack.c.l.b16 %v2465
        %v2500 = vpack.c.b16 %v2469, %v2468
        %v2501 = vpack.c.b16 %v2471, %v2470
        %v2502 = vpack.c.b16 %v2473, %v2472
        %v2503 = vpack.c.b16 %v2475, %v2474
        %v2504 = vpack.c.b16 %v2477, %v2476
        %v2505 = vpack.c.b16 %v2479, %v2478
        %v2506 = vpack.c.b16 %v2481, %v2480
        %v2507 = vpack.c.b16 %v2483, %v2482
        %v2508 = vpack.c.b16 %v2485, %v2484
        %v2509 = vpack.c.b16 %v2487, %v2486
        %v2510 = vpack.c.b16 %v2489, %v2488
        %v2511 = vpack.c.b16 %v2491, %v2490
        %v2512 = vpack.c.b16 %v2493, %v2492
        %v2513 = vpack.c.b16 %v2495, %v2494
        %v2514 = vpack.c.b16 %v2497, %v2496
        %v2515 = vpack.c.b16 %v2499, %v2498
        %vm2516 = vcmask 23552
        %v2518 = vsel %vm2516, %v2500, 0
        %v2521 = vsel %vm2516, %v2501, 0
        %v2524 = vsel %vm2516, %v2502, 0
        %v2527 = vsel %vm2516, %v2503, 0
        %v2530 = vsel %vm2516, %v2504, 0
        %v2533 = vsel %vm2516, %v2505, 0
        %v2536 = vsel %vm2516, %v2506, 0
        %v2539 = vsel %vm2516, %v2507, 0
        %v2542 = vsel %vm2516, %v2508, 0
        %v2545 = vsel %vm2516, %v2509, 0
        %v2548 = vsel %vm2516, %v2510, 0
        %v2551 = vsel %vm2516, %v2511, 0
        %v2554 = vsel %vm2516, %v2512, 0
        %v2557 = vsel %vm2516, %v2513, 0
        %v2560 = vsel %vm2516, %v2514, 0
        %v2563 = vsel %vm2516, %v2515, 0
        %vm2565 = vcmask 1040384
        %vm2566 = vcmask 1041408
        %v2567 = vsel %vm2565, 4294967295, 65535
        %v2568 = vsel %vm2566, %v2567, 0
        %v2570 = vand.u32 %v2467, %v2568
        %2572 = vmatprep.subr.bf16.mxu0 0
        %2573 = vmatpush1.bf16.msra.mxu0 0
        %2574 = vmatprep.subr.bf16.mxu0 0
        %2575 = vmatpush1.bf16.msra.mxu0 0
        %2576 = vmatprep.subr.bf16.mxu0 0
        %2577 = vmatpush1.bf16.msra.mxu0 0
        %2578 = vmatprep.subr.bf16.mxu0 0
        %2579 = vmatpush1.bf16.msra.mxu0 0
        %2580 = vmatprep.subr.bf16.mxu0 0
        %2581 = vmatpush1.bf16.msra.mxu0 0
        %2582 = vmatprep.subr.bf16.mxu0 0
        %2583 = vmatpush1.bf16.msra.mxu0 0
        %2584 = vmatprep.subr.bf16.mxu0 0
        %2585 = vmatpush1.bf16.msra.mxu0 0
        %2586 = vmatprep.subr.bf16.mxu0 0
        %2587 = vmatpush1.bf16.msra.mxu0 %v2570
        %2588 = vmatprep.subr.bf16.mxu0 0
        %2589 = vmatpush2.bf16.msra.mxu0 0
        %2590 = vmatprep.subr.bf16.mxu0 0
        %2591 = vmatpush2.bf16.msra.mxu0 0
        %2592 = vmatprep.subr.bf16.mxu0 0
        %2593 = vmatpush2.bf16.msra.mxu0 0
        %2594 = vmatprep.subr.bf16.mxu0 0
        %2595 = vmatpush2.bf16.msra.mxu0 0
        %2596 = vmatprep.subr.bf16.mxu0 0
        %2597 = vmatpush2.bf16.msra.mxu0 0
        %2598 = vmatprep.subr.bf16.mxu0 0
        %2599 = vmatpush2.bf16.msra.mxu0 0
        %2600 = vmatprep.subr.bf16.mxu0 0
        %2601 = vmatpush2.bf16.msra.mxu0 0
        %2602 = vmatprep.subr.bf16.mxu0 0
        %2603 = vmatpush2.bf16.msra.mxu0 0
        %2604 = vmatprep.mubr.bf16.mxu0 0
        %2605 = vmatmul.mubr.bf16.gmra.mxu0 %v2518
        %v2606 = vpop.f32.mrf.mxu0
        %v2607 = vadd.f32 0.0, %v2606
        %v2608 = vpop.f32.mrf.mxu0
        %v2609 = vpop.f32.mrf.mxu0
        %v2610 = vadd.f32 0.0, %v2609
        %v2611 = vpop.f32.mrf.mxu0
        %2612 = vmatprep.mubr.bf16.mxu0 0
        %2613 = vmatmul.mubr.bf16.gmra.mxu0 %v2521
        %v2614 = vpop.f32.mrf.mxu0
        %v2615 = vadd.f32 0.0, %v2614
        %v2616 = vpop.f32.mrf.mxu0
        %v2617 = vpop.f32.mrf.mxu0
        %v2618 = vadd.f32 0.0, %v2617
        %v2619 = vpop.f32.mrf.mxu0
        %2620 = vmatprep.mubr.bf16.mxu0 0
        %2621 = vmatmul.mubr.bf16.gmra.mxu0 %v2524
        %v2622 = vpop.f32.mrf.mxu0
        %v2623 = vadd.f32 0.0, %v2622
        %v2624 = vpop.f32.mrf.mxu0
        %v2625 = vpop.f32.mrf.mxu0
        %v2626 = vadd.f32 0.0, %v2625
        %v2627 = vpop.f32.mrf.mxu0
        %2628 = vmatprep.mubr.bf16.mxu0 0
        %2629 = vmatmul.mubr.bf16.gmra.mxu0 %v2527
        %v2630 = vpop.f32.mrf.mxu0
        %v2631 = vadd.f32 0.0, %v2630
        %v2632 = vpop.f32.mrf.mxu0
        %v2633 = vpop.f32.mrf.mxu0
        %v2634 = vadd.f32 0.0, %v2633
        %v2635 = vpop.f32.mrf.mxu0
        %2636 = vmatprep.mubr.bf16.mxu0 0
        %2637 = vmatmul.mubr.bf16.gmra.mxu0 %v2530
        %v2638 = vpop.f32.mrf.mxu0
        %v2639 = vadd.f32 0.0, %v2638
        %v2640 = vpop.f32.mrf.mxu0
        %v2641 = vpop.f32.mrf.mxu0
        %v2642 = vadd.f32 0.0, %v2641
        %v2643 = vpop.f32.mrf.mxu0
        %2644 = vmatprep.mubr.bf16.mxu0 0
        %2645 = vmatmul.mubr.bf16.gmra.mxu0 %v2533
        %v2646 = vpop.f32.mrf.mxu0
        %v2647 = vadd.f32 0.0, %v2646
        %v2648 = vpop.f32.mrf.mxu0
        %v2649 = vpop.f32.mrf.mxu0
        %v2650 = vadd.f32 0.0, %v2649
        %v2651 = vpop.f32.mrf.mxu0
        %2652 = vmatprep.mubr.bf16.mxu0 0
        %2653 = vmatmul.mubr.bf16.gmra.mxu0 %v2536
        %v2654 = vpop.f32.mrf.mxu0
        %v2655 = vadd.f32 0.0, %v2654
        %v2656 = vpop.f32.mrf.mxu0
        %v2657 = vpop.f32.mrf.mxu0
        %v2658 = vadd.f32 0.0, %v2657
        %v2659 = vpop.f32.mrf.mxu0
        %2660 = vmatprep.mubr.bf16.mxu0 0
        %2661 = vmatmul.mubr.bf16.gmra.mxu0 %v2539
        %v2662 = vpop.f32.mrf.mxu0
        %v2663 = vadd.f32 0.0, %v2662
        %v2664 = vpop.f32.mrf.mxu0
        %v2665 = vpop.f32.mrf.mxu0
        %v2666 = vadd.f32 0.0, %v2665
        %v2667 = vpop.f32.mrf.mxu0
        %2668 = vmatprep.mubr.bf16.mxu0 0
        %2669 = vmatmul.mubr.bf16.gmra.mxu0 %v2542
        %v2670 = vpop.f32.mrf.mxu0
        %v2671 = vadd.f32 0.0, %v2670
        %v2672 = vpop.f32.mrf.mxu0
        %v2673 = vpop.f32.mrf.mxu0
        %v2674 = vadd.f32 0.0, %v2673
        %v2675 = vpop.f32.mrf.mxu0
        %2676 = vmatprep.mubr.bf16.mxu0 0
        %2677 = vmatmul.mubr.bf16.gmra.mxu0 %v2545
        %v2678 = vpop.f32.mrf.mxu0
        %v2679 = vadd.f32 0.0, %v2678
        %v2680 = vpop.f32.mrf.mxu0
        %v2681 = vpop.f32.mrf.mxu0
        %v2682 = vadd.f32 0.0, %v2681
        %v2683 = vpop.f32.mrf.mxu0
        %2684 = vmatprep.mubr.bf16.mxu0 0
        %2685 = vmatmul.mubr.bf16.gmra.mxu0 %v2548
        %v2686 = vpop.f32.mrf.mxu0
        %v2687 = vadd.f32 0.0, %v2686
        %v2688 = vpop.f32.mrf.mxu0
        %v2689 = vpop.f32.mrf.mxu0
        %v2690 = vadd.f32 0.0, %v2689
        %v2691 = vpop.f32.mrf.mxu0
        %2692 = vmatprep.mubr.bf16.mxu0 0
        %2693 = vmatmul.mubr.bf16.gmra.mxu0 %v2551
        %v2694 = vpop.f32.mrf.mxu0
        %v2695 = vadd.f32 0.0, %v2694
        %v2696 = vpop.f32.mrf.mxu0
        %v2697 = vpop.f32.mrf.mxu0
        %v2698 = vadd.f32 0.0, %v2697
        %v2699 = vpop.f32.mrf.mxu0
        %2700 = vmatprep.mubr.bf16.mxu0 0
        %2701 = vmatmul.mubr.bf16.gmra.mxu0 %v2554
        %v2702 = vpop.f32.mrf.mxu0
        %v2703 = vadd.f32 0.0, %v2702
        %v2704 = vpop.f32.mrf.mxu0
        %v2705 = vpop.f32.mrf.mxu0
        %v2706 = vadd.f32 0.0, %v2705
        %v2707 = vpop.f32.mrf.mxu0
        %2708 = vmatprep.mubr.bf16.mxu0 0
        %2709 = vmatmul.mubr.bf16.gmra.mxu0 %v2557
        %v2710 = vpop.f32.mrf.mxu0
        %v2711 = vadd.f32 0.0, %v2710
        %v2712 = vpop.f32.mrf.mxu0
        %v2713 = vpop.f32.mrf.mxu0
        %v2714 = vadd.f32 0.0, %v2713
        %v2715 = vpop.f32.mrf.mxu0
        %2716 = vmatprep.mubr.bf16.mxu0 0
        %2717 = vmatmul.mubr.bf16.gmra.mxu0 %v2560
        %v2718 = vpop.f32.mrf.mxu0
        %v2719 = vadd.f32 0.0, %v2718
        %v2720 = vpop.f32.mrf.mxu0
        %v2721 = vpop.f32.mrf.mxu0
        %v2722 = vadd.f32 0.0, %v2721
        %v2723 = vpop.f32.mrf.mxu0
        %2724 = vmatprep.mubr.bf16.mxu0 0
        %2725 = vmatmul.mubr.bf16.gmra.mxu0 %v2563
        %v2726 = vpop.f32.mrf.mxu0
        %v2727 = vadd.f32 0.0, %v2726
        %v2728 = vpop.f32.mrf.mxu0
        %v2729 = vpop.f32.mrf.mxu0
        %v2730 = vadd.f32 0.0, %v2729
        %v2731 = vpop.f32.mrf.mxu0
        %2732 = vdwg.mxu0
        %v2765 = vunpack.c.l.b16 %v2070
        %v2766 = vunpack.c.l.b16 %v2071
        %v2767 = vunpack.c.l.b16 %v2072
        %v2768 = vunpack.c.l.b16 %v2073
        %v2769 = vunpack.c.l.b16 %v2074
        %v2770 = vunpack.c.l.b16 %v2075
        %v2771 = vunpack.c.l.b16 %v2076
        %v2772 = vunpack.c.l.b16 %v2077
        %v2773 = vunpack.c.l.b16 %v2078
        %v2774 = vunpack.c.l.b16 %v2079
        %v2775 = vunpack.c.l.b16 %v2080
        %v2776 = vunpack.c.l.b16 %v2081
        %v2777 = vunpack.c.l.b16 %v2082
        %v2778 = vunpack.c.l.b16 %v2083
        %v2779 = vunpack.c.l.b16 %v2084
        %v2780 = vunpack.c.l.b16 %v2085
        %v2781 = vunpack.c.l.b16 %v2086
        %v2782 = vunpack.c.l.b16 %v2087
        %v2783 = vunpack.c.l.b16 %v2088
        %v2784 = vunpack.c.l.b16 %v2089
        %v2785 = vunpack.c.l.b16 %v2090
        %v2786 = vunpack.c.l.b16 %v2091
        %v2787 = vunpack.c.l.b16 %v2092
        %v2788 = vunpack.c.l.b16 %v2093
        %v2789 = vunpack.c.l.b16 %v2094
        %v2790 = vunpack.c.l.b16 %v2095
        %v2791 = vunpack.c.l.b16 %v2096
        %v2792 = vunpack.c.l.b16 %v2097
        %v2793 = vunpack.c.l.b16 %v2098
        %v2794 = vunpack.c.l.b16 %v2099
        %v2795 = vunpack.c.l.b16 %v2100
        %v2796 = vunpack.c.l.b16 %v2101
        %v2797 = vpack.c.b16 %v2766, %v2765
        %v2798 = vpack.c.b16 %v2768, %v2767
        %v2799 = vpack.c.b16 %v2770, %v2769
        %v2800 = vpack.c.b16 %v2772, %v2771
        %v2801 = vpack.c.b16 %v2774, %v2773
        %v2802 = vpack.c.b16 %v2776, %v2775
        %v2803 = vpack.c.b16 %v2778, %v2777
        %v2804 = vpack.c.b16 %v2780, %v2779
        %v2805 = vpack.c.b16 %v2782, %v2781
        %v2806 = vpack.c.b16 %v2784, %v2783
        %v2807 = vpack.c.b16 %v2786, %v2785
        %v2808 = vpack.c.b16 %v2788, %v2787
        %v2809 = vpack.c.b16 %v2790, %v2789
        %v2810 = vpack.c.b16 %v2792, %v2791
        %v2811 = vpack.c.b16 %v2794, %v2793
        %v2812 = vpack.c.b16 %v2796, %v2795
        %v2814 = vsel %vm2516, %v2797, 0
        %v2817 = vsel %vm2516, %v2798, 0
        %v2820 = vsel %vm2516, %v2799, 0
        %v2823 = vsel %vm2516, %v2800, 0
        %v2826 = vsel %vm2516, %v2801, 0
        %v2829 = vsel %vm2516, %v2802, 0
        %v2832 = vsel %vm2516, %v2803, 0
        %v2835 = vsel %vm2516, %v2804, 0
        %v2838 = vsel %vm2516, %v2805, 0
        %v2841 = vsel %vm2516, %v2806, 0
        %v2844 = vsel %vm2516, %v2807, 0
        %v2847 = vsel %vm2516, %v2808, 0
        %v2850 = vsel %vm2516, %v2809, 0
        %v2853 = vsel %vm2516, %v2810, 0
        %v2856 = vsel %vm2516, %v2811, 0
        %v2859 = vsel %vm2516, %v2812, 0
        %v2862 = vand.u32 %v2102, %v2568
        %2864 = vmatprep.subr.bf16.mxu0 0
        %2865 = vmatpush1.bf16.msra.mxu0 0
        %2866 = vmatprep.subr.bf16.mxu0 0
        %2867 = vmatpush1.bf16.msra.mxu0 0
        %2868 = vmatprep.subr.bf16.mxu0 0
        %2869 = vmatpush1.bf16.msra.mxu0 0
        %2870 = vmatprep.subr.bf16.mxu0 0
        %2871 = vmatpush1.bf16.msra.mxu0 0
        %2872 = vmatprep.subr.bf16.mxu0 0
        %2873 = vmatpush1.bf16.msra.mxu0 0
        %2874 = vmatprep.subr.bf16.mxu0 0
        %2875 = vmatpush1.bf16.msra.mxu0 0
        %2876 = vmatprep.subr.bf16.mxu0 0
        %2877 = vmatpush1.bf16.msra.mxu0 0
        %2878 = vmatprep.subr.bf16.mxu0 0
        %2879 = vmatpush1.bf16.msra.mxu0 %v2862
        %2880 = vmatprep.subr.bf16.mxu0 0
        %2881 = vmatpush2.bf16.msra.mxu0 0
        %2882 = vmatprep.subr.bf16.mxu0 0
        %2883 = vmatpush2.bf16.msra.mxu0 0
        %2884 = vmatprep.subr.bf16.mxu0 0
        %2885 = vmatpush2.bf16.msra.mxu0 0
        %2886 = vmatprep.subr.bf16.mxu0 0
        %2887 = vmatpush2.bf16.msra.mxu0 0
        %2888 = vmatprep.subr.bf16.mxu0 0
        %2889 = vmatpush2.bf16.msra.mxu0 0
        %2890 = vmatprep.subr.bf16.mxu0 0
        %2891 = vmatpush2.bf16.msra.mxu0 0
        %2892 = vmatprep.subr.bf16.mxu0 0
        %2893 = vmatpush2.bf16.msra.mxu0 0
        %2894 = vmatprep.subr.bf16.mxu0 0
        %2895 = vmatpush2.bf16.msra.mxu0 0
        %2896 = vmatprep.mubr.bf16.mxu0 0
        %2897 = vmatmul.mubr.bf16.gmra.mxu0 %v2814
        %v2898 = vpop.f32.mrf.mxu0
        %v2899 = vadd.f32 %v2607, %v2898
        %v2900 = vpop.f32.mrf.mxu0
        %v2901 = vpop.f32.mrf.mxu0
        %v2902 = vadd.f32 %v2610, %v2901
        %v2903 = vpop.f32.mrf.mxu0
        %2904 = vmatprep.mubr.bf16.mxu0 0
        %2905 = vmatmul.mubr.bf16.gmra.mxu0 %v2817
        %v2906 = vpop.f32.mrf.mxu0
        %v2907 = vadd.f32 %v2615, %v2906
        %v2908 = vpop.f32.mrf.mxu0
        %v2909 = vpop.f32.mrf.mxu0
        %v2910 = vadd.f32 %v2618, %v2909
        %v2911 = vpop.f32.mrf.mxu0
        %2912 = vmatprep.mubr.bf16.mxu0 0
        %2913 = vmatmul.mubr.bf16.gmra.mxu0 %v2820
        %v2914 = vpop.f32.mrf.mxu0
        %v2915 = vadd.f32 %v2623, %v2914
        %v2916 = vpop.f32.mrf.mxu0
        %v2917 = vpop.f32.mrf.mxu0
        %v2918 = vadd.f32 %v2626, %v2917
        %v2919 = vpop.f32.mrf.mxu0
        %2920 = vmatprep.mubr.bf16.mxu0 0
        %2921 = vmatmul.mubr.bf16.gmra.mxu0 %v2823
        %v2922 = vpop.f32.mrf.mxu0
        %v2923 = vadd.f32 %v2631, %v2922
        %v2924 = vpop.f32.mrf.mxu0
        %v2925 = vpop.f32.mrf.mxu0
        %v2926 = vadd.f32 %v2634, %v2925
        %v2927 = vpop.f32.mrf.mxu0
        %2928 = vmatprep.mubr.bf16.mxu0 0
        %2929 = vmatmul.mubr.bf16.gmra.mxu0 %v2826
        %v2930 = vpop.f32.mrf.mxu0
        %v2931 = vadd.f32 %v2639, %v2930
        %v2932 = vpop.f32.mrf.mxu0
        %v2933 = vpop.f32.mrf.mxu0
        %v2934 = vadd.f32 %v2642, %v2933
        %v2935 = vpop.f32.mrf.mxu0
        %2936 = vmatprep.mubr.bf16.mxu0 0
        %2937 = vmatmul.mubr.bf16.gmra.mxu0 %v2829
        %v2938 = vpop.f32.mrf.mxu0
        %v2939 = vadd.f32 %v2647, %v2938
        %v2940 = vpop.f32.mrf.mxu0
        %v2941 = vpop.f32.mrf.mxu0
        %v2942 = vadd.f32 %v2650, %v2941
        %v2943 = vpop.f32.mrf.mxu0
        %2944 = vmatprep.mubr.bf16.mxu0 0
        %2945 = vmatmul.mubr.bf16.gmra.mxu0 %v2832
        %v2946 = vpop.f32.mrf.mxu0
        %v2947 = vadd.f32 %v2655, %v2946
        %v2948 = vpop.f32.mrf.mxu0
        %v2949 = vpop.f32.mrf.mxu0
        %v2950 = vadd.f32 %v2658, %v2949
        %v2951 = vpop.f32.mrf.mxu0
        %2952 = vmatprep.mubr.bf16.mxu0 0
        %2953 = vmatmul.mubr.bf16.gmra.mxu0 %v2835
        %v2954 = vpop.f32.mrf.mxu0
        %v2955 = vadd.f32 %v2663, %v2954
        %v2956 = vpop.f32.mrf.mxu0
        %v2957 = vpop.f32.mrf.mxu0
        %v2958 = vadd.f32 %v2666, %v2957
        %v2959 = vpop.f32.mrf.mxu0
        %2960 = vmatprep.mubr.bf16.mxu0 0
        %2961 = vmatmul.mubr.bf16.gmra.mxu0 %v2838
        %v2962 = vpop.f32.mrf.mxu0
        %v2963 = vadd.f32 %v2671, %v2962
        %v2964 = vpop.f32.mrf.mxu0
        %v2965 = vpop.f32.mrf.mxu0
        %v2966 = vadd.f32 %v2674, %v2965
        %v2967 = vpop.f32.mrf.mxu0
        %2968 = vmatprep.mubr.bf16.mxu0 0
        %2969 = vmatmul.mubr.bf16.gmra.mxu0 %v2841
        %v2970 = vpop.f32.mrf.mxu0
        %v2971 = vadd.f32 %v2679, %v2970
        %v2972 = vpop.f32.mrf.mxu0
        %v2973 = vpop.f32.mrf.mxu0
        %v2974 = vadd.f32 %v2682, %v2973
        %v2975 = vpop.f32.mrf.mxu0
        %2976 = vmatprep.mubr.bf16.mxu0 0
        %2977 = vmatmul.mubr.bf16.gmra.mxu0 %v2844
        %v2978 = vpop.f32.mrf.mxu0
        %v2979 = vadd.f32 %v2687, %v2978
        %v2980 = vpop.f32.mrf.mxu0
        %v2981 = vpop.f32.mrf.mxu0
        %v2982 = vadd.f32 %v2690, %v2981
        %v2983 = vpop.f32.mrf.mxu0
        %2984 = vmatprep.mubr.bf16.mxu0 0
        %2985 = vmatmul.mubr.bf16.gmra.mxu0 %v2847
        %v2986 = vpop.f32.mrf.mxu0
        %v2987 = vadd.f32 %v2695, %v2986
        %v2988 = vpop.f32.mrf.mxu0
        %v2989 = vpop.f32.mrf.mxu0
        %v2990 = vadd.f32 %v2698, %v2989
        %v2991 = vpop.f32.mrf.mxu0
        %2992 = vmatprep.mubr.bf16.mxu0 0
        %2993 = vmatmul.mubr.bf16.gmra.mxu0 %v2850
        %v2994 = vpop.f32.mrf.mxu0
        %v2995 = vadd.f32 %v2703, %v2994
        %v2996 = vpop.f32.mrf.mxu0
        %v2997 = vpop.f32.mrf.mxu0
        %v2998 = vadd.f32 %v2706, %v2997
        %v2999 = vpop.f32.mrf.mxu0
        %3000 = vmatprep.mubr.bf16.mxu0 0
        %3001 = vmatmul.mubr.bf16.gmra.mxu0 %v2853
        %v3002 = vpop.f32.mrf.mxu0
        %v3003 = vadd.f32 %v2711, %v3002
        %v3004 = vpop.f32.mrf.mxu0
        %v3005 = vpop.f32.mrf.mxu0
        %v3006 = vadd.f32 %v2714, %v3005
        %v3007 = vpop.f32.mrf.mxu0
        %3008 = vmatprep.mubr.bf16.mxu0 0
        %3009 = vmatmul.mubr.bf16.gmra.mxu0 %v2856
        %v3010 = vpop.f32.mrf.mxu0
        %v3011 = vadd.f32 %v2719, %v3010
        %v3012 = vpop.f32.mrf.mxu0
        %v3013 = vpop.f32.mrf.mxu0
        %v3014 = vadd.f32 %v2722, %v3013
        %v3015 = vpop.f32.mrf.mxu0
        %3016 = vmatprep.mubr.bf16.mxu0 0
        %3017 = vmatmul.mubr.bf16.gmra.mxu0 %v2859
        %v3018 = vpop.f32.mrf.mxu0
        %v3019 = vadd.f32 %v2727, %v3018
        %v3020 = vpop.f32.mrf.mxu0
        %v3021 = vpop.f32.mrf.mxu0
        %v3022 = vadd.f32 %v2730, %v3021
        %v3023 = vpop.f32.mrf.mxu0
        %3024 = vdwg.mxu0
        %v3025 = vld [vmem:[%s2069] sm:$0xe]
        %v3026 = vld [vmem:[%s2069 + $0x14] sm:$0xe]
        %v3027 = vld [vmem:[%s2069 + $0x28] sm:$0xe]
        %v3028 = vld [vmem:[%s2069 + $0x3c] sm:$0xe]
        %v3029 = vld [vmem:[%s2069 + $0x50] sm:$0xe]
        %v3030 = vld [vmem:[%s2069 + $0x64] sm:$0xe]
        %v3031 = vld [vmem:[%s2069 + $0x78] sm:$0xe]
        %v3032 = vld [vmem:[%s2069 + $0x8c] sm:$0xe]
        %vm3049 = vcmask 1042432
        %vm3050 = vcmask 1046532
        %vm3051 = vmor %vm3049, %vm3050
        %v3052 = vrot.slane %v3025, 5
        %v3053 = vrot.slane %v3052, 4
        %v3054 = vrot.slane %v2071, 5
        %v3055 = vsel %vm3051, %v3053, %v3054
        %v3056 = vrot.slane %v3054, 4
        %v3057 = vrot.slane %v2072, 5
        %v3058 = vsel %vm3051, %v3056, %v3057
        %v3059 = vrot.slane %v3057, 4
        %v3060 = vrot.slane %v2073, 5
        %v3061 = vsel %vm3051, %v3059, %v3060
        %v3062 = vrot.slane %v3060, 4
        %v3063 = vrot.slane %v2103, 5
        %v3064 = vsel %vm3051, %v3062, %v3063
        %v3065 = vrot.slane %v3026, 5
        %v3066 = vrot.slane %v3065, 4
        %v3067 = vrot.slane %v2075, 5
        %v3068 = vsel %vm3051, %v3066, %v3067
        %v3069 = vrot.slane %v3067, 4
        %v3070 = vrot.slane %v2076, 5
        %v3071 = vsel %vm3051, %v3069, %v3070
        %v3072 = vrot.slane %v3070, 4
        %v3073 = vrot.slane %v2077, 5
        %v3074 = vsel %vm3051, %v3072, %v3073
        %v3075 = vrot.slane %v3073, 4
        %v3076 = vrot.slane %v2104, 5
        %v3077 = vsel %vm3051, %v3075, %v3076
        %v3078 = vrot.slane %v3027, 5
        %v3079 = vrot.slane %v3078, 4
        %v3080 = vrot.slane %v2079, 5
        %v3081 = vsel %vm3051, %v3079, %v3080
        %v3082 = vrot.slane %v3080, 4
        %v3083 = vrot.slane %v2080, 5
        %v3084 = vsel %vm3051, %v3082, %v3083
        %v3085 = vrot.slane %v3083, 4
        %v3086 = vrot.slane %v2081, 5
        %v3087 = vsel %vm3051, %v3085, %v3086
        %v3088 = vrot.slane %v3086, 4
        %v3089 = vrot.slane %v2105, 5
        %v3090 = vsel %vm3051, %v3088, %v3089
        %v3091 = vrot.slane %v3028, 5
        %v3092 = vrot.slane %v3091, 4
        %v3093 = vrot.slane %v2083, 5
        %v3094 = vsel %vm3051, %v3092, %v3093
        %v3095 = vrot.slane %v3093, 4
        %v3096 = vrot.slane %v2084, 5
        %v3097 = vsel %vm3051, %v3095, %v3096
        %v3098 = vrot.slane %v3096, 4
        %v3099 = vrot.slane %v2085, 5
        %v3100 = vsel %vm3051, %v3098, %v3099
        %v3101 = vrot.slane %v3099, 4
        %v3102 = vrot.slane %v2106, 5
        %v3103 = vsel %vm3051, %v3101, %v3102
        %v3104 = vrot.slane %v3029, 5
        %v3105 = vrot.slane %v3104, 4
        %v3106 = vrot.slane %v2087, 5
        %v3107 = vsel %vm3051, %v3105, %v3106
        %v3108 = vrot.slane %v3106, 4
        %v3109 = vrot.slane %v2088, 5
        %v3110 = vsel %vm3051, %v3108, %v3109
        %v3111 = vrot.slane %v3109, 4
        %v3112 = vrot.slane %v2089, 5
        %v3113 = vsel %vm3051, %v3111, %v3112
        %v3114 = vrot.slane %v3112, 4
        %v3115 = vrot.slane %v2107, 5
        %v3116 = vsel %vm3051, %v3114, %v3115
        %v3117 = vrot.slane %v3030, 5
        %v3118 = vrot.slane %v3117, 4
        %v3119 = vrot.slane %v2091, 5
        %v3120 = vsel %vm3051, %v3118, %v3119
        %v3121 = vrot.slane %v3119, 4
        %v3122 = vrot.slane %v2092, 5
        %v3123 = vsel %vm3051, %v3121, %v3122
        %v3124 = vrot.slane %v3122, 4
        %v3125 = vrot.slane %v2093, 5
        %v3126 = vsel %vm3051, %v3124, %v3125
        %v3127 = vrot.slane %v3125, 4
        %v3128 = vrot.slane %v2108, 5
        %v3129 = vsel %vm3051, %v3127, %v3128
        %v3130 = vrot.slane %v3031, 5
        %v3131 = vrot.slane %v3130, 4
        %v3132 = vrot.slane %v2095, 5
        %v3133 = vsel %vm3051, %v3131, %v3132
        %v3134 = vrot.slane %v3132, 4
        %v3135 = vrot.slane %v2096, 5
        %v3136 = vsel %vm3051, %v3134, %v3135
        %v3137 = vrot.slane %v3135, 4
        %v3138 = vrot.slane %v2097, 5
        %v3139 = vsel %vm3051, %v3137, %v3138
        %v3140 = vrot.slane %v3138, 4
        %v3141 = vrot.slane %v2109, 5
        %v3142 = vsel %vm3051, %v3140, %v3141
        %v3143 = vrot.slane %v3032, 5
        %v3144 = vrot.slane %v3143, 4
        %v3145 = vrot.slane %v2099, 5
        %v3146 = vsel %vm3051, %v3144, %v3145
        %v3147 = vrot.slane %v3145, 4
        %v3148 = vrot.slane %v2100, 5
        %v3149 = vsel %vm3051, %v3147, %v3148
        %v3150 = vrot.slane %v3148, 4
        %v3151 = vrot.slane %v2101, 5
        %v3152 = vsel %vm3051, %v3150, %v3151
        %v3153 = vrot.slane %v3151, 4
        %v3154 = vrot.slane %v2110, 5
        %v3155 = vsel %vm3051, %v3153, %v3154
        %s3156 = scalar_lea.vmem %s1, 4
        %v3157 = vld [vmem:[%s3156] sm:$0x3]
        %v3158 = vunpack.c.l.b16 %v3055
        %v3159 = vunpack.c.l.b16 %v3058
        %v3160 = vunpack.c.l.b16 %v3061
        %v3161 = vunpack.c.l.b16 %v3064
        %v3162 = vunpack.c.l.b16 %v3068
        %v3163 = vunpack.c.l.b16 %v3071
        %v3164 = vunpack.c.l.b16 %v3074
        %v3165 = vunpack.c.l.b16 %v3077
        %v3166 = vunpack.c.l.b16 %v3081
        %v3167 = vunpack.c.l.b16 %v3084
        %v3168 = vunpack.c.l.b16 %v3087
        %v3169 = vunpack.c.l.b16 %v3090
        %v3170 = vunpack.c.l.b16 %v3094
        %v3171 = vunpack.c.l.b16 %v3097
        %v3172 = vunpack.c.l.b16 %v3100
        %v3173 = vunpack.c.l.b16 %v3103
        %v3174 = vunpack.c.l.b16 %v3107
        %v3175 = vunpack.c.l.b16 %v3110
        %v3176 = vunpack.c.l.b16 %v3113
        %v3177 = vunpack.c.l.b16 %v3116
        %v3178 = vunpack.c.l.b16 %v3120
        %v3179 = vunpack.c.l.b16 %v3123
        %v3180 = vunpack.c.l.b16 %v3126
        %v3181 = vunpack.c.l.b16 %v3129
        %v3182 = vunpack.c.l.b16 %v3133
        %v3183 = vunpack.c.l.b16 %v3136
        %v3184 = vunpack.c.l.b16 %v3139
        %v3185 = vunpack.c.l.b16 %v3142
        %v3186 = vunpack.c.l.b16 %v3146
        %v3187 = vunpack.c.l.b16 %v3149
        %v3188 = vunpack.c.l.b16 %v3152
        %v3189 = vunpack.c.l.b16 %v3155
        %v3190 = vpack.c.b16 %v3159, %v3158
        %v3191 = vpack.c.b16 %v3161, %v3160
        %v3192 = vpack.c.b16 %v3163, %v3162
        %v3193 = vpack.c.b16 %v3165, %v3164
        %v3194 = vpack.c.b16 %v3167, %v3166
        %v3195 = vpack.c.b16 %v3169, %v3168
        %v3196 = vpack.c.b16 %v3171, %v3170
        %v3197 = vpack.c.b16 %v3173, %v3172
        %v3198 = vpack.c.b16 %v3175, %v3174
        %v3199 = vpack.c.b16 %v3177, %v3176
        %v3200 = vpack.c.b16 %v3179, %v3178
        %v3201 = vpack.c.b16 %v3181, %v3180
        %v3202 = vpack.c.b16 %v3183, %v3182
        %v3203 = vpack.c.b16 %v3185, %v3184
        %v3204 = vpack.c.b16 %v3187, %v3186
        %v3205 = vpack.c.b16 %v3189, %v3188
        %v3207 = vsel %vm2516, %v3190, 0
        %v3210 = vsel %vm2516, %v3191, 0
        %v3213 = vsel %vm2516, %v3192, 0
        %v3216 = vsel %vm2516, %v3193, 0
        %v3219 = vsel %vm2516, %v3194, 0
        %v3222 = vsel %vm2516, %v3195, 0
        %v3225 = vsel %vm2516, %v3196, 0
        %v3228 = vsel %vm2516, %v3197, 0
        %v3231 = vsel %vm2516, %v3198, 0
        %v3234 = vsel %vm2516, %v3199, 0
        %v3237 = vsel %vm2516, %v3200, 0
        %v3240 = vsel %vm2516, %v3201, 0
        %v3243 = vsel %vm2516, %v3202, 0
        %v3246 = vsel %vm2516, %v3203, 0
        %v3249 = vsel %vm2516, %v3204, 0
        %v3252 = vsel %vm2516, %v3205, 0
        %v3255 = vand.u32 %v3157, %v2568
        %3257 = vmatprep.subr.bf16.mxu0 0
        %3258 = vmatpush1.bf16.msra.mxu0 0
        %3259 = vmatprep.subr.bf16.mxu0 0
        %3260 = vmatpush1.bf16.msra.mxu0 0
        %3261 = vmatprep.subr.bf16.mxu0 0
        %3262 = vmatpush1.bf16.msra.mxu0 0
        %3263 = vmatprep.subr.bf16.mxu0 0
        %3264 = vmatpush1.bf16.msra.mxu0 0
        %3265 = vmatprep.subr.bf16.mxu0 0
        %3266 = vmatpush1.bf16.msra.mxu0 0
        %3267 = vmatprep.subr.bf16.mxu0 0
        %3268 = vmatpush1.bf16.msra.mxu0 0
        %3269 = vmatprep.subr.bf16.mxu0 0
        %3270 = vmatpush1.bf16.msra.mxu0 0
        %3271 = vmatprep.subr.bf16.mxu0 0
        %3272 = vmatpush1.bf16.msra.mxu0 %v3255
        %3273 = vmatprep.subr.bf16.mxu0 0
        %3274 = vmatpush2.bf16.msra.mxu0 0
        %3275 = vmatprep.subr.bf16.mxu0 0
        %3276 = vmatpush2.bf16.msra.mxu0 0
        %3277 = vmatprep.subr.bf16.mxu0 0
        %3278 = vmatpush2.bf16.msra.mxu0 0
        %3279 = vmatprep.subr.bf16.mxu0 0
        %3280 = vmatpush2.bf16.msra.mxu0 0
        %3281 = vmatprep.subr.bf16.mxu0 0
        %3282 = vmatpush2.bf16.msra.mxu0 0
        %3283 = vmatprep.subr.bf16.mxu0 0
        %3284 = vmatpush2.bf16.msra.mxu0 0
        %3285 = vmatprep.subr.bf16.mxu0 0
        %3286 = vmatpush2.bf16.msra.mxu0 0
        %3287 = vmatprep.subr.bf16.mxu0 0
        %3288 = vmatpush2.bf16.msra.mxu0 0
        %3289 = vmatprep.mubr.bf16.mxu0 0
        %3290 = vmatmul.mubr.bf16.gmra.mxu0 %v3207
        %v3291 = vpop.f32.mrf.mxu0
        %v3292 = vadd.f32 0.0, %v3291
        %v3293 = vpop.f32.mrf.mxu0
        %v3294 = vpop.f32.mrf.mxu0
        %v3295 = vadd.f32 0.0, %v3294
        %v3296 = vpop.f32.mrf.mxu0
        %3297 = vmatprep.mubr.bf16.mxu0 0
        %3298 = vmatmul.mubr.bf16.gmra.mxu0 %v3210
        %v3299 = vpop.f32.mrf.mxu0
        %v3300 = vadd.f32 0.0, %v3299
        %v3301 = vpop.f32.mrf.mxu0
        %v3302 = vpop.f32.mrf.mxu0
        %v3303 = vadd.f32 0.0, %v3302
        %v3304 = vpop.f32.mrf.mxu0
        %3305 = vmatprep.mubr.bf16.mxu0 0
        %3306 = vmatmul.mubr.bf16.gmra.mxu0 %v3213
        %v3307 = vpop.f32.mrf.mxu0
        %v3308 = vadd.f32 0.0, %v3307
        %v3309 = vpop.f32.mrf.mxu0
        %v3310 = vpop.f32.mrf.mxu0
        %v3311 = vadd.f32 0.0, %v3310
        %v3312 = vpop.f32.mrf.mxu0
        %3313 = vmatprep.mubr.bf16.mxu0 0
        %3314 = vmatmul.mubr.bf16.gmra.mxu0 %v3216
        %v3315 = vpop.f32.mrf.mxu0
        %v3316 = vadd.f32 0.0, %v3315
        %v3317 = vpop.f32.mrf.mxu0
        %v3318 = vpop.f32.mrf.mxu0
        %v3319 = vadd.f32 0.0, %v3318
        %v3320 = vpop.f32.mrf.mxu0
        %3321 = vmatprep.mubr.bf16.mxu0 0
        %3322 = vmatmul.mubr.bf16.gmra.mxu0 %v3219
        %v3323 = vpop.f32.mrf.mxu0
        %v3324 = vadd.f32 0.0, %v3323
        %v3325 = vpop.f32.mrf.mxu0
        %v3326 = vpop.f32.mrf.mxu0
        %v3327 = vadd.f32 0.0, %v3326
        %v3328 = vpop.f32.mrf.mxu0
        %3329 = vmatprep.mubr.bf16.mxu0 0
        %3330 = vmatmul.mubr.bf16.gmra.mxu0 %v3222
        %v3331 = vpop.f32.mrf.mxu0
        %v3332 = vadd.f32 0.0, %v3331
        %v3333 = vpop.f32.mrf.mxu0
        %v3334 = vpop.f32.mrf.mxu0
        %v3335 = vadd.f32 0.0, %v3334
        %v3336 = vpop.f32.mrf.mxu0
        %3337 = vmatprep.mubr.bf16.mxu0 0
        %3338 = vmatmul.mubr.bf16.gmra.mxu0 %v3225
        %v3339 = vpop.f32.mrf.mxu0
        %v3340 = vadd.f32 0.0, %v3339
        %v3341 = vpop.f32.mrf.mxu0
        %v3342 = vpop.f32.mrf.mxu0
        %v3343 = vadd.f32 0.0, %v3342
        %v3344 = vpop.f32.mrf.mxu0
        %3345 = vmatprep.mubr.bf16.mxu0 0
        %3346 = vmatmul.mubr.bf16.gmra.mxu0 %v3228
        %v3347 = vpop.f32.mrf.mxu0
        %v3348 = vadd.f32 0.0, %v3347
        %v3349 = vpop.f32.mrf.mxu0
        %v3350 = vpop.f32.mrf.mxu0
        %v3351 = vadd.f32 0.0, %v3350
        %v3352 = vpop.f32.mrf.mxu0
        %3353 = vmatprep.mubr.bf16.mxu0 0
        %3354 = vmatmul.mubr.bf16.gmra.mxu0 %v3231
        %v3355 = vpop.f32.mrf.mxu0
        %v3356 = vadd.f32 0.0, %v3355
        %v3357 = vpop.f32.mrf.mxu0
        %v3358 = vpop.f32.mrf.mxu0
        %v3359 = vadd.f32 0.0, %v3358
        %v3360 = vpop.f32.mrf.mxu0
        %3361 = vmatprep.mubr.bf16.mxu0 0
        %3362 = vmatmul.mubr.bf16.gmra.mxu0 %v3234
        %v3363 = vpop.f32.mrf.mxu0
        %v3364 = vadd.f32 0.0, %v3363
        %v3365 = vpop.f32.mrf.mxu0
        %v3366 = vpop.f32.mrf.mxu0
        %v3367 = vadd.f32 0.0, %v3366
        %v3368 = vpop.f32.mrf.mxu0
        %3369 = vmatprep.mubr.bf16.mxu0 0
        %3370 = vmatmul.mubr.bf16.gmra.mxu0 %v3237
        %v3371 = vpop.f32.mrf.mxu0
        %v3372 = vadd.f32 0.0, %v3371
        %v3373 = vpop.f32.mrf.mxu0
        %v3374 = vpop.f32.mrf.mxu0
        %v3375 = vadd.f32 0.0, %v3374
        %v3376 = vpop.f32.mrf.mxu0
        %3377 = vmatprep.mubr.bf16.mxu0 0
        %3378 = vmatmul.mubr.bf16.gmra.mxu0 %v3240
        %v3379 = vpop.f32.mrf.mxu0
        %v3380 = vadd.f32 0.0, %v3379
        %v3381 = vpop.f32.mrf.mxu0
        %v3382 = vpop.f32.mrf.mxu0
        %v3383 = vadd.f32 0.0, %v3382
        %v3384 = vpop.f32.mrf.mxu0
        %3385 = vmatprep.mubr.bf16.mxu0 0
        %3386 = vmatmul.mubr.bf16.gmra.mxu0 %v3243
        %v3387 = vpop.f32.mrf.mxu0
        %v3388 = vadd.f32 0.0, %v3387
        %v3389 = vpop.f32.mrf.mxu0
        %v3390 = vpop.f32.mrf.mxu0
        %v3391 = vadd.f32 0.0, %v3390
        %v3392 = vpop.f32.mrf.mxu0
        %3393 = vmatprep.mubr.bf16.mxu0 0
        %3394 = vmatmul.mubr.bf16.gmra.mxu0 %v3246
        %v3395 = vpop.f32.mrf.mxu0
        %v3396 = vadd.f32 0.0, %v3395
        %v3397 = vpop.f32.mrf.mxu0
        %v3398 = vpop.f32.mrf.mxu0
        %v3399 = vadd.f32 0.0, %v3398
        %v3400 = vpop.f32.mrf.mxu0
        %3401 = vmatprep.mubr.bf16.mxu0 0
        %3402 = vmatmul.mubr.bf16.gmra.mxu0 %v3249
        %v3403 = vpop.f32.mrf.mxu0
        %v3404 = vadd.f32 0.0, %v3403
        %v3405 = vpop.f32.mrf.mxu0
        %v3406 = vpop.f32.mrf.mxu0
        %v3407 = vadd.f32 0.0, %v3406
        %v3408 = vpop.f32.mrf.mxu0
        %3409 = vmatprep.mubr.bf16.mxu0 0
        %3410 = vmatmul.mubr.bf16.gmra.mxu0 %v3252
        %v3411 = vpop.f32.mrf.mxu0
        %v3412 = vadd.f32 0.0, %v3411
        %v3413 = vpop.f32.mrf.mxu0
        %v3414 = vpop.f32.mrf.mxu0
        %v3415 = vadd.f32 0.0, %v3414
        %v3416 = vpop.f32.mrf.mxu0
        %3417 = vdwg.mxu0
        %v3418 = vadd.f32 %v2899, %v3292
        %v3419 = vadd.f32 %v2902, %v3295
        %v3420 = vadd.f32 %v2907, %v3300
        %v3421 = vadd.f32 %v2910, %v3303
        %v3422 = vadd.f32 %v2915, %v3308
        %v3423 = vadd.f32 %v2918, %v3311
        %v3424 = vadd.f32 %v2923, %v3316
        %v3425 = vadd.f32 %v2926, %v3319
        %v3426 = vadd.f32 %v2931, %v3324
        %v3427 = vadd.f32 %v2934, %v3327
        %v3428 = vadd.f32 %v2939, %v3332
        %v3429 = vadd.f32 %v2942, %v3335
        %v3430 = vadd.f32 %v2947, %v3340
        %v3431 = vadd.f32 %v2950, %v3343
        %v3432 = vadd.f32 %v2955, %v3348
        %v3433 = vadd.f32 %v2958, %v3351
        %v3434 = vadd.f32 %v2963, %v3356
        %v3435 = vadd.f32 %v2966, %v3359
        %v3436 = vadd.f32 %v2971, %v3364
        %v3437 = vadd.f32 %v2974, %v3367
        %v3438 = vadd.f32 %v2979, %v3372
        %v3439 = vadd.f32 %v2982, %v3375
        %v3440 = vadd.f32 %v2987, %v3380
        %v3441 = vadd.f32 %v2990, %v3383
        %v3442 = vadd.f32 %v2995, %v3388
        %v3443 = vadd.f32 %v2998, %v3391
        %v3444 = vadd.f32 %v3003, %v3396
        %v3445 = vadd.f32 %v3006, %v3399
        %v3446 = vadd.f32 %v3011, %v3404
        %v3447 = vadd.f32 %v3014, %v3407
        %v3448 = vadd.f32 %v3019, %v3412
        %v3449 = vadd.f32 %v3022, %v3415
        %s3450 = sadd.s32 %s2066, 1
        %s3451 = smul.u32 %s3450, 5
        %s3452 = smul.addr %s3451, 4
        %s3453 = scalar_lea.vmem [#allocation2], %s3452
        %v3454 = vld [vmem:[%s3453] sm:$0xf]
        %v3455 = vld [vmem:[%s3453 + $0x4] sm:$0xf]
        %v3456 = vld [vmem:[%s3453 + $0x8] sm:$0xf]
        %v3457 = vld [vmem:[%s3453 + $0xc] sm:$0xf]
        %v3458 = vld [vmem:[%s3453 + $0x14] sm:$0xf]
        %v3459 = vld [vmem:[%s3453 + $0x18] sm:$0xf]
        %v3460 = vld [vmem:[%s3453 + $0x1c] sm:$0xf]
        %v3461 = vld [vmem:[%s3453 + $0x20] sm:$0xf]
        %v3462 = vld [vmem:[%s3453 + $0x28] sm:$0xf]
        %v3463 = vld [vmem:[%s3453 + $0x2c] sm:$0xf]
        %v3464 = vld [vmem:[%s3453 + $0x30] sm:$0xf]
        %v3465 = vld [vmem:[%s3453 + $0x34] sm:$0xf]
        %v3466 = vld [vmem:[%s3453 + $0x3c] sm:$0xf]
        %v3467 = vld [vmem:[%s3453 + $0x40] sm:$0xf]
        %v3468 = vld [vmem:[%s3453 + $0x44] sm:$0xf]
        %v3469 = vld [vmem:[%s3453 + $0x48] sm:$0xf]
        %v3470 = vld [vmem:[%s3453 + $0x50] sm:$0xf]
        %v3471 = vld [vmem:[%s3453 + $0x54] sm:$0xf]
        %v3472 = vld [vmem:[%s3453 + $0x58] sm:$0xf]
        %v3473 = vld [vmem:[%s3453 + $0x5c] sm:$0xf]
        %v3474 = vld [vmem:[%s3453 + $0x64] sm:$0xf]
        %v3475 = vld [vmem:[%s3453 + $0x68] sm:$0xf]
        %v3476 = vld [vmem:[%s3453 + $0x6c] sm:$0xf]
        %v3477 = vld [vmem:[%s3453 + $0x70] sm:$0xf]
        %v3478 = vld [vmem:[%s3453 + $0x78] sm:$0xf]
        %v3479 = vld [vmem:[%s3453 + $0x7c] sm:$0xf]
        %v3480 = vld [vmem:[%s3453 + $0x80] sm:$0xf]
        %v3481 = vld [vmem:[%s3453 + $0x84] sm:$0xf]
        %v3482 = vld [vmem:[%s3453 + $0x8c] sm:$0xf]
        %v3483 = vld [vmem:[%s3453 + $0x90] sm:$0xf]
        %v3484 = vld [vmem:[%s3453 + $0x94] sm:$0xf]
        %v3485 = vld [vmem:[%s3453 + $0x98] sm:$0xf]
        %s3486 = scalar_lea.vmem %s1, 6
        %v3487 = vld [vmem:[%s3486] sm:$0x3]
        %v3520 = vunpack.c.l.b16 %v3454
        %v3521 = vunpack.c.l.b16 %v3455
        %v3522 = vunpack.c.l.b16 %v3456
        %v3523 = vunpack.c.l.b16 %v3457
        %v3524 = vunpack.c.l.b16 %v3458
        %v3525 = vunpack.c.l.b16 %v3459
        %v3526 = vunpack.c.l.b16 %v3460
        %v3527 = vunpack.c.l.b16 %v3461
        %v3528 = vunpack.c.l.b16 %v3462
        %v3529 = vunpack.c.l.b16 %v3463
        %v3530 = vunpack.c.l.b16 %v3464
        %v3531 = vunpack.c.l.b16 %v3465
        %v3532 = vunpack.c.l.b16 %v3466
        %v3533 = vunpack.c.l.b16 %v3467
        %v3534 = vunpack.c.l.b16 %v3468
        %v3535 = vunpack.c.l.b16 %v3469
        %v3536 = vunpack.c.l.b16 %v3470
        %v3537 = vunpack.c.l.b16 %v3471
        %v3538 = vunpack.c.l.b16 %v3472
        %v3539 = vunpack.c.l.b16 %v3473
        %v3540 = vunpack.c.l.b16 %v3474
        %v3541 = vunpack.c.l.b16 %v3475
        %v3542 = vunpack.c.l.b16 %v3476
        %v3543 = vunpack.c.l.b16 %v3477
        %v3544 = vunpack.c.l.b16 %v3478
        %v3545 = vunpack.c.l.b16 %v3479
        %v3546 = vunpack.c.l.b16 %v3480
        %v3547 = vunpack.c.l.b16 %v3481
        %v3548 = vunpack.c.l.b16 %v3482
        %v3549 = vunpack.c.l.b16 %v3483
        %v3550 = vunpack.c.l.b16 %v3484
        %v3551 = vunpack.c.l.b16 %v3485
        %v3552 = vpack.c.b16 %v3521, %v3520
        %v3553 = vpack.c.b16 %v3523, %v3522
        %v3554 = vpack.c.b16 %v3525, %v3524
        %v3555 = vpack.c.b16 %v3527, %v3526
        %v3556 = vpack.c.b16 %v3529, %v3528
        %v3557 = vpack.c.b16 %v3531, %v3530
        %v3558 = vpack.c.b16 %v3533, %v3532
        %v3559 = vpack.c.b16 %v3535, %v3534
        %v3560 = vpack.c.b16 %v3537, %v3536
        %v3561 = vpack.c.b16 %v3539, %v3538
        %v3562 = vpack.c.b16 %v3541, %v3540
        %v3563 = vpack.c.b16 %v3543, %v3542
        %v3564 = vpack.c.b16 %v3545, %v3544
        %v3565 = vpack.c.b16 %v3547, %v3546
        %v3566 = vpack.c.b16 %v3549, %v3548
        %v3567 = vpack.c.b16 %v3551, %v3550
        %v3569 = vsel %vm2516, %v3552, 0
        %v3572 = vsel %vm2516, %v3553, 0
        %v3575 = vsel %vm2516, %v3554, 0
        %v3578 = vsel %vm2516, %v3555, 0
        %v3581 = vsel %vm2516, %v3556, 0
        %v3584 = vsel %vm2516, %v3557, 0
        %v3587 = vsel %vm2516, %v3558, 0
        %v3590 = vsel %vm2516, %v3559, 0
        %v3593 = vsel %vm2516, %v3560, 0
        %v3596 = vsel %vm2516, %v3561, 0
        %v3599 = vsel %vm2516, %v3562, 0
        %v3602 = vsel %vm2516, %v3563, 0
        %v3605 = vsel %vm2516, %v3564, 0
        %v3608 = vsel %vm2516, %v3565, 0
        %v3611 = vsel %vm2516, %v3566, 0
        %v3614 = vsel %vm2516, %v3567, 0
        %v3617 = vand.u32 %v3487, %v2568
        %3619 = vmatprep.subr.bf16.mxu0 0
        %3620 = vmatpush1.bf16.msra.mxu0 0
        %3621 = vmatprep.subr.bf16.mxu0 0
        %3622 = vmatpush1.bf16.msra.mxu0 0
        %3623 = vmatprep.subr.bf16.mxu0 0
        %3624 = vmatpush1.bf16.msra.mxu0 0
        %3625 = vmatprep.subr.bf16.mxu0 0
        %3626 = vmatpush1.bf16.msra.mxu0 0
        %3627 = vmatprep.subr.bf16.mxu0 0
        %3628 = vmatpush1.bf16.msra.mxu0 0
        %3629 = vmatprep.subr.bf16.mxu0 0
        %3630 = vmatpush1.bf16.msra.mxu0 0
        %3631 = vmatprep.subr.bf16.mxu0 0
        %3632 = vmatpush1.bf16.msra.mxu0 0
        %3633 = vmatprep.subr.bf16.mxu0 0
        %3634 = vmatpush1.bf16.msra.mxu0 %v3617
        %3635 = vmatprep.subr.bf16.mxu0 0
        %3636 = vmatpush2.bf16.msra.mxu0 0
        %3637 = vmatprep.subr.bf16.mxu0 0
        %3638 = vmatpush2.bf16.msra.mxu0 0
        %3639 = vmatprep.subr.bf16.mxu0 0
        %3640 = vmatpush2.bf16.msra.mxu0 0
        %3641 = vmatprep.subr.bf16.mxu0 0
        %3642 = vmatpush2.bf16.msra.mxu0 0
        %3643 = vmatprep.subr.bf16.mxu0 0
        %3644 = vmatpush2.bf16.msra.mxu0 0
        %3645 = vmatprep.subr.bf16.mxu0 0
        %3646 = vmatpush2.bf16.msra.mxu0 0
        %3647 = vmatprep.subr.bf16.mxu0 0
        %3648 = vmatpush2.bf16.msra.mxu0 0
        %3649 = vmatprep.subr.bf16.mxu0 0
        %3650 = vmatpush2.bf16.msra.mxu0 0
        %3651 = vmatprep.mubr.bf16.mxu0 0
        %3652 = vmatmul.mubr.bf16.gmra.mxu0 %v3569
        %v3653 = vpop.f32.mrf.mxu0
        %v3654 = vadd.f32 0.0, %v3653
        %v3655 = vpop.f32.mrf.mxu0
        %v3656 = vpop.f32.mrf.mxu0
        %v3657 = vadd.f32 0.0, %v3656
        %v3658 = vpop.f32.mrf.mxu0
        %3659 = vmatprep.mubr.bf16.mxu0 0
        %3660 = vmatmul.mubr.bf16.gmra.mxu0 %v3572
        %v3661 = vpop.f32.mrf.mxu0
        %v3662 = vadd.f32 0.0, %v3661
        %v3663 = vpop.f32.mrf.mxu0
        %v3664 = vpop.f32.mrf.mxu0
        %v3665 = vadd.f32 0.0, %v3664
        %v3666 = vpop.f32.mrf.mxu0
        %3667 = vmatprep.mubr.bf16.mxu0 0
        %3668 = vmatmul.mubr.bf16.gmra.mxu0 %v3575
        %v3669 = vpop.f32.mrf.mxu0
        %v3670 = vadd.f32 0.0, %v3669
        %v3671 = vpop.f32.mrf.mxu0
        %v3672 = vpop.f32.mrf.mxu0
        %v3673 = vadd.f32 0.0, %v3672
        %v3674 = vpop.f32.mrf.mxu0
        %3675 = vmatprep.mubr.bf16.mxu0 0
        %3676 = vmatmul.mubr.bf16.gmra.mxu0 %v3578
        %v3677 = vpop.f32.mrf.mxu0
        %v3678 = vadd.f32 0.0, %v3677
        %v3679 = vpop.f32.mrf.mxu0
        %v3680 = vpop.f32.mrf.mxu0
        %v3681 = vadd.f32 0.0, %v3680
        %v3682 = vpop.f32.mrf.mxu0
        %3683 = vmatprep.mubr.bf16.mxu0 0
        %3684 = vmatmul.mubr.bf16.gmra.mxu0 %v3581
        %v3685 = vpop.f32.mrf.mxu0
        %v3686 = vadd.f32 0.0, %v3685
        %v3687 = vpop.f32.mrf.mxu0
        %v3688 = vpop.f32.mrf.mxu0
        %v3689 = vadd.f32 0.0, %v3688
        %v3690 = vpop.f32.mrf.mxu0
        %3691 = vmatprep.mubr.bf16.mxu0 0
        %3692 = vmatmul.mubr.bf16.gmra.mxu0 %v3584
        %v3693 = vpop.f32.mrf.mxu0
        %v3694 = vadd.f32 0.0, %v3693
        %v3695 = vpop.f32.mrf.mxu0
        %v3696 = vpop.f32.mrf.mxu0
        %v3697 = vadd.f32 0.0, %v3696
        %v3698 = vpop.f32.mrf.mxu0
        %3699 = vmatprep.mubr.bf16.mxu0 0
        %3700 = vmatmul.mubr.bf16.gmra.mxu0 %v3587
        %v3701 = vpop.f32.mrf.mxu0
        %v3702 = vadd.f32 0.0, %v3701
        %v3703 = vpop.f32.mrf.mxu0
        %v3704 = vpop.f32.mrf.mxu0
        %v3705 = vadd.f32 0.0, %v3704
        %v3706 = vpop.f32.mrf.mxu0
        %3707 = vmatprep.mubr.bf16.mxu0 0
        %3708 = vmatmul.mubr.bf16.gmra.mxu0 %v3590
        %v3709 = vpop.f32.mrf.mxu0
        %v3710 = vadd.f32 0.0, %v3709
        %v3711 = vpop.f32.mrf.mxu0
        %v3712 = vpop.f32.mrf.mxu0
        %v3713 = vadd.f32 0.0, %v3712
        %v3714 = vpop.f32.mrf.mxu0
        %3715 = vmatprep.mubr.bf16.mxu0 0
        %3716 = vmatmul.mubr.bf16.gmra.mxu0 %v3593
        %v3717 = vpop.f32.mrf.mxu0
        %v3718 = vadd.f32 0.0, %v3717
        %v3719 = vpop.f32.mrf.mxu0
        %v3720 = vpop.f32.mrf.mxu0
        %v3721 = vadd.f32 0.0, %v3720
        %v3722 = vpop.f32.mrf.mxu0
        %3723 = vmatprep.mubr.bf16.mxu0 0
        %3724 = vmatmul.mubr.bf16.gmra.mxu0 %v3596
        %v3725 = vpop.f32.mrf.mxu0
        %v3726 = vadd.f32 0.0, %v3725
        %v3727 = vpop.f32.mrf.mxu0
        %v3728 = vpop.f32.mrf.mxu0
        %v3729 = vadd.f32 0.0, %v3728
        %v3730 = vpop.f32.mrf.mxu0
        %3731 = vmatprep.mubr.bf16.mxu0 0
        %3732 = vmatmul.mubr.bf16.gmra.mxu0 %v3599
        %v3733 = vpop.f32.mrf.mxu0
        %v3734 = vadd.f32 0.0, %v3733
        %v3735 = vpop.f32.mrf.mxu0
        %v3736 = vpop.f32.mrf.mxu0
        %v3737 = vadd.f32 0.0, %v3736
        %v3738 = vpop.f32.mrf.mxu0
        %3739 = vmatprep.mubr.bf16.mxu0 0
        %3740 = vmatmul.mubr.bf16.gmra.mxu0 %v3602
        %v3741 = vpop.f32.mrf.mxu0
        %v3742 = vadd.f32 0.0, %v3741
        %v3743 = vpop.f32.mrf.mxu0
        %v3744 = vpop.f32.mrf.mxu0
        %v3745 = vadd.f32 0.0, %v3744
        %v3746 = vpop.f32.mrf.mxu0
        %3747 = vmatprep.mubr.bf16.mxu0 0
        %3748 = vmatmul.mubr.bf16.gmra.mxu0 %v3605
        %v3749 = vpop.f32.mrf.mxu0
        %v3750 = vadd.f32 0.0, %v3749
        %v3751 = vpop.f32.mrf.mxu0
        %v3752 = vpop.f32.mrf.mxu0
        %v3753 = vadd.f32 0.0, %v3752
        %v3754 = vpop.f32.mrf.mxu0
        %3755 = vmatprep.mubr.bf16.mxu0 0
        %3756 = vmatmul.mubr.bf16.gmra.mxu0 %v3608
        %v3757 = vpop.f32.mrf.mxu0
        %v3758 = vadd.f32 0.0, %v3757
        %v3759 = vpop.f32.mrf.mxu0
        %v3760 = vpop.f32.mrf.mxu0
        %v3761 = vadd.f32 0.0, %v3760
        %v3762 = vpop.f32.mrf.mxu0
        %3763 = vmatprep.mubr.bf16.mxu0 0
        %3764 = vmatmul.mubr.bf16.gmra.mxu0 %v3611
        %v3765 = vpop.f32.mrf.mxu0
        %v3766 = vadd.f32 0.0, %v3765
        %v3767 = vpop.f32.mrf.mxu0
        %v3768 = vpop.f32.mrf.mxu0
        %v3769 = vadd.f32 0.0, %v3768
        %v3770 = vpop.f32.mrf.mxu0
        %3771 = vmatprep.mubr.bf16.mxu0 0
        %3772 = vmatmul.mubr.bf16.gmra.mxu0 %v3614
        %v3773 = vpop.f32.mrf.mxu0
        %v3774 = vadd.f32 0.0, %v3773
        %v3775 = vpop.f32.mrf.mxu0
        %v3776 = vpop.f32.mrf.mxu0
        %v3777 = vadd.f32 0.0, %v3776
        %v3778 = vpop.f32.mrf.mxu0
        %3779 = vdwg.mxu0
        %v3780 = vadd.f32 %v3418, %v3654
        %v3781 = vadd.f32 %v3419, %v3657
        %v3782 = vadd.f32 %v3420, %v3662
        %v3783 = vadd.f32 %v3421, %v3665
        %v3784 = vadd.f32 %v3422, %v3670
        %v3785 = vadd.f32 %v3423, %v3673
        %v3786 = vadd.f32 %v3424, %v3678
        %v3787 = vadd.f32 %v3425, %v3681
        %v3788 = vadd.f32 %v3426, %v3686
        %v3789 = vadd.f32 %v3427, %v3689
        %v3790 = vadd.f32 %v3428, %v3694
        %v3791 = vadd.f32 %v3429, %v3697
        %v3792 = vadd.f32 %v3430, %v3702
        %v3793 = vadd.f32 %v3431, %v3705
        %v3794 = vadd.f32 %v3432, %v3710
        %v3795 = vadd.f32 %v3433, %v3713
        %v3796 = vadd.f32 %v3434, %v3718
        %v3797 = vadd.f32 %v3435, %v3721
        %v3798 = vadd.f32 %v3436, %v3726
        %v3799 = vadd.f32 %v3437, %v3729
        %v3800 = vadd.f32 %v3438, %v3734
        %v3801 = vadd.f32 %v3439, %v3737
        %v3802 = vadd.f32 %v3440, %v3742
        %v3803 = vadd.f32 %v3441, %v3745
        %v3804 = vadd.f32 %v3442, %v3750
        %v3805 = vadd.f32 %v3443, %v3753
        %v3806 = vadd.f32 %v3444, %v3758
        %v3807 = vadd.f32 %v3445, %v3761
        %v3808 = vadd.f32 %v3446, %v3766
        %v3809 = vadd.f32 %v3447, %v3769
        %v3810 = vadd.f32 %v3448, %v3774
        %v3811 = vadd.f32 %v3449, %v3777
        %v3812 = vld [vmem:[%s3453] sm:$0xf]
        %v3813 = vld [vmem:[%s3453 + $0x4] sm:$0xf]
        %v3814 = vld [vmem:[%s3453 + $0x8] sm:$0xf]
        %v3815 = vld [vmem:[%s3453 + $0xc] sm:$0xf]
        %v3816 = vld [vmem:[%s3453 + $0x10] sm:$0x1]
        %v3817 = vld [vmem:[%s3453 + $0x14] sm:$0xf]
        %v3818 = vld [vmem:[%s3453 + $0x18] sm:$0xf]
        %v3819 = vld [vmem:[%s3453 + $0x1c] sm:$0xf]
        %v3820 = vld [vmem:[%s3453 + $0x20] sm:$0xf]
        %v3821 = vld [vmem:[%s3453 + $0x24] sm:$0x1]
        %v3822 = vld [vmem:[%s3453 + $0x28] sm:$0xf]
        %v3823 = vld [vmem:[%s3453 + $0x2c] sm:$0xf]
        %v3824 = vld [vmem:[%s3453 + $0x30] sm:$0xf]
        %v3825 = vld [vmem:[%s3453 + $0x34] sm:$0xf]
        %v3826 = vld [vmem:[%s3453 + $0x38] sm:$0x1]
        %v3827 = vld [vmem:[%s3453 + $0x3c] sm:$0xf]
        %v3828 = vld [vmem:[%s3453 + $0x40] sm:$0xf]
        %v3829 = vld [vmem:[%s3453 + $0x44] sm:$0xf]
        %v3830 = vld [vmem:[%s3453 + $0x48] sm:$0xf]
        %v3831 = vld [vmem:[%s3453 + $0x4c] sm:$0x1]
        %v3832 = vld [vmem:[%s3453 + $0x50] sm:$0xf]
        %v3833 = vld [vmem:[%s3453 + $0x54] sm:$0xf]
        %v3834 = vld [vmem:[%s3453 + $0x58] sm:$0xf]
        %v3835 = vld [vmem:[%s3453 + $0x5c] sm:$0xf]
        %v3836 = vld [vmem:[%s3453 + $0x60] sm:$0x1]
        %v3837 = vld [vmem:[%s3453 + $0x64] sm:$0xf]
        %v3838 = vld [vmem:[%s3453 + $0x68] sm:$0xf]
        %v3839 = vld [vmem:[%s3453 + $0x6c] sm:$0xf]
        %v3840 = vld [vmem:[%s3453 + $0x70] sm:$0xf]
        %v3841 = vld [vmem:[%s3453 + $0x74] sm:$0x1]
        %v3842 = vld [vmem:[%s3453 + $0x78] sm:$0xf]
        %v3843 = vld [vmem:[%s3453 + $0x7c] sm:$0xf]
        %v3844 = vld [vmem:[%s3453 + $0x80] sm:$0xf]
        %v3845 = vld [vmem:[%s3453 + $0x84] sm:$0xf]
        %v3846 = vld [vmem:[%s3453 + $0x88] sm:$0x1]
        %v3847 = vld [vmem:[%s3453 + $0x8c] sm:$0xf]
        %v3848 = vld [vmem:[%s3453 + $0x90] sm:$0xf]
        %v3849 = vld [vmem:[%s3453 + $0x94] sm:$0xf]
        %v3850 = vld [vmem:[%s3453 + $0x98] sm:$0xf]
        %v3851 = vld [vmem:[%s3453 + $0x9c] sm:$0x1]
        %v3853 = vshrl.u32 %v3812, 16
        %v3855 = vrot.slane %v3853, 4
        %v3856 = vshll.u32 %v3812, 16
        %v3858 = vrot.slane %v3856, 5
        %v3859 = vor.u32 %v3855, %v3858
        %v3860 = vrot.slane %v3859, 4
        %v3862 = vshll.u32 %v3813, 16
        %v3864 = vrot.slane %v3862, 5
        %v3865 = vsel %vm2113, %v3860, %v3864
        %v3866 = vshrl.u32 %v3813, 16
        %v3868 = vrot.slane %v3866, 4
        %v3869 = vor.u32 %v3868, %v3864
        %v3870 = vrot.slane %v3869, 4
        %v3872 = vshll.u32 %v3814, 16
        %v3874 = vrot.slane %v3872, 5
        %v3875 = vsel %vm2113, %v3870, %v3874
        %v3876 = vshrl.u32 %v3814, 16
        %v3878 = vrot.slane %v3876, 4
        %v3879 = vor.u32 %v3878, %v3874
        %v3880 = vrot.slane %v3879, 4
        %v3882 = vshll.u32 %v3815, 16
        %v3884 = vrot.slane %v3882, 5
        %v3885 = vsel %vm2113, %v3880, %v3884
        %v3886 = vshrl.u32 %v3815, 16
        %v3888 = vrot.slane %v3886, 4
        %v3889 = vor.u32 %v3888, %v3884
        %v3890 = vrot.slane %v3889, 4
        %v3892 = vshll.u32 %v3816, 16
        %v3894 = vrot.slane %v3892, 5
        %v3895 = vsel %vm2113, %v3890, %v3894
        %v3897 = vshrl.u32 %v3817, 16
        %v3899 = vrot.slane %v3897, 4
        %v3900 = vshll.u32 %v3817, 16
        %v3902 = vrot.slane %v3900, 5
        %v3903 = vor.u32 %v3899, %v3902
        %v3904 = vrot.slane %v3903, 4
        %v3906 = vshll.u32 %v3818, 16
        %v3908 = vrot.slane %v3906, 5
        %v3909 = vsel %vm2113, %v3904, %v3908
        %v3910 = vshrl.u32 %v3818, 16
        %v3912 = vrot.slane %v3910, 4
        %v3913 = vor.u32 %v3912, %v3908
        %v3914 = vrot.slane %v3913, 4
        %v3916 = vshll.u32 %v3819, 16
        %v3918 = vrot.slane %v3916, 5
        %v3919 = vsel %vm2113, %v3914, %v3918
        %v3920 = vshrl.u32 %v3819, 16
        %v3922 = vrot.slane %v3920, 4
        %v3923 = vor.u32 %v3922, %v3918
        %v3924 = vrot.slane %v3923, 4
        %v3926 = vshll.u32 %v3820, 16
        %v3928 = vrot.slane %v3926, 5
        %v3929 = vsel %vm2113, %v3924, %v3928
        %v3930 = vshrl.u32 %v3820, 16
        %v3932 = vrot.slane %v3930, 4
        %v3933 = vor.u32 %v3932, %v3928
        %v3934 = vrot.slane %v3933, 4
        %v3936 = vshll.u32 %v3821, 16
        %v3938 = vrot.slane %v3936, 5
        %v3939 = vsel %vm2113, %v3934, %v3938
        %v3941 = vshrl.u32 %v3822, 16
        %v3943 = vrot.slane %v3941, 4
        %v3944 = vshll.u32 %v3822, 16
        %v3946 = vrot.slane %v3944, 5
        %v3947 = vor.u32 %v3943, %v3946
        %v3948 = vrot.slane %v3947, 4
        %v3950 = vshll.u32 %v3823, 16
        %v3952 = vrot.slane %v3950, 5
        %v3953 = vsel %vm2113, %v3948, %v3952
        %v3954 = vshrl.u32 %v3823, 16
        %v3956 = vrot.slane %v3954, 4
        %v3957 = vor.u32 %v3956, %v3952
        %v3958 = vrot.slane %v3957, 4
        %v3960 = vshll.u32 %v3824, 16
        %v3962 = vrot.slane %v3960, 5
        %v3963 = vsel %vm2113, %v3958, %v3962
        %v3964 = vshrl.u32 %v3824, 16
        %v3966 = vrot.slane %v3964, 4
        %v3967 = vor.u32 %v3966, %v3962
        %v3968 = vrot.slane %v3967, 4
        %v3970 = vshll.u32 %v3825, 16
        %v3972 = vrot.slane %v3970, 5
        %v3973 = vsel %vm2113, %v3968, %v3972
        %v3974 = vshrl.u32 %v3825, 16
        %v3976 = vrot.slane %v3974, 4
        %v3977 = vor.u32 %v3976, %v3972
        %v3978 = vrot.slane %v3977, 4
        %v3980 = vshll.u32 %v3826, 16
        %v3982 = vrot.slane %v3980, 5
        %v3983 = vsel %vm2113, %v3978, %v3982
        %v3985 = vshrl.u32 %v3827, 16
        %v3987 = vrot.slane %v3985, 4
        %v3988 = vshll.u32 %v3827, 16
        %v3990 = vrot.slane %v3988, 5
        %v3991 = vor.u32 %v3987, %v3990
        %v3992 = vrot.slane %v3991, 4
        %v3994 = vshll.u32 %v3828, 16
        %v3996 = vrot.slane %v3994, 5
        %v3997 = vsel %vm2113, %v3992, %v3996
        %v3998 = vshrl.u32 %v3828, 16
        %v4000 = vrot.slane %v3998, 4
        %v4001 = vor.u32 %v4000, %v3996
        %v4002 = vrot.slane %v4001, 4
        %v4004 = vshll.u32 %v3829, 16
        %v4006 = vrot.slane %v4004, 5
        %v4007 = vsel %vm2113, %v4002, %v4006
        %v4008 = vshrl.u32 %v3829, 16
        %v4010 = vrot.slane %v4008, 4
        %v4011 = vor.u32 %v4010, %v4006
        %v4012 = vrot.slane %v4011, 4
        %v4014 = vshll.u32 %v3830, 16
        %v4016 = vrot.slane %v4014, 5
        %v4017 = vsel %vm2113, %v4012, %v4016
        %v4018 = vshrl.u32 %v3830, 16
        %v4020 = vrot.slane %v4018, 4
        %v4021 = vor.u32 %v4020, %v4016
        %v4022 = vrot.slane %v4021, 4
        %v4024 = vshll.u32 %v3831, 16
        %v4026 = vrot.slane %v4024, 5
        %v4027 = vsel %vm2113, %v4022, %v4026
        %v4029 = vshrl.u32 %v3832, 16
        %v4031 = vrot.slane %v4029, 4
        %v4032 = vshll.u32 %v3832, 16
        %v4034 = vrot.slane %v4032, 5
        %v4035 = vor.u32 %v4031, %v4034
        %v4036 = vrot.slane %v4035, 4
        %v4038 = vshll.u32 %v3833, 16
        %v4040 = vrot.slane %v4038, 5
        %v4041 = vsel %vm2113, %v4036, %v4040
        %v4042 = vshrl.u32 %v3833, 16
        %v4044 = vrot.slane %v4042, 4
        %v4045 = vor.u32 %v4044, %v4040
        %v4046 = vrot.slane %v4045, 4
        %v4048 = vshll.u32 %v3834, 16
        %v4050 = vrot.slane %v4048, 5
        %v4051 = vsel %vm2113, %v4046, %v4050
        %v4052 = vshrl.u32 %v3834, 16
        %v4054 = vrot.slane %v4052, 4
        %v4055 = vor.u32 %v4054, %v4050
        %v4056 = vrot.slane %v4055, 4
        %v4058 = vshll.u32 %v3835, 16
        %v4060 = vrot.slane %v4058, 5
        %v4061 = vsel %vm2113, %v4056, %v4060
        %v4062 = vshrl.u32 %v3835, 16
        %v4064 = vrot.slane %v4062, 4
        %v4065 = vor.u32 %v4064, %v4060
        %v4066 = vrot.slane %v4065, 4
        %v4068 = vshll.u32 %v3836, 16
        %v4070 = vrot.slane %v4068, 5
        %v4071 = vsel %vm2113, %v4066, %v4070
        %v4073 = vshrl.u32 %v3837, 16
        %v4075 = vrot.slane %v4073, 4
        %v4076 = vshll.u32 %v3837, 16
        %v4078 = vrot.slane %v4076, 5
        %v4079 = vor.u32 %v4075, %v4078
        %v4080 = vrot.slane %v4079, 4
        %v4082 = vshll.u32 %v3838, 16
        %v4084 = vrot.slane %v4082, 5
        %v4085 = vsel %vm2113, %v4080, %v4084
        %v4086 = vshrl.u32 %v3838, 16
        %v4088 = vrot.slane %v4086, 4
        %v4089 = vor.u32 %v4088, %v4084
        %v4090 = vrot.slane %v4089, 4
        %v4092 = vshll.u32 %v3839, 16
        %v4094 = vrot.slane %v4092, 5
        %v4095 = vsel %vm2113, %v4090, %v4094
        %v4096 = vshrl.u32 %v3839, 16
        %v4098 = vrot.slane %v4096, 4
        %v4099 = vor.u32 %v4098, %v4094
        %v4100 = vrot.slane %v4099, 4
        %v4102 = vshll.u32 %v3840, 16
        %v4104 = vrot.slane %v4102, 5
        %v4105 = vsel %vm2113, %v4100, %v4104
        %v4106 = vshrl.u32 %v3840, 16
        %v4108 = vrot.slane %v4106, 4
        %v4109 = vor.u32 %v4108, %v4104
        %v4110 = vrot.slane %v4109, 4
        %v4112 = vshll.u32 %v3841, 16
        %v4114 = vrot.slane %v4112, 5
        %v4115 = vsel %vm2113, %v4110, %v4114
        %v4117 = vshrl.u32 %v3842, 16
        %v4119 = vrot.slane %v4117, 4
        %v4120 = vshll.u32 %v3842, 16
        %v4122 = vrot.slane %v4120, 5
        %v4123 = vor.u32 %v4119, %v4122
        %v4124 = vrot.slane %v4123, 4
        %v4126 = vshll.u32 %v3843, 16
        %v4128 = vrot.slane %v4126, 5
        %v4129 = vsel %vm2113, %v4124, %v4128
        %v4130 = vshrl.u32 %v3843, 16
        %v4132 = vrot.slane %v4130, 4
        %v4133 = vor.u32 %v4132, %v4128
        %v4134 = vrot.slane %v4133, 4
        %v4136 = vshll.u32 %v3844, 16
        %v4138 = vrot.slane %v4136, 5
        %v4139 = vsel %vm2113, %v4134, %v4138
        %v4140 = vshrl.u32 %v3844, 16
        %v4142 = vrot.slane %v4140, 4
        %v4143 = vor.u32 %v4142, %v4138
        %v4144 = vrot.slane %v4143, 4
        %v4146 = vshll.u32 %v3845, 16
        %v4148 = vrot.slane %v4146, 5
        %v4149 = vsel %vm2113, %v4144, %v4148
        %v4150 = vshrl.u32 %v3845, 16
        %v4152 = vrot.slane %v4150, 4
        %v4153 = vor.u32 %v4152, %v4148
        %v4154 = vrot.slane %v4153, 4
        %v4156 = vshll.u32 %v3846, 16
        %v4158 = vrot.slane %v4156, 5
        %v4159 = vsel %vm2113, %v4154, %v4158
        %v4161 = vshrl.u32 %v3847, 16
        %v4163 = vrot.slane %v4161, 4
        %v4164 = vshll.u32 %v3847, 16
        %v4166 = vrot.slane %v4164, 5
        %v4167 = vor.u32 %v4163, %v4166
        %v4168 = vrot.slane %v4167, 4
        %v4170 = vshll.u32 %v3848, 16
        %v4172 = vrot.slane %v4170, 5
        %v4173 = vsel %vm2113, %v4168, %v4172
        %v4174 = vshrl.u32 %v3848, 16
        %v4176 = vrot.slane %v4174, 4
        %v4177 = vor.u32 %v4176, %v4172
        %v4178 = vrot.slane %v4177, 4
        %v4180 = vshll.u32 %v3849, 16
        %v4182 = vrot.slane %v4180, 5
        %v4183 = vsel %vm2113, %v4178, %v4182
        %v4184 = vshrl.u32 %v3849, 16
        %v4186 = vrot.slane %v4184, 4
        %v4187 = vor.u32 %v4186, %v4182
        %v4188 = vrot.slane %v4187, 4
        %v4190 = vshll.u32 %v3850, 16
        %v4192 = vrot.slane %v4190, 5
        %v4193 = vsel %vm2113, %v4188, %v4192
        %v4194 = vshrl.u32 %v3850, 16
        %v4196 = vrot.slane %v4194, 4
        %v4197 = vor.u32 %v4196, %v4192
        %v4198 = vrot.slane %v4197, 4
        %v4200 = vshll.u32 %v3851, 16
        %v4202 = vrot.slane %v4200, 5
        %v4203 = vsel %vm2113, %v4198, %v4202
        %s4204 = scalar_lea.vmem %s1, 8
        %v4205 = vld [vmem:[%s4204] sm:$0x3]
        %v4206 = vunpack.c.l.b16 %v3865
        %v4207 = vunpack.c.l.b16 %v3875
        %v4208 = vunpack.c.l.b16 %v3885
        %v4209 = vunpack.c.l.b16 %v3895
        %v4210 = vunpack.c.l.b16 %v3909
        %v4211 = vunpack.c.l.b16 %v3919
        %v4212 = vunpack.c.l.b16 %v3929
        %v4213 = vunpack.c.l.b16 %v3939
        %v4214 = vunpack.c.l.b16 %v3953
        %v4215 = vunpack.c.l.b16 %v3963
        %v4216 = vunpack.c.l.b16 %v3973
        %v4217 = vunpack.c.l.b16 %v3983
        %v4218 = vunpack.c.l.b16 %v3997
        %v4219 = vunpack.c.l.b16 %v4007
        %v4220 = vunpack.c.l.b16 %v4017
        %v4221 = vunpack.c.l.b16 %v4027
        %v4222 = vunpack.c.l.b16 %v4041
        %v4223 = vunpack.c.l.b16 %v4051
        %v4224 = vunpack.c.l.b16 %v4061
        %v4225 = vunpack.c.l.b16 %v4071
        %v4226 = vunpack.c.l.b16 %v4085
        %v4227 = vunpack.c.l.b16 %v4095
        %v4228 = vunpack.c.l.b16 %v4105
        %v4229 = vunpack.c.l.b16 %v4115
        %v4230 = vunpack.c.l.b16 %v4129
        %v4231 = vunpack.c.l.b16 %v4139
        %v4232 = vunpack.c.l.b16 %v4149
        %v4233 = vunpack.c.l.b16 %v4159
        %v4234 = vunpack.c.l.b16 %v4173
        %v4235 = vunpack.c.l.b16 %v4183
        %v4236 = vunpack.c.l.b16 %v4193
        %v4237 = vunpack.c.l.b16 %v4203
        %v4238 = vpack.c.b16 %v4207, %v4206
        %v4239 = vpack.c.b16 %v4209, %v4208
        %v4240 = vpack.c.b16 %v4211, %v4210
        %v4241 = vpack.c.b16 %v4213, %v4212
        %v4242 = vpack.c.b16 %v4215, %v4214
        %v4243 = vpack.c.b16 %v4217, %v4216
        %v4244 = vpack.c.b16 %v4219, %v4218
        %v4245 = vpack.c.b16 %v4221, %v4220
        %v4246 = vpack.c.b16 %v4223, %v4222
        %v4247 = vpack.c.b16 %v4225, %v4224
        %v4248 = vpack.c.b16 %v4227, %v4226
        %v4249 = vpack.c.b16 %v4229, %v4228
        %v4250 = vpack.c.b16 %v4231, %v4230
        %v4251 = vpack.c.b16 %v4233, %v4232
        %v4252 = vpack.c.b16 %v4235, %v4234
        %v4253 = vpack.c.b16 %v4237, %v4236
        %v4255 = vsel %vm2516, %v4238, 0
        %v4258 = vsel %vm2516, %v4239, 0
        %v4261 = vsel %vm2516, %v4240, 0
        %v4264 = vsel %vm2516, %v4241, 0
        %v4267 = vsel %vm2516, %v4242, 0
        %v4270 = vsel %vm2516, %v4243, 0
        %v4273 = vsel %vm2516, %v4244, 0
        %v4276 = vsel %vm2516, %v4245, 0
        %v4279 = vsel %vm2516, %v4246, 0
        %v4282 = vsel %vm2516, %v4247, 0
        %v4285 = vsel %vm2516, %v4248, 0
        %v4288 = vsel %vm2516, %v4249, 0
        %v4291 = vsel %vm2516, %v4250, 0
        %v4294 = vsel %vm2516, %v4251, 0
        %v4297 = vsel %vm2516, %v4252, 0
        %v4300 = vsel %vm2516, %v4253, 0
        %v4303 = vand.u32 %v4205, %v2568
        %4305 = vmatprep.subr.bf16.mxu0 0
        %4306 = vmatpush1.bf16.msra.mxu0 0
        %4307 = vmatprep.subr.bf16.mxu0 0
        %4308 = vmatpush1.bf16.msra.mxu0 0
        %4309 = vmatprep.subr.bf16.mxu0 0
        %4310 = vmatpush1.bf16.msra.mxu0 0
        %4311 = vmatprep.subr.bf16.mxu0 0
        %4312 = vmatpush1.bf16.msra.mxu0 0
        %4313 = vmatprep.subr.bf16.mxu0 0
        %4314 = vmatpush1.bf16.msra.mxu0 0
        %4315 = vmatprep.subr.bf16.mxu0 0
        %4316 = vmatpush1.bf16.msra.mxu0 0
        %4317 = vmatprep.subr.bf16.mxu0 0
        %4318 = vmatpush1.bf16.msra.mxu0 0
        %4319 = vmatprep.subr.bf16.mxu0 0
        %4320 = vmatpush1.bf16.msra.mxu0 %v4303
        %4321 = vmatprep.subr.bf16.mxu0 0
        %4322 = vmatpush2.bf16.msra.mxu0 0
        %4323 = vmatprep.subr.bf16.mxu0 0
        %4324 = vmatpush2.bf16.msra.mxu0 0
        %4325 = vmatprep.subr.bf16.mxu0 0
        %4326 = vmatpush2.bf16.msra.mxu0 0
        %4327 = vmatprep.subr.bf16.mxu0 0
        %4328 = vmatpush2.bf16.msra.mxu0 0
        %4329 = vmatprep.subr.bf16.mxu0 0
        %4330 = vmatpush2.bf16.msra.mxu0 0
        %4331 = vmatprep.subr.bf16.mxu0 0
        %4332 = vmatpush2.bf16.msra.mxu0 0
        %4333 = vmatprep.subr.bf16.mxu0 0
        %4334 = vmatpush2.bf16.msra.mxu0 0
        %4335 = vmatprep.subr.bf16.mxu0 0
        %4336 = vmatpush2.bf16.msra.mxu0 0
        %4337 = vmatprep.mubr.bf16.mxu0 0
        %4338 = vmatmul.mubr.bf16.gmra.mxu0 %v4255
        %v4339 = vpop.f32.mrf.mxu0
        %v4340 = vadd.f32 0.0, %v4339
        %v4341 = vpop.f32.mrf.mxu0
        %v4342 = vpop.f32.mrf.mxu0
        %v4343 = vadd.f32 0.0, %v4342
        %v4344 = vpop.f32.mrf.mxu0
        %4345 = vmatprep.mubr.bf16.mxu0 0
        %4346 = vmatmul.mubr.bf16.gmra.mxu0 %v4258
        %v4347 = vpop.f32.mrf.mxu0
        %v4348 = vadd.f32 0.0, %v4347
        %v4349 = vpop.f32.mrf.mxu0
        %v4350 = vpop.f32.mrf.mxu0
        %v4351 = vadd.f32 0.0, %v4350
        %v4352 = vpop.f32.mrf.mxu0
        %4353 = vmatprep.mubr.bf16.mxu0 0
        %4354 = vmatmul.mubr.bf16.gmra.mxu0 %v4261
        %v4355 = vpop.f32.mrf.mxu0
        %v4356 = vadd.f32 0.0, %v4355
        %v4357 = vpop.f32.mrf.mxu0
        %v4358 = vpop.f32.mrf.mxu0
        %v4359 = vadd.f32 0.0, %v4358
        %v4360 = vpop.f32.mrf.mxu0
        %4361 = vmatprep.mubr.bf16.mxu0 0
        %4362 = vmatmul.mubr.bf16.gmra.mxu0 %v4264
        %v4363 = vpop.f32.mrf.mxu0
        %v4364 = vadd.f32 0.0, %v4363
        %v4365 = vpop.f32.mrf.mxu0
        %v4366 = vpop.f32.mrf.mxu0
        %v4367 = vadd.f32 0.0, %v4366
        %v4368 = vpop.f32.mrf.mxu0
        %4369 = vmatprep.mubr.bf16.mxu0 0
        %4370 = vmatmul.mubr.bf16.gmra.mxu0 %v4267
        %v4371 = vpop.f32.mrf.mxu0
        %v4372 = vadd.f32 0.0, %v4371
        %v4373 = vpop.f32.mrf.mxu0
        %v4374 = vpop.f32.mrf.mxu0
        %v4375 = vadd.f32 0.0, %v4374
        %v4376 = vpop.f32.mrf.mxu0
        %4377 = vmatprep.mubr.bf16.mxu0 0
        %4378 = vmatmul.mubr.bf16.gmra.mxu0 %v4270
        %v4379 = vpop.f32.mrf.mxu0
        %v4380 = vadd.f32 0.0, %v4379
        %v4381 = vpop.f32.mrf.mxu0
        %v4382 = vpop.f32.mrf.mxu0
        %v4383 = vadd.f32 0.0, %v4382
        %v4384 = vpop.f32.mrf.mxu0
        %4385 = vmatprep.mubr.bf16.mxu0 0
        %4386 = vmatmul.mubr.bf16.gmra.mxu0 %v4273
        %v4387 = vpop.f32.mrf.mxu0
        %v4388 = vadd.f32 0.0, %v4387
        %v4389 = vpop.f32.mrf.mxu0
        %v4390 = vpop.f32.mrf.mxu0
        %v4391 = vadd.f32 0.0, %v4390
        %v4392 = vpop.f32.mrf.mxu0
        %4393 = vmatprep.mubr.bf16.mxu0 0
        %4394 = vmatmul.mubr.bf16.gmra.mxu0 %v4276
        %v4395 = vpop.f32.mrf.mxu0
        %v4396 = vadd.f32 0.0, %v4395
        %v4397 = vpop.f32.mrf.mxu0
        %v4398 = vpop.f32.mrf.mxu0
        %v4399 = vadd.f32 0.0, %v4398
        %v4400 = vpop.f32.mrf.mxu0
        %4401 = vmatprep.mubr.bf16.mxu0 0
        %4402 = vmatmul.mubr.bf16.gmra.mxu0 %v4279
        %v4403 = vpop.f32.mrf.mxu0
        %v4404 = vadd.f32 0.0, %v4403
        %v4405 = vpop.f32.mrf.mxu0
        %v4406 = vpop.f32.mrf.mxu0
        %v4407 = vadd.f32 0.0, %v4406
        %v4408 = vpop.f32.mrf.mxu0
        %4409 = vmatprep.mubr.bf16.mxu0 0
        %4410 = vmatmul.mubr.bf16.gmra.mxu0 %v4282
        %v4411 = vpop.f32.mrf.mxu0
        %v4412 = vadd.f32 0.0, %v4411
        %v4413 = vpop.f32.mrf.mxu0
        %v4414 = vpop.f32.mrf.mxu0
        %v4415 = vadd.f32 0.0, %v4414
        %v4416 = vpop.f32.mrf.mxu0
        %4417 = vmatprep.mubr.bf16.mxu0 0
        %4418 = vmatmul.mubr.bf16.gmra.mxu0 %v4285
        %v4419 = vpop.f32.mrf.mxu0
        %v4420 = vadd.f32 0.0, %v4419
        %v4421 = vpop.f32.mrf.mxu0
        %v4422 = vpop.f32.mrf.mxu0
        %v4423 = vadd.f32 0.0, %v4422
        %v4424 = vpop.f32.mrf.mxu0
        %4425 = vmatprep.mubr.bf16.mxu0 0
        %4426 = vmatmul.mubr.bf16.gmra.mxu0 %v4288
        %v4427 = vpop.f32.mrf.mxu0
        %v4428 = vadd.f32 0.0, %v4427
        %v4429 = vpop.f32.mrf.mxu0
        %v4430 = vpop.f32.mrf.mxu0
        %v4431 = vadd.f32 0.0, %v4430
        %v4432 = vpop.f32.mrf.mxu0
        %4433 = vmatprep.mubr.bf16.mxu0 0
        %4434 = vmatmul.mubr.bf16.gmra.mxu0 %v4291
        %v4435 = vpop.f32.mrf.mxu0
        %v4436 = vadd.f32 0.0, %v4435
        %v4437 = vpop.f32.mrf.mxu0
        %v4438 = vpop.f32.mrf.mxu0
        %v4439 = vadd.f32 0.0, %v4438
        %v4440 = vpop.f32.mrf.mxu0
        %4441 = vmatprep.mubr.bf16.mxu0 0
        %4442 = vmatmul.mubr.bf16.gmra.mxu0 %v4294
        %v4443 = vpop.f32.mrf.mxu0
        %v4444 = vadd.f32 0.0, %v4443
        %v4445 = vpop.f32.mrf.mxu0
        %v4446 = vpop.f32.mrf.mxu0
        %v4447 = vadd.f32 0.0, %v4446
        %v4448 = vpop.f32.mrf.mxu0
        %4449 = vmatprep.mubr.bf16.mxu0 0
        %4450 = vmatmul.mubr.bf16.gmra.mxu0 %v4297
        %v4451 = vpop.f32.mrf.mxu0
        %v4452 = vadd.f32 0.0, %v4451
        %v4453 = vpop.f32.mrf.mxu0
        %v4454 = vpop.f32.mrf.mxu0
        %v4455 = vadd.f32 0.0, %v4454
        %v4456 = vpop.f32.mrf.mxu0
        %4457 = vmatprep.mubr.bf16.mxu0 0
        %4458 = vmatmul.mubr.bf16.gmra.mxu0 %v4300
        %v4459 = vpop.f32.mrf.mxu0
        %v4460 = vadd.f32 0.0, %v4459
        %v4461 = vpop.f32.mrf.mxu0
        %v4462 = vpop.f32.mrf.mxu0
        %v4463 = vadd.f32 0.0, %v4462
        %v4464 = vpop.f32.mrf.mxu0
        %4465 = vdwg.mxu0
        %v4466 = vadd.f32 %v3780, %v4340
        %v4467 = vadd.f32 %v3781, %v4343
        %v4468 = vadd.f32 %v3782, %v4348
        %v4469 = vadd.f32 %v3783, %v4351
        %v4470 = vadd.f32 %v3784, %v4356
        %v4471 = vadd.f32 %v3785, %v4359
        %v4472 = vadd.f32 %v3786, %v4364
        %v4473 = vadd.f32 %v3787, %v4367
        %v4474 = vadd.f32 %v3788, %v4372
        %v4475 = vadd.f32 %v3789, %v4375
        %v4476 = vadd.f32 %v3790, %v4380
        %v4477 = vadd.f32 %v3791, %v4383
        %v4478 = vadd.f32 %v3792, %v4388
        %v4479 = vadd.f32 %v3793, %v4391
        %v4480 = vadd.f32 %v3794, %v4396
        %v4481 = vadd.f32 %v3795, %v4399
        %v4482 = vadd.f32 %v3796, %v4404
        %v4483 = vadd.f32 %v3797, %v4407
        %v4484 = vadd.f32 %v3798, %v4412
        %v4485 = vadd.f32 %v3799, %v4415
        %v4486 = vadd.f32 %v3800, %v4420
        %v4487 = vadd.f32 %v3801, %v4423
        %v4488 = vadd.f32 %v3802, %v4428
        %v4489 = vadd.f32 %v3803, %v4431
        %v4490 = vadd.f32 %v3804, %v4436
        %v4491 = vadd.f32 %v3805, %v4439
        %v4492 = vadd.f32 %v3806, %v4444
        %v4493 = vadd.f32 %v3807, %v4447
        %v4494 = vadd.f32 %v3808, %v4452
        %v4495 = vadd.f32 %v3809, %v4455
        %v4496 = vadd.f32 %v3810, %v4460
        %v4497 = vadd.f32 %v3811, %v4463
        %v4498 = vld [vmem:[%s3453] sm:$0xe]
        %v4499 = vld [vmem:[%s3453 + $0x14] sm:$0xe]
        %v4500 = vld [vmem:[%s3453 + $0x28] sm:$0xe]
        %v4501 = vld [vmem:[%s3453 + $0x3c] sm:$0xe]
        %v4502 = vld [vmem:[%s3453 + $0x50] sm:$0xe]
        %v4503 = vld [vmem:[%s3453 + $0x64] sm:$0xe]
        %v4504 = vld [vmem:[%s3453 + $0x78] sm:$0xe]
        %v4505 = vld [vmem:[%s3453 + $0x8c] sm:$0xe]
        %v4546 = vrot.slane %v4498, 5
        %v4547 = vrot.slane %v4546, 4
        %v4548 = vrot.slane %v3813, 5
        %v4549 = vsel %vm3051, %v4547, %v4548
        %v4550 = vrot.slane %v4548, 4
        %v4551 = vrot.slane %v3814, 5
        %v4552 = vsel %vm3051, %v4550, %v4551
        %v4553 = vrot.slane %v4551, 4
        %v4554 = vrot.slane %v3815, 5
        %v4555 = vsel %vm3051, %v4553, %v4554
        %v4556 = vrot.slane %v4554, 4
        %v4557 = vrot.slane %v3816, 5
        %v4558 = vsel %vm3051, %v4556, %v4557
        %v4559 = vrot.slane %v4499, 5
        %v4560 = vrot.slane %v4559, 4
        %v4561 = vrot.slane %v3818, 5
        %v4562 = vsel %vm3051, %v4560, %v4561
        %v4563 = vrot.slane %v4561, 4
        %v4564 = vrot.slane %v3819, 5
        %v4565 = vsel %vm3051, %v4563, %v4564
        %v4566 = vrot.slane %v4564, 4
        %v4567 = vrot.slane %v3820, 5
        %v4568 = vsel %vm3051, %v4566, %v4567
        %v4569 = vrot.slane %v4567, 4
        %v4570 = vrot.slane %v3821, 5
        %v4571 = vsel %vm3051, %v4569, %v4570
        %v4572 = vrot.slane %v4500, 5
        %v4573 = vrot.slane %v4572, 4
        %v4574 = vrot.slane %v3823, 5
        %v4575 = vsel %vm3051, %v4573, %v4574
        %v4576 = vrot.slane %v4574, 4
        %v4577 = vrot.slane %v3824, 5
        %v4578 = vsel %vm3051, %v4576, %v4577
        %v4579 = vrot.slane %v4577, 4
        %v4580 = vrot.slane %v3825, 5
        %v4581 = vsel %vm3051, %v4579, %v4580
        %v4582 = vrot.slane %v4580, 4
        %v4583 = vrot.slane %v3826, 5
        %v4584 = vsel %vm3051, %v4582, %v4583
        %v4585 = vrot.slane %v4501, 5
        %v4586 = vrot.slane %v4585, 4
        %v4587 = vrot.slane %v3828, 5
        %v4588 = vsel %vm3051, %v4586, %v4587
        %v4589 = vrot.slane %v4587, 4
        %v4590 = vrot.slane %v3829, 5
        %v4591 = vsel %vm3051, %v4589, %v4590
        %v4592 = vrot.slane %v4590, 4
        %v4593 = vrot.slane %v3830, 5
        %v4594 = vsel %vm3051, %v4592, %v4593
        %v4595 = vrot.slane %v4593, 4
        %v4596 = vrot.slane %v3831, 5
        %v4597 = vsel %vm3051, %v4595, %v4596
        %v4598 = vrot.slane %v4502, 5
        %v4599 = vrot.slane %v4598, 4
        %v4600 = vrot.slane %v3833, 5
        %v4601 = vsel %vm3051, %v4599, %v4600
        %v4602 = vrot.slane %v4600, 4
        %v4603 = vrot.slane %v3834, 5
        %v4604 = vsel %vm3051, %v4602, %v4603
        %v4605 = vrot.slane %v4603, 4
        %v4606 = vrot.slane %v3835, 5
        %v4607 = vsel %vm3051, %v4605, %v4606
        %v4608 = vrot.slane %v4606, 4
        %v4609 = vrot.slane %v3836, 5
        %v4610 = vsel %vm3051, %v4608, %v4609
        %v4611 = vrot.slane %v4503, 5
        %v4612 = vrot.slane %v4611, 4
        %v4613 = vrot.slane %v3838, 5
        %v4614 = vsel %vm3051, %v4612, %v4613
        %v4615 = vrot.slane %v4613, 4
        %v4616 = vrot.slane %v3839, 5
        %v4617 = vsel %vm3051, %v4615, %v4616
        %v4618 = vrot.slane %v4616, 4
        %v4619 = vrot.slane %v3840, 5
        %v4620 = vsel %vm3051, %v4618, %v4619
        %v4621 = vrot.slane %v4619, 4
        %v4622 = vrot.slane %v3841, 5
        %v4623 = vsel %vm3051, %v4621, %v4622
        %v4624 = vrot.slane %v4504, 5
        %v4625 = vrot.slane %v4624, 4
        %v4626 = vrot.slane %v3843, 5
        %v4627 = vsel %vm3051, %v4625, %v4626
        %v4628 = vrot.slane %v4626, 4
        %v4629 = vrot.slane %v3844, 5
        %v4630 = vsel %vm3051, %v4628, %v4629
        %v4631 = vrot.slane %v4629, 4
        %v4632 = vrot.slane %v3845, 5
        %v4633 = vsel %vm3051, %v4631, %v4632
        %v4634 = vrot.slane %v4632, 4
        %v4635 = vrot.slane %v3846, 5
        %v4636 = vsel %vm3051, %v4634, %v4635
        %v4637 = vrot.slane %v4505, 5
        %v4638 = vrot.slane %v4637, 4
        %v4639 = vrot.slane %v3848, 5
        %v4640 = vsel %vm3051, %v4638, %v4639
        %v4641 = vrot.slane %v4639, 4
        %v4642 = vrot.slane %v3849, 5
        %v4643 = vsel %vm3051, %v4641, %v4642
        %v4644 = vrot.slane %v4642, 4
        %v4645 = vrot.slane %v3850, 5
        %v4646 = vsel %vm3051, %v4644, %v4645
        %v4647 = vrot.slane %v4645, 4
        %v4648 = vrot.slane %v3851, 5
        %v4649 = vsel %vm3051, %v4647, %v4648
        %s4650 = scalar_lea.vmem %s1, 10
        %v4651 = vld [vmem:[%s4650] sm:$0x3]
        %v4652 = vunpack.c.l.b16 %v4549
        %v4653 = vunpack.c.l.b16 %v4552
        %v4654 = vunpack.c.l.b16 %v4555
        %v4655 = vunpack.c.l.b16 %v4558
        %v4656 = vunpack.c.l.b16 %v4562
        %v4657 = vunpack.c.l.b16 %v4565
        %v4658 = vunpack.c.l.b16 %v4568
        %v4659 = vunpack.c.l.b16 %v4571
        %v4660 = vunpack.c.l.b16 %v4575
        %v4661 = vunpack.c.l.b16 %v4578
        %v4662 = vunpack.c.l.b16 %v4581
        %v4663 = vunpack.c.l.b16 %v4584
        %v4664 = vunpack.c.l.b16 %v4588
        %v4665 = vunpack.c.l.b16 %v4591
        %v4666 = vunpack.c.l.b16 %v4594
        %v4667 = vunpack.c.l.b16 %v4597
        %v4668 = vunpack.c.l.b16 %v4601
        %v4669 = vunpack.c.l.b16 %v4604
        %v4670 = vunpack.c.l.b16 %v4607
        %v4671 = vunpack.c.l.b16 %v4610
        %v4672 = vunpack.c.l.b16 %v4614
        %v4673 = vunpack.c.l.b16 %v4617
        %v4674 = vunpack.c.l.b16 %v4620
        %v4675 = vunpack.c.l.b16 %v4623
        %v4676 = vunpack.c.l.b16 %v4627
        %v4677 = vunpack.c.l.b16 %v4630
        %v4678 = vunpack.c.l.b16 %v4633
        %v4679 = vunpack.c.l.b16 %v4636
        %v4680 = vunpack.c.l.b16 %v4640
        %v4681 = vunpack.c.l.b16 %v4643
        %v4682 = vunpack.c.l.b16 %v4646
        %v4683 = vunpack.c.l.b16 %v4649
        %v4684 = vpack.c.b16 %v4653, %v4652
        %v4685 = vpack.c.b16 %v4655, %v4654
        %v4686 = vpack.c.b16 %v4657, %v4656
        %v4687 = vpack.c.b16 %v4659, %v4658
        %v4688 = vpack.c.b16 %v4661, %v4660
        %v4689 = vpack.c.b16 %v4663, %v4662
        %v4690 = vpack.c.b16 %v4665, %v4664
        %v4691 = vpack.c.b16 %v4667, %v4666
        %v4692 = vpack.c.b16 %v4669, %v4668
        %v4693 = vpack.c.b16 %v4671, %v4670
        %v4694 = vpack.c.b16 %v4673, %v4672
        %v4695 = vpack.c.b16 %v4675, %v4674
        %v4696 = vpack.c.b16 %v4677, %v4676
        %v4697 = vpack.c.b16 %v4679, %v4678
        %v4698 = vpack.c.b16 %v4681, %v4680
        %v4699 = vpack.c.b16 %v4683, %v4682
        %v4701 = vsel %vm2516, %v4684, 0
        %v4704 = vsel %vm2516, %v4685, 0
        %v4707 = vsel %vm2516, %v4686, 0
        %v4710 = vsel %vm2516, %v4687, 0
        %v4713 = vsel %vm2516, %v4688, 0
        %v4716 = vsel %vm2516, %v4689, 0
        %v4719 = vsel %vm2516, %v4690, 0
        %v4722 = vsel %vm2516, %v4691, 0
        %v4725 = vsel %vm2516, %v4692, 0
        %v4728 = vsel %vm2516, %v4693, 0
        %v4731 = vsel %vm2516, %v4694, 0
        %v4734 = vsel %vm2516, %v4695, 0
        %v4737 = vsel %vm2516, %v4696, 0
        %v4740 = vsel %vm2516, %v4697, 0
        %v4743 = vsel %vm2516, %v4698, 0
        %v4746 = vsel %vm2516, %v4699, 0
        %v4749 = vand.u32 %v4651, %v2568
        %4751 = vmatprep.subr.bf16.mxu0 0
        %4752 = vmatpush1.bf16.msra.mxu0 0
        %4753 = vmatprep.subr.bf16.mxu0 0
        %4754 = vmatpush1.bf16.msra.mxu0 0
        %4755 = vmatprep.subr.bf16.mxu0 0
        %4756 = vmatpush1.bf16.msra.mxu0 0
        %4757 = vmatprep.subr.bf16.mxu0 0
        %4758 = vmatpush1.bf16.msra.mxu0 0
        %4759 = vmatprep.subr.bf16.mxu0 0
        %4760 = vmatpush1.bf16.msra.mxu0 0
        %4761 = vmatprep.subr.bf16.mxu0 0
        %4762 = vmatpush1.bf16.msra.mxu0 0
        %4763 = vmatprep.subr.bf16.mxu0 0
        %4764 = vmatpush1.bf16.msra.mxu0 0
        %4765 = vmatprep.subr.bf16.mxu0 0
        %4766 = vmatpush1.bf16.msra.mxu0 %v4749
        %4767 = vmatprep.subr.bf16.mxu0 0
        %4768 = vmatpush2.bf16.msra.mxu0 0
        %4769 = vmatprep.subr.bf16.mxu0 0
        %4770 = vmatpush2.bf16.msra.mxu0 0
        %4771 = vmatprep.subr.bf16.mxu0 0
        %4772 = vmatpush2.bf16.msra.mxu0 0
        %4773 = vmatprep.subr.bf16.mxu0 0
        %4774 = vmatpush2.bf16.msra.mxu0 0
        %4775 = vmatprep.subr.bf16.mxu0 0
        %4776 = vmatpush2.bf16.msra.mxu0 0
        %4777 = vmatprep.subr.bf16.mxu0 0
        %4778 = vmatpush2.bf16.msra.mxu0 0
        %4779 = vmatprep.subr.bf16.mxu0 0
        %4780 = vmatpush2.bf16.msra.mxu0 0
        %4781 = vmatprep.subr.bf16.mxu0 0
        %4782 = vmatpush2.bf16.msra.mxu0 0
        %4783 = vmatprep.mubr.bf16.mxu0 0
        %4784 = vmatmul.mubr.bf16.gmra.mxu0 %v4701
        %v4785 = vpop.f32.mrf.mxu0
        %v4786 = vadd.f32 0.0, %v4785
        %v4787 = vpop.f32.mrf.mxu0
        %v4788 = vpop.f32.mrf.mxu0
        %v4789 = vadd.f32 0.0, %v4788
        %v4790 = vpop.f32.mrf.mxu0
        %4791 = vmatprep.mubr.bf16.mxu0 0
        %4792 = vmatmul.mubr.bf16.gmra.mxu0 %v4704
        %v4793 = vpop.f32.mrf.mxu0
        %v4794 = vadd.f32 0.0, %v4793
        %v4795 = vpop.f32.mrf.mxu0
        %v4796 = vpop.f32.mrf.mxu0
        %v4797 = vadd.f32 0.0, %v4796
        %v4798 = vpop.f32.mrf.mxu0
        %4799 = vmatprep.mubr.bf16.mxu0 0
        %4800 = vmatmul.mubr.bf16.gmra.mxu0 %v4707
        %v4801 = vpop.f32.mrf.mxu0
        %v4802 = vadd.f32 0.0, %v4801
        %v4803 = vpop.f32.mrf.mxu0
        %v4804 = vpop.f32.mrf.mxu0
        %v4805 = vadd.f32 0.0, %v4804
        %v4806 = vpop.f32.mrf.mxu0
        %4807 = vmatprep.mubr.bf16.mxu0 0
        %4808 = vmatmul.mubr.bf16.gmra.mxu0 %v4710
        %v4809 = vpop.f32.mrf.mxu0
        %v4810 = vadd.f32 0.0, %v4809
        %v4811 = vpop.f32.mrf.mxu0
        %v4812 = vpop.f32.mrf.mxu0
        %v4813 = vadd.f32 0.0, %v4812
        %v4814 = vpop.f32.mrf.mxu0
        %4815 = vmatprep.mubr.bf16.mxu0 0
        %4816 = vmatmul.mubr.bf16.gmra.mxu0 %v4713
        %v4817 = vpop.f32.mrf.mxu0
        %v4818 = vadd.f32 0.0, %v4817
        %v4819 = vpop.f32.mrf.mxu0
        %v4820 = vpop.f32.mrf.mxu0
        %v4821 = vadd.f32 0.0, %v4820
        %v4822 = vpop.f32.mrf.mxu0
        %4823 = vmatprep.mubr.bf16.mxu0 0
        %4824 = vmatmul.mubr.bf16.gmra.mxu0 %v4716
        %v4825 = vpop.f32.mrf.mxu0
        %v4826 = vadd.f32 0.0, %v4825
        %v4827 = vpop.f32.mrf.mxu0
        %v4828 = vpop.f32.mrf.mxu0
        %v4829 = vadd.f32 0.0, %v4828
        %v4830 = vpop.f32.mrf.mxu0
        %4831 = vmatprep.mubr.bf16.mxu0 0
        %4832 = vmatmul.mubr.bf16.gmra.mxu0 %v4719
        %v4833 = vpop.f32.mrf.mxu0
        %v4834 = vadd.f32 0.0, %v4833
        %v4835 = vpop.f32.mrf.mxu0
        %v4836 = vpop.f32.mrf.mxu0
        %v4837 = vadd.f32 0.0, %v4836
        %v4838 = vpop.f32.mrf.mxu0
        %4839 = vmatprep.mubr.bf16.mxu0 0
        %4840 = vmatmul.mubr.bf16.gmra.mxu0 %v4722
        %v4841 = vpop.f32.mrf.mxu0
        %v4842 = vadd.f32 0.0, %v4841
        %v4843 = vpop.f32.mrf.mxu0
        %v4844 = vpop.f32.mrf.mxu0
        %v4845 = vadd.f32 0.0, %v4844
        %v4846 = vpop.f32.mrf.mxu0
        %4847 = vmatprep.mubr.bf16.mxu0 0
        %4848 = vmatmul.mubr.bf16.gmra.mxu0 %v4725
        %v4849 = vpop.f32.mrf.mxu0
        %v4850 = vadd.f32 0.0, %v4849
        %v4851 = vpop.f32.mrf.mxu0
        %v4852 = vpop.f32.mrf.mxu0
        %v4853 = vadd.f32 0.0, %v4852
        %v4854 = vpop.f32.mrf.mxu0
        %4855 = vmatprep.mubr.bf16.mxu0 0
        %4856 = vmatmul.mubr.bf16.gmra.mxu0 %v4728
        %v4857 = vpop.f32.mrf.mxu0
        %v4858 = vadd.f32 0.0, %v4857
        %v4859 = vpop.f32.mrf.mxu0
        %v4860 = vpop.f32.mrf.mxu0
        %v4861 = vadd.f32 0.0, %v4860
        %v4862 = vpop.f32.mrf.mxu0
        %4863 = vmatprep.mubr.bf16.mxu0 0
        %4864 = vmatmul.mubr.bf16.gmra.mxu0 %v4731
        %v4865 = vpop.f32.mrf.mxu0
        %v4866 = vadd.f32 0.0, %v4865
        %v4867 = vpop.f32.mrf.mxu0
        %v4868 = vpop.f32.mrf.mxu0
        %v4869 = vadd.f32 0.0, %v4868
        %v4870 = vpop.f32.mrf.mxu0
        %4871 = vmatprep.mubr.bf16.mxu0 0
        %4872 = vmatmul.mubr.bf16.gmra.mxu0 %v4734
        %v4873 = vpop.f32.mrf.mxu0
        %v4874 = vadd.f32 0.0, %v4873
        %v4875 = vpop.f32.mrf.mxu0
        %v4876 = vpop.f32.mrf.mxu0
        %v4877 = vadd.f32 0.0, %v4876
        %v4878 = vpop.f32.mrf.mxu0
        %4879 = vmatprep.mubr.bf16.mxu0 0
        %4880 = vmatmul.mubr.bf16.gmra.mxu0 %v4737
        %v4881 = vpop.f32.mrf.mxu0
        %v4882 = vadd.f32 0.0, %v4881
        %v4883 = vpop.f32.mrf.mxu0
        %v4884 = vpop.f32.mrf.mxu0
        %v4885 = vadd.f32 0.0, %v4884
        %v4886 = vpop.f32.mrf.mxu0
        %4887 = vmatprep.mubr.bf16.mxu0 0
        %4888 = vmatmul.mubr.bf16.gmra.mxu0 %v4740
        %v4889 = vpop.f32.mrf.mxu0
        %v4890 = vadd.f32 0.0, %v4889
        %v4891 = vpop.f32.mrf.mxu0
        %v4892 = vpop.f32.mrf.mxu0
        %v4893 = vadd.f32 0.0, %v4892
        %v4894 = vpop.f32.mrf.mxu0
        %4895 = vmatprep.mubr.bf16.mxu0 0
        %4896 = vmatmul.mubr.bf16.gmra.mxu0 %v4743
        %v4897 = vpop.f32.mrf.mxu0
        %v4898 = vadd.f32 0.0, %v4897
        %v4899 = vpop.f32.mrf.mxu0
        %v4900 = vpop.f32.mrf.mxu0
        %v4901 = vadd.f32 0.0, %v4900
        %v4902 = vpop.f32.mrf.mxu0
        %4903 = vmatprep.mubr.bf16.mxu0 0
        %4904 = vmatmul.mubr.bf16.gmra.mxu0 %v4746
        %v4905 = vpop.f32.mrf.mxu0
        %v4906 = vadd.f32 0.0, %v4905
        %v4907 = vpop.f32.mrf.mxu0
        %v4908 = vpop.f32.mrf.mxu0
        %v4909 = vadd.f32 0.0, %v4908
        %v4910 = vpop.f32.mrf.mxu0
        %4911 = vdwg.mxu0
        %v4912 = vadd.f32 %v4466, %v4786
        %v4913 = vadd.f32 %v4467, %v4789
        %v4914 = vadd.f32 %v4468, %v4794
        %v4915 = vadd.f32 %v4469, %v4797
        %v4916 = vadd.f32 %v4470, %v4802
        %v4917 = vadd.f32 %v4471, %v4805
        %v4918 = vadd.f32 %v4472, %v4810
        %v4919 = vadd.f32 %v4473, %v4813
        %v4920 = vadd.f32 %v4474, %v4818
        %v4921 = vadd.f32 %v4475, %v4821
        %v4922 = vadd.f32 %v4476, %v4826
        %v4923 = vadd.f32 %v4477, %v4829
        %v4924 = vadd.f32 %v4478, %v4834
        %v4925 = vadd.f32 %v4479, %v4837
        %v4926 = vadd.f32 %v4480, %v4842
        %v4927 = vadd.f32 %v4481, %v4845
        %v4928 = vadd.f32 %v4482, %v4850
        %v4929 = vadd.f32 %v4483, %v4853
        %v4930 = vadd.f32 %v4484, %v4858
        %v4931 = vadd.f32 %v4485, %v4861
        %v4932 = vadd.f32 %v4486, %v4866
        %v4933 = vadd.f32 %v4487, %v4869
        %v4934 = vadd.f32 %v4488, %v4874
        %v4935 = vadd.f32 %v4489, %v4877
        %v4936 = vadd.f32 %v4490, %v4882
        %v4937 = vadd.f32 %v4491, %v4885
        %v4938 = vadd.f32 %v4492, %v4890
        %v4939 = vadd.f32 %v4493, %v4893
        %v4940 = vadd.f32 %v4494, %v4898
        %v4941 = vadd.f32 %v4495, %v4901
        %v4942 = vadd.f32 %v4496, %v4906
        %v4943 = vadd.f32 %v4497, %v4909
        %s4944 = sadd.s32 %s2066, 2
        %s4945 = smul.u32 %s4944, 5
        %s4946 = smul.addr %s4945, 4
        %s4947 = scalar_lea.vmem [#allocation2], %s4946
        %v4948 = vld [vmem:[%s4947] sm:$0xf]
        %v4949 = vld [vmem:[%s4947 + $0x4] sm:$0xf]
        %v4950 = vld [vmem:[%s4947 + $0x8] sm:$0xf]
        %v4951 = vld [vmem:[%s4947 + $0xc] sm:$0xf]
        %v4952 = vld [vmem:[%s4947 + $0x14] sm:$0xf]
        %v4953 = vld [vmem:[%s4947 + $0x18] sm:$0xf]
        %v4954 = vld [vmem:[%s4947 + $0x1c] sm:$0xf]
        %v4955 = vld [vmem:[%s4947 + $0x20] sm:$0xf]
        %v4956 = vld [vmem:[%s4947 + $0x28] sm:$0xf]
        %v4957 = vld [vmem:[%s4947 + $0x2c] sm:$0xf]
        %v4958 = vld [vmem:[%s4947 + $0x30] sm:$0xf]
        %v4959 = vld [vmem:[%s4947 + $0x34] sm:$0xf]
        %v4960 = vld [vmem:[%s4947 + $0x3c] sm:$0xf]
        %v4961 = vld [vmem:[%s4947 + $0x40] sm:$0xf]
        %v4962 = vld [vmem:[%s4947 + $0x44] sm:$0xf]
        %v4963 = vld [vmem:[%s4947 + $0x48] sm:$0xf]
        %v4964 = vld [vmem:[%s4947 + $0x50] sm:$0xf]
        %v4965 = vld [vmem:[%s4947 + $0x54] sm:$0xf]
        %v4966 = vld [vmem:[%s4947 + $0x58] sm:$0xf]
        %v4967 = vld [vmem:[%s4947 + $0x5c] sm:$0xf]
        %v4968 = vld [vmem:[%s4947 + $0x64] sm:$0xf]
        %v4969 = vld [vmem:[%s4947 + $0x68] sm:$0xf]
        %v4970 = vld [vmem:[%s4947 + $0x6c] sm:$0xf]
        %v4971 = vld [vmem:[%s4947 + $0x70] sm:$0xf]
        %v4972 = vld [vmem:[%s4947 + $0x78] sm:$0xf]
        %v4973 = vld [vmem:[%s4947 + $0x7c] sm:$0xf]
        %v4974 = vld [vmem:[%s4947 + $0x80] sm:$0xf]
        %v4975 = vld [vmem:[%s4947 + $0x84] sm:$0xf]
        %v4976 = vld [vmem:[%s4947 + $0x8c] sm:$0xf]
        %v4977 = vld [vmem:[%s4947 + $0x90] sm:$0xf]
        %v4978 = vld [vmem:[%s4947 + $0x94] sm:$0xf]
        %v4979 = vld [vmem:[%s4947 + $0x98] sm:$0xf]
        %s4980 = scalar_lea.vmem %s1, 12
        %v4981 = vld [vmem:[%s4980] sm:$0x3]
        %v5014 = vunpack.c.l.b16 %v4948
        %v5015 = vunpack.c.l.b16 %v4949
        %v5016 = vunpack.c.l.b16 %v4950
        %v5017 = vunpack.c.l.b16 %v4951
        %v5018 = vunpack.c.l.b16 %v4952
        %v5019 = vunpack.c.l.b16 %v4953
        %v5020 = vunpack.c.l.b16 %v4954
        %v5021 = vunpack.c.l.b16 %v4955
        %v5022 = vunpack.c.l.b16 %v4956
        %v5023 = vunpack.c.l.b16 %v4957
        %v5024 = vunpack.c.l.b16 %v4958
        %v5025 = vunpack.c.l.b16 %v4959
        %v5026 = vunpack.c.l.b16 %v4960
        %v5027 = vunpack.c.l.b16 %v4961
        %v5028 = vunpack.c.l.b16 %v4962
        %v5029 = vunpack.c.l.b16 %v4963
        %v5030 = vunpack.c.l.b16 %v4964
        %v5031 = vunpack.c.l.b16 %v4965
        %v5032 = vunpack.c.l.b16 %v4966
        %v5033 = vunpack.c.l.b16 %v4967
        %v5034 = vunpack.c.l.b16 %v4968
        %v5035 = vunpack.c.l.b16 %v4969
        %v5036 = vunpack.c.l.b16 %v4970
        %v5037 = vunpack.c.l.b16 %v4971
        %v5038 = vunpack.c.l.b16 %v4972
        %v5039 = vunpack.c.l.b16 %v4973
        %v5040 = vunpack.c.l.b16 %v4974
        %v5041 = vunpack.c.l.b16 %v4975
        %v5042 = vunpack.c.l.b16 %v4976
        %v5043 = vunpack.c.l.b16 %v4977
        %v5044 = vunpack.c.l.b16 %v4978
        %v5045 = vunpack.c.l.b16 %v4979
        %v5046 = vpack.c.b16 %v5015, %v5014
        %v5047 = vpack.c.b16 %v5017, %v5016
        %v5048 = vpack.c.b16 %v5019, %v5018
        %v5049 = vpack.c.b16 %v5021, %v5020
        %v5050 = vpack.c.b16 %v5023, %v5022
        %v5051 = vpack.c.b16 %v5025, %v5024
        %v5052 = vpack.c.b16 %v5027, %v5026
        %v5053 = vpack.c.b16 %v5029, %v5028
        %v5054 = vpack.c.b16 %v5031, %v5030
        %v5055 = vpack.c.b16 %v5033, %v5032
        %v5056 = vpack.c.b16 %v5035, %v5034
        %v5057 = vpack.c.b16 %v5037, %v5036
        %v5058 = vpack.c.b16 %v5039, %v5038
        %v5059 = vpack.c.b16 %v5041, %v5040
        %v5060 = vpack.c.b16 %v5043, %v5042
        %v5061 = vpack.c.b16 %v5045, %v5044
        %v5063 = vsel %vm2516, %v5046, 0
        %v5066 = vsel %vm2516, %v5047, 0
        %v5069 = vsel %vm2516, %v5048, 0
        %v5072 = vsel %vm2516, %v5049, 0
        %v5075 = vsel %vm2516, %v5050, 0
        %v5078 = vsel %vm2516, %v5051, 0
        %v5081 = vsel %vm2516, %v5052, 0
        %v5084 = vsel %vm2516, %v5053, 0
        %v5087 = vsel %vm2516, %v5054, 0
        %v5090 = vsel %vm2516, %v5055, 0
        %v5093 = vsel %vm2516, %v5056, 0
        %v5096 = vsel %vm2516, %v5057, 0
        %v5099 = vsel %vm2516, %v5058, 0
        %v5102 = vsel %vm2516, %v5059, 0
        %v5105 = vsel %vm2516, %v5060, 0
        %v5108 = vsel %vm2516, %v5061, 0
        %v5111 = vand.u32 %v4981, %v2568
        %5113 = vmatprep.subr.bf16.mxu0 0
        %5114 = vmatpush1.bf16.msra.mxu0 0
        %5115 = vmatprep.subr.bf16.mxu0 0
        %5116 = vmatpush1.bf16.msra.mxu0 0
        %5117 = vmatprep.subr.bf16.mxu0 0
        %5118 = vmatpush1.bf16.msra.mxu0 0
        %5119 = vmatprep.subr.bf16.mxu0 0
        %5120 = vmatpush1.bf16.msra.mxu0 0
        %5121 = vmatprep.subr.bf16.mxu0 0
        %5122 = vmatpush1.bf16.msra.mxu0 0
        %5123 = vmatprep.subr.bf16.mxu0 0
        %5124 = vmatpush1.bf16.msra.mxu0 0
        %5125 = vmatprep.subr.bf16.mxu0 0
        %5126 = vmatpush1.bf16.msra.mxu0 0
        %5127 = vmatprep.subr.bf16.mxu0 0
        %5128 = vmatpush1.bf16.msra.mxu0 %v5111
        %5129 = vmatprep.subr.bf16.mxu0 0
        %5130 = vmatpush2.bf16.msra.mxu0 0
        %5131 = vmatprep.subr.bf16.mxu0 0
        %5132 = vmatpush2.bf16.msra.mxu0 0
        %5133 = vmatprep.subr.bf16.mxu0 0
        %5134 = vmatpush2.bf16.msra.mxu0 0
        %5135 = vmatprep.subr.bf16.mxu0 0
        %5136 = vmatpush2.bf16.msra.mxu0 0
        %5137 = vmatprep.subr.bf16.mxu0 0
        %5138 = vmatpush2.bf16.msra.mxu0 0
        %5139 = vmatprep.subr.bf16.mxu0 0
        %5140 = vmatpush2.bf16.msra.mxu0 0
        %5141 = vmatprep.subr.bf16.mxu0 0
        %5142 = vmatpush2.bf16.msra.mxu0 0
        %5143 = vmatprep.subr.bf16.mxu0 0
        %5144 = vmatpush2.bf16.msra.mxu0 0
        %5145 = vmatprep.mubr.bf16.mxu0 0
        %5146 = vmatmul.mubr.bf16.gmra.mxu0 %v5063
        %v5147 = vpop.f32.mrf.mxu0
        %v5148 = vadd.f32 0.0, %v5147
        %v5149 = vpop.f32.mrf.mxu0
        %v5150 = vpop.f32.mrf.mxu0
        %v5151 = vadd.f32 0.0, %v5150
        %v5152 = vpop.f32.mrf.mxu0
        %5153 = vmatprep.mubr.bf16.mxu0 0
        %5154 = vmatmul.mubr.bf16.gmra.mxu0 %v5066
        %v5155 = vpop.f32.mrf.mxu0
        %v5156 = vadd.f32 0.0, %v5155
        %v5157 = vpop.f32.mrf.mxu0
        %v5158 = vpop.f32.mrf.mxu0
        %v5159 = vadd.f32 0.0, %v5158
        %v5160 = vpop.f32.mrf.mxu0
        %5161 = vmatprep.mubr.bf16.mxu0 0
        %5162 = vmatmul.mubr.bf16.gmra.mxu0 %v5069
        %v5163 = vpop.f32.mrf.mxu0
        %v5164 = vadd.f32 0.0, %v5163
        %v5165 = vpop.f32.mrf.mxu0
        %v5166 = vpop.f32.mrf.mxu0
        %v5167 = vadd.f32 0.0, %v5166
        %v5168 = vpop.f32.mrf.mxu0
        %5169 = vmatprep.mubr.bf16.mxu0 0
        %5170 = vmatmul.mubr.bf16.gmra.mxu0 %v5072
        %v5171 = vpop.f32.mrf.mxu0
        %v5172 = vadd.f32 0.0, %v5171
        %v5173 = vpop.f32.mrf.mxu0
        %v5174 = vpop.f32.mrf.mxu0
        %v5175 = vadd.f32 0.0, %v5174
        %v5176 = vpop.f32.mrf.mxu0
        %5177 = vmatprep.mubr.bf16.mxu0 0
        %5178 = vmatmul.mubr.bf16.gmra.mxu0 %v5075
        %v5179 = vpop.f32.mrf.mxu0
        %v5180 = vadd.f32 0.0, %v5179
        %v5181 = vpop.f32.mrf.mxu0
        %v5182 = vpop.f32.mrf.mxu0
        %v5183 = vadd.f32 0.0, %v5182
        %v5184 = vpop.f32.mrf.mxu0
        %5185 = vmatprep.mubr.bf16.mxu0 0
        %5186 = vmatmul.mubr.bf16.gmra.mxu0 %v5078
        %v5187 = vpop.f32.mrf.mxu0
        %v5188 = vadd.f32 0.0, %v5187
        %v5189 = vpop.f32.mrf.mxu0
        %v5190 = vpop.f32.mrf.mxu0
        %v5191 = vadd.f32 0.0, %v5190
        %v5192 = vpop.f32.mrf.mxu0
        %5193 = vmatprep.mubr.bf16.mxu0 0
        %5194 = vmatmul.mubr.bf16.gmra.mxu0 %v5081
        %v5195 = vpop.f32.mrf.mxu0
        %v5196 = vadd.f32 0.0, %v5195
        %v5197 = vpop.f32.mrf.mxu0
        %v5198 = vpop.f32.mrf.mxu0
        %v5199 = vadd.f32 0.0, %v5198
        %v5200 = vpop.f32.mrf.mxu0
        %5201 = vmatprep.mubr.bf16.mxu0 0
        %5202 = vmatmul.mubr.bf16.gmra.mxu0 %v5084
        %v5203 = vpop.f32.mrf.mxu0
        %v5204 = vadd.f32 0.0, %v5203
        %v5205 = vpop.f32.mrf.mxu0
        %v5206 = vpop.f32.mrf.mxu0
        %v5207 = vadd.f32 0.0, %v5206
        %v5208 = vpop.f32.mrf.mxu0
        %5209 = vmatprep.mubr.bf16.mxu0 0
        %5210 = vmatmul.mubr.bf16.gmra.mxu0 %v5087
        %v5211 = vpop.f32.mrf.mxu0
        %v5212 = vadd.f32 0.0, %v5211
        %v5213 = vpop.f32.mrf.mxu0
        %v5214 = vpop.f32.mrf.mxu0
        %v5215 = vadd.f32 0.0, %v5214
        %v5216 = vpop.f32.mrf.mxu0
        %5217 = vmatprep.mubr.bf16.mxu0 0
        %5218 = vmatmul.mubr.bf16.gmra.mxu0 %v5090
        %v5219 = vpop.f32.mrf.mxu0
        %v5220 = vadd.f32 0.0, %v5219
        %v5221 = vpop.f32.mrf.mxu0
        %v5222 = vpop.f32.mrf.mxu0
        %v5223 = vadd.f32 0.0, %v5222
        %v5224 = vpop.f32.mrf.mxu0
        %5225 = vmatprep.mubr.bf16.mxu0 0
        %5226 = vmatmul.mubr.bf16.gmra.mxu0 %v5093
        %v5227 = vpop.f32.mrf.mxu0
        %v5228 = vadd.f32 0.0, %v5227
        %v5229 = vpop.f32.mrf.mxu0
        %v5230 = vpop.f32.mrf.mxu0
        %v5231 = vadd.f32 0.0, %v5230
        %v5232 = vpop.f32.mrf.mxu0
        %5233 = vmatprep.mubr.bf16.mxu0 0
        %5234 = vmatmul.mubr.bf16.gmra.mxu0 %v5096
        %v5235 = vpop.f32.mrf.mxu0
        %v5236 = vadd.f32 0.0, %v5235
        %v5237 = vpop.f32.mrf.mxu0
        %v5238 = vpop.f32.mrf.mxu0
        %v5239 = vadd.f32 0.0, %v5238
        %v5240 = vpop.f32.mrf.mxu0
        %5241 = vmatprep.mubr.bf16.mxu0 0
        %5242 = vmatmul.mubr.bf16.gmra.mxu0 %v5099
        %v5243 = vpop.f32.mrf.mxu0
        %v5244 = vadd.f32 0.0, %v5243
        %v5245 = vpop.f32.mrf.mxu0
        %v5246 = vpop.f32.mrf.mxu0
        %v5247 = vadd.f32 0.0, %v5246
        %v5248 = vpop.f32.mrf.mxu0
        %5249 = vmatprep.mubr.bf16.mxu0 0
        %5250 = vmatmul.mubr.bf16.gmra.mxu0 %v5102
        %v5251 = vpop.f32.mrf.mxu0
        %v5252 = vadd.f32 0.0, %v5251
        %v5253 = vpop.f32.mrf.mxu0
        %v5254 = vpop.f32.mrf.mxu0
        %v5255 = vadd.f32 0.0, %v5254
        %v5256 = vpop.f32.mrf.mxu0
        %5257 = vmatprep.mubr.bf16.mxu0 0
        %5258 = vmatmul.mubr.bf16.gmra.mxu0 %v5105
        %v5259 = vpop.f32.mrf.mxu0
        %v5260 = vadd.f32 0.0, %v5259
        %v5261 = vpop.f32.mrf.mxu0
        %v5262 = vpop.f32.mrf.mxu0
        %v5263 = vadd.f32 0.0, %v5262
        %v5264 = vpop.f32.mrf.mxu0
        %5265 = vmatprep.mubr.bf16.mxu0 0
        %5266 = vmatmul.mubr.bf16.gmra.mxu0 %v5108
        %v5267 = vpop.f32.mrf.mxu0
        %v5268 = vadd.f32 0.0, %v5267
        %v5269 = vpop.f32.mrf.mxu0
        %v5270 = vpop.f32.mrf.mxu0
        %v5271 = vadd.f32 0.0, %v5270
        %v5272 = vpop.f32.mrf.mxu0
        %5273 = vdwg.mxu0
        %v5274 = vadd.f32 %v4912, %v5148
        %v5275 = vadd.f32 %v4913, %v5151
        %v5276 = vadd.f32 %v4914, %v5156
        %v5277 = vadd.f32 %v4915, %v5159
        %v5278 = vadd.f32 %v4916, %v5164
        %v5279 = vadd.f32 %v4917, %v5167
        %v5280 = vadd.f32 %v4918, %v5172
        %v5281 = vadd.f32 %v4919, %v5175
        %v5282 = vadd.f32 %v4920, %v5180
        %v5283 = vadd.f32 %v4921, %v5183
        %v5284 = vadd.f32 %v4922, %v5188
        %v5285 = vadd.f32 %v4923, %v5191
        %v5286 = vadd.f32 %v4924, %v5196
        %v5287 = vadd.f32 %v4925, %v5199
        %v5288 = vadd.f32 %v4926, %v5204
        %v5289 = vadd.f32 %v4927, %v5207
        %v5290 = vadd.f32 %v4928, %v5212
        %v5291 = vadd.f32 %v4929, %v5215
        %v5292 = vadd.f32 %v4930, %v5220
        %v5293 = vadd.f32 %v4931, %v5223
        %v5294 = vadd.f32 %v4932, %v5228
        %v5295 = vadd.f32 %v4933, %v5231
        %v5296 = vadd.f32 %v4934, %v5236
        %v5297 = vadd.f32 %v4935, %v5239
        %v5298 = vadd.f32 %v4936, %v5244
        %v5299 = vadd.f32 %v4937, %v5247
        %v5300 = vadd.f32 %v4938, %v5252
        %v5301 = vadd.f32 %v4939, %v5255
        %v5302 = vadd.f32 %v4940, %v5260
        %v5303 = vadd.f32 %v4941, %v5263
        %v5304 = vadd.f32 %v4942, %v5268
        %v5305 = vadd.f32 %v4943, %v5271
        %v5306 = vld [vmem:[%s4947] sm:$0xf]
        %v5307 = vld [vmem:[%s4947 + $0x4] sm:$0xf]
        %v5308 = vld [vmem:[%s4947 + $0x8] sm:$0xf]
        %v5309 = vld [vmem:[%s4947 + $0xc] sm:$0xf]
        %v5310 = vld [vmem:[%s4947 + $0x10] sm:$0x1]
        %v5311 = vld [vmem:[%s4947 + $0x14] sm:$0xf]
        %v5312 = vld [vmem:[%s4947 + $0x18] sm:$0xf]
        %v5313 = vld [vmem:[%s4947 + $0x1c] sm:$0xf]
        %v5314 = vld [vmem:[%s4947 + $0x20] sm:$0xf]
        %v5315 = vld [vmem:[%s4947 + $0x24] sm:$0x1]
        %v5316 = vld [vmem:[%s4947 + $0x28] sm:$0xf]
        %v5317 = vld [vmem:[%s4947 + $0x2c] sm:$0xf]
        %v5318 = vld [vmem:[%s4947 + $0x30] sm:$0xf]
        %v5319 = vld [vmem:[%s4947 + $0x34] sm:$0xf]
        %v5320 = vld [vmem:[%s4947 + $0x38] sm:$0x1]
        %v5321 = vld [vmem:[%s4947 + $0x3c] sm:$0xf]
        %v5322 = vld [vmem:[%s4947 + $0x40] sm:$0xf]
        %v5323 = vld [vmem:[%s4947 + $0x44] sm:$0xf]
        %v5324 = vld [vmem:[%s4947 + $0x48] sm:$0xf]
        %v5325 = vld [vmem:[%s4947 + $0x4c] sm:$0x1]
        %v5326 = vld [vmem:[%s4947 + $0x50] sm:$0xf]
        %v5327 = vld [vmem:[%s4947 + $0x54] sm:$0xf]
        %v5328 = vld [vmem:[%s4947 + $0x58] sm:$0xf]
        %v5329 = vld [vmem:[%s4947 + $0x5c] sm:$0xf]
        %v5330 = vld [vmem:[%s4947 + $0x60] sm:$0x1]
        %v5331 = vld [vmem:[%s4947 + $0x64] sm:$0xf]
        %v5332 = vld [vmem:[%s4947 + $0x68] sm:$0xf]
        %v5333 = vld [vmem:[%s4947 + $0x6c] sm:$0xf]
        %v5334 = vld [vmem:[%s4947 + $0x70] sm:$0xf]
        %v5335 = vld [vmem:[%s4947 + $0x74] sm:$0x1]
        %v5336 = vld [vmem:[%s4947 + $0x78] sm:$0xf]
        %v5337 = vld [vmem:[%s4947 + $0x7c] sm:$0xf]
        %v5338 = vld [vmem:[%s4947 + $0x80] sm:$0xf]
        %v5339 = vld [vmem:[%s4947 + $0x84] sm:$0xf]
        %v5340 = vld [vmem:[%s4947 + $0x88] sm:$0x1]
        %v5341 = vld [vmem:[%s4947 + $0x8c] sm:$0xf]
        %v5342 = vld [vmem:[%s4947 + $0x90] sm:$0xf]
        %v5343 = vld [vmem:[%s4947 + $0x94] sm:$0xf]
        %v5344 = vld [vmem:[%s4947 + $0x98] sm:$0xf]
        %v5345 = vld [vmem:[%s4947 + $0x9c] sm:$0x1]
        %v5347 = vshrl.u32 %v5306, 16
        %v5349 = vrot.slane %v5347, 4
        %v5350 = vshll.u32 %v5306, 16
        %v5352 = vrot.slane %v5350, 5
        %v5353 = vor.u32 %v5349, %v5352
        %v5354 = vrot.slane %v5353, 4
        %v5356 = vshll.u32 %v5307, 16
        %v5358 = vrot.slane %v5356, 5
        %v5359 = vsel %vm2113, %v5354, %v5358
        %v5360 = vshrl.u32 %v5307, 16
        %v5362 = vrot.slane %v5360, 4
        %v5363 = vor.u32 %v5362, %v5358
        %v5364 = vrot.slane %v5363, 4
        %v5366 = vshll.u32 %v5308, 16
        %v5368 = vrot.slane %v5366, 5
        %v5369 = vsel %vm2113, %v5364, %v5368
        %v5370 = vshrl.u32 %v5308, 16
        %v5372 = vrot.slane %v5370, 4
        %v5373 = vor.u32 %v5372, %v5368
        %v5374 = vrot.slane %v5373, 4
        %v5376 = vshll.u32 %v5309, 16
        %v5378 = vrot.slane %v5376, 5
        %v5379 = vsel %vm2113, %v5374, %v5378
        %v5380 = vshrl.u32 %v5309, 16
        %v5382 = vrot.slane %v5380, 4
        %v5383 = vor.u32 %v5382, %v5378
        %v5384 = vrot.slane %v5383, 4
        %v5386 = vshll.u32 %v5310, 16
        %v5388 = vrot.slane %v5386, 5
        %v5389 = vsel %vm2113, %v5384, %v5388
        %v5391 = vshrl.u32 %v5311, 16
        %v5393 = vrot.slane %v5391, 4
        %v5394 = vshll.u32 %v5311, 16
        %v5396 = vrot.slane %v5394, 5
        %v5397 = vor.u32 %v5393, %v5396
        %v5398 = vrot.slane %v5397, 4
        %v5400 = vshll.u32 %v5312, 16
        %v5402 = vrot.slane %v5400, 5
        %v5403 = vsel %vm2113, %v5398, %v5402
        %v5404 = vshrl.u32 %v5312, 16
        %v5406 = vrot.slane %v5404, 4
        %v5407 = vor.u32 %v5406, %v5402
        %v5408 = vrot.slane %v5407, 4
        %v5410 = vshll.u32 %v5313, 16
        %v5412 = vrot.slane %v5410, 5
        %v5413 = vsel %vm2113, %v5408, %v5412
        %v5414 = vshrl.u32 %v5313, 16
        %v5416 = vrot.slane %v5414, 4
        %v5417 = vor.u32 %v5416, %v5412
        %v5418 = vrot.slane %v5417, 4
        %v5420 = vshll.u32 %v5314, 16
        %v5422 = vrot.slane %v5420, 5
        %v5423 = vsel %vm2113, %v5418, %v5422
        %v5424 = vshrl.u32 %v5314, 16
        %v5426 = vrot.slane %v5424, 4
        %v5427 = vor.u32 %v5426, %v5422
        %v5428 = vrot.slane %v5427, 4
        %v5430 = vshll.u32 %v5315, 16
        %v5432 = vrot.slane %v5430, 5
        %v5433 = vsel %vm2113, %v5428, %v5432
        %v5435 = vshrl.u32 %v5316, 16
        %v5437 = vrot.slane %v5435, 4
        %v5438 = vshll.u32 %v5316, 16
        %v5440 = vrot.slane %v5438, 5
        %v5441 = vor.u32 %v5437, %v5440
        %v5442 = vrot.slane %v5441, 4
        %v5444 = vshll.u32 %v5317, 16
        %v5446 = vrot.slane %v5444, 5
        %v5447 = vsel %vm2113, %v5442, %v5446
        %v5448 = vshrl.u32 %v5317, 16
        %v5450 = vrot.slane %v5448, 4
        %v5451 = vor.u32 %v5450, %v5446
        %v5452 = vrot.slane %v5451, 4
        %v5454 = vshll.u32 %v5318, 16
        %v5456 = vrot.slane %v5454, 5
        %v5457 = vsel %vm2113, %v5452, %v5456
        %v5458 = vshrl.u32 %v5318, 16
        %v5460 = vrot.slane %v5458, 4
        %v5461 = vor.u32 %v5460, %v5456
        %v5462 = vrot.slane %v5461, 4
        %v5464 = vshll.u32 %v5319, 16
        %v5466 = vrot.slane %v5464, 5
        %v5467 = vsel %vm2113, %v5462, %v5466
        %v5468 = vshrl.u32 %v5319, 16
        %v5470 = vrot.slane %v5468, 4
        %v5471 = vor.u32 %v5470, %v5466
        %v5472 = vrot.slane %v5471, 4
        %v5474 = vshll.u32 %v5320, 16
        %v5476 = vrot.slane %v5474, 5
        %v5477 = vsel %vm2113, %v5472, %v5476
        %v5479 = vshrl.u32 %v5321, 16
        %v5481 = vrot.slane %v5479, 4
        %v5482 = vshll.u32 %v5321, 16
        %v5484 = vrot.slane %v5482, 5
        %v5485 = vor.u32 %v5481, %v5484
        %v5486 = vrot.slane %v5485, 4
        %v5488 = vshll.u32 %v5322, 16
        %v5490 = vrot.slane %v5488, 5
        %v5491 = vsel %vm2113, %v5486, %v5490
        %v5492 = vshrl.u32 %v5322, 16
        %v5494 = vrot.slane %v5492, 4
        %v5495 = vor.u32 %v5494, %v5490
        %v5496 = vrot.slane %v5495, 4
        %v5498 = vshll.u32 %v5323, 16
        %v5500 = vrot.slane %v5498, 5
        %v5501 = vsel %vm2113, %v5496, %v5500
        %v5502 = vshrl.u32 %v5323, 16
        %v5504 = vrot.slane %v5502, 4
        %v5505 = vor.u32 %v5504, %v5500
        %v5506 = vrot.slane %v5505, 4
        %v5508 = vshll.u32 %v5324, 16
        %v5510 = vrot.slane %v5508, 5
        %v5511 = vsel %vm2113, %v5506, %v5510
        %v5512 = vshrl.u32 %v5324, 16
        %v5514 = vrot.slane %v5512, 4
        %v5515 = vor.u32 %v5514, %v5510
        %v5516 = vrot.slane %v5515, 4
        %v5518 = vshll.u32 %v5325, 16
        %v5520 = vrot.slane %v5518, 5
        %v5521 = vsel %vm2113, %v5516, %v5520
        %v5523 = vshrl.u32 %v5326, 16
        %v5525 = vrot.slane %v5523, 4
        %v5526 = vshll.u32 %v5326, 16
        %v5528 = vrot.slane %v5526, 5
        %v5529 = vor.u32 %v5525, %v5528
        %v5530 = vrot.slane %v5529, 4
        %v5532 = vshll.u32 %v5327, 16
        %v5534 = vrot.slane %v5532, 5
        %v5535 = vsel %vm2113, %v5530, %v5534
        %v5536 = vshrl.u32 %v5327, 16
        %v5538 = vrot.slane %v5536, 4
        %v5539 = vor.u32 %v5538, %v5534
        %v5540 = vrot.slane %v5539, 4
        %v5542 = vshll.u32 %v5328, 16
        %v5544 = vrot.slane %v5542, 5
        %v5545 = vsel %vm2113, %v5540, %v5544
        %v5546 = vshrl.u32 %v5328, 16
        %v5548 = vrot.slane %v5546, 4
        %v5549 = vor.u32 %v5548, %v5544
        %v5550 = vrot.slane %v5549, 4
        %v5552 = vshll.u32 %v5329, 16
        %v5554 = vrot.slane %v5552, 5
        %v5555 = vsel %vm2113, %v5550, %v5554
        %v5556 = vshrl.u32 %v5329, 16
        %v5558 = vrot.slane %v5556, 4
        %v5559 = vor.u32 %v5558, %v5554
        %v5560 = vrot.slane %v5559, 4
        %v5562 = vshll.u32 %v5330, 16
        %v5564 = vrot.slane %v5562, 5
        %v5565 = vsel %vm2113, %v5560, %v5564
        %v5567 = vshrl.u32 %v5331, 16
        %v5569 = vrot.slane %v5567, 4
        %v5570 = vshll.u32 %v5331, 16
        %v5572 = vrot.slane %v5570, 5
        %v5573 = vor.u32 %v5569, %v5572
        %v5574 = vrot.slane %v5573, 4
        %v5576 = vshll.u32 %v5332, 16
        %v5578 = vrot.slane %v5576, 5
        %v5579 = vsel %vm2113, %v5574, %v5578
        %v5580 = vshrl.u32 %v5332, 16
        %v5582 = vrot.slane %v5580, 4
        %v5583 = vor.u32 %v5582, %v5578
        %v5584 = vrot.slane %v5583, 4
        %v5586 = vshll.u32 %v5333, 16
        %v5588 = vrot.slane %v5586, 5
        %v5589 = vsel %vm2113, %v5584, %v5588
        %v5590 = vshrl.u32 %v5333, 16
        %v5592 = vrot.slane %v5590, 4
        %v5593 = vor.u32 %v5592, %v5588
        %v5594 = vrot.slane %v5593, 4
        %v5596 = vshll.u32 %v5334, 16
        %v5598 = vrot.slane %v5596, 5
        %v5599 = vsel %vm2113, %v5594, %v5598
        %v5600 = vshrl.u32 %v5334, 16
        %v5602 = vrot.slane %v5600, 4
        %v5603 = vor.u32 %v5602, %v5598
        %v5604 = vrot.slane %v5603, 4
        %v5606 = vshll.u32 %v5335, 16
        %v5608 = vrot.slane %v5606, 5
        %v5609 = vsel %vm2113, %v5604, %v5608
        %v5611 = vshrl.u32 %v5336, 16
        %v5613 = vrot.slane %v5611, 4
        %v5614 = vshll.u32 %v5336, 16
        %v5616 = vrot.slane %v5614, 5
        %v5617 = vor.u32 %v5613, %v5616
        %v5618 = vrot.slane %v5617, 4
        %v5620 = vshll.u32 %v5337, 16
        %v5622 = vrot.slane %v5620, 5
        %v5623 = vsel %vm2113, %v5618, %v5622
        %v5624 = vshrl.u32 %v5337, 16
        %v5626 = vrot.slane %v5624, 4
        %v5627 = vor.u32 %v5626, %v5622
        %v5628 = vrot.slane %v5627, 4
        %v5630 = vshll.u32 %v5338, 16
        %v5632 = vrot.slane %v5630, 5
        %v5633 = vsel %vm2113, %v5628, %v5632
        %v5634 = vshrl.u32 %v5338, 16
        %v5636 = vrot.slane %v5634, 4
        %v5637 = vor.u32 %v5636, %v5632
        %v5638 = vrot.slane %v5637, 4
        %v5640 = vshll.u32 %v5339, 16
        %v5642 = vrot.slane %v5640, 5
        %v5643 = vsel %vm2113, %v5638, %v5642
        %v5644 = vshrl.u32 %v5339, 16
        %v5646 = vrot.slane %v5644, 4
        %v5647 = vor.u32 %v5646, %v5642
        %v5648 = vrot.slane %v5647, 4
        %v5650 = vshll.u32 %v5340, 16
        %v5652 = vrot.slane %v5650, 5
        %v5653 = vsel %vm2113, %v5648, %v5652
        %v5655 = vshrl.u32 %v5341, 16
        %v5657 = vrot.slane %v5655, 4
        %v5658 = vshll.u32 %v5341, 16
        %v5660 = vrot.slane %v5658, 5
        %v5661 = vor.u32 %v5657, %v5660
        %v5662 = vrot.slane %v5661, 4
        %v5664 = vshll.u32 %v5342, 16
        %v5666 = vrot.slane %v5664, 5
        %v5667 = vsel %vm2113, %v5662, %v5666
        %v5668 = vshrl.u32 %v5342, 16
        %v5670 = vrot.slane %v5668, 4
        %v5671 = vor.u32 %v5670, %v5666
        %v5672 = vrot.slane %v5671, 4
        %v5674 = vshll.u32 %v5343, 16
        %v5676 = vrot.slane %v5674, 5
        %v5677 = vsel %vm2113, %v5672, %v5676
        %v5678 = vshrl.u32 %v5343, 16
        %v5680 = vrot.slane %v5678, 4
        %v5681 = vor.u32 %v5680, %v5676
        %v5682 = vrot.slane %v5681, 4
        %v5684 = vshll.u32 %v5344, 16
        %v5686 = vrot.slane %v5684, 5
        %v5687 = vsel %vm2113, %v5682, %v5686
        %v5688 = vshrl.u32 %v5344, 16
        %v5690 = vrot.slane %v5688, 4
        %v5691 = vor.u32 %v5690, %v5686
        %v5692 = vrot.slane %v5691, 4
        %v5694 = vshll.u32 %v5345, 16
        %v5696 = vrot.slane %v5694, 5
        %v5697 = vsel %vm2113, %v5692, %v5696
        %s5698 = scalar_lea.vmem %s1, 14
        %v5699 = vld [vmem:[%s5698] sm:$0x3]
        %v5700 = vunpack.c.l.b16 %v5359
        %v5701 = vunpack.c.l.b16 %v5369
        %v5702 = vunpack.c.l.b16 %v5379
        %v5703 = vunpack.c.l.b16 %v5389
        %v5704 = vunpack.c.l.b16 %v5403
        %v5705 = vunpack.c.l.b16 %v5413
        %v5706 = vunpack.c.l.b16 %v5423
        %v5707 = vunpack.c.l.b16 %v5433
        %v5708 = vunpack.c.l.b16 %v5447
        %v5709 = vunpack.c.l.b16 %v5457
        %v5710 = vunpack.c.l.b16 %v5467
        %v5711 = vunpack.c.l.b16 %v5477
        %v5712 = vunpack.c.l.b16 %v5491
        %v5713 = vunpack.c.l.b16 %v5501
        %v5714 = vunpack.c.l.b16 %v5511
        %v5715 = vunpack.c.l.b16 %v5521
        %v5716 = vunpack.c.l.b16 %v5535
        %v5717 = vunpack.c.l.b16 %v5545
        %v5718 = vunpack.c.l.b16 %v5555
        %v5719 = vunpack.c.l.b16 %v5565
        %v5720 = vunpack.c.l.b16 %v5579
        %v5721 = vunpack.c.l.b16 %v5589
        %v5722 = vunpack.c.l.b16 %v5599
        %v5723 = vunpack.c.l.b16 %v5609
        %v5724 = vunpack.c.l.b16 %v5623
        %v5725 = vunpack.c.l.b16 %v5633
        %v5726 = vunpack.c.l.b16 %v5643
        %v5727 = vunpack.c.l.b16 %v5653
        %v5728 = vunpack.c.l.b16 %v5667
        %v5729 = vunpack.c.l.b16 %v5677
        %v5730 = vunpack.c.l.b16 %v5687
        %v5731 = vunpack.c.l.b16 %v5697
        %v5732 = vpack.c.b16 %v5701, %v5700
        %v5733 = vpack.c.b16 %v5703, %v5702
        %v5734 = vpack.c.b16 %v5705, %v5704
        %v5735 = vpack.c.b16 %v5707, %v5706
        %v5736 = vpack.c.b16 %v5709, %v5708
        %v5737 = vpack.c.b16 %v5711, %v5710
        %v5738 = vpack.c.b16 %v5713, %v5712
        %v5739 = vpack.c.b16 %v5715, %v5714
        %v5740 = vpack.c.b16 %v5717, %v5716
        %v5741 = vpack.c.b16 %v5719, %v5718
        %v5742 = vpack.c.b16 %v5721, %v5720
        %v5743 = vpack.c.b16 %v5723, %v5722
        %v5744 = vpack.c.b16 %v5725, %v5724
        %v5745 = vpack.c.b16 %v5727, %v5726
        %v5746 = vpack.c.b16 %v5729, %v5728
        %v5747 = vpack.c.b16 %v5731, %v5730
        %v5749 = vsel %vm2516, %v5732, 0
        %v5752 = vsel %vm2516, %v5733, 0
        %v5755 = vsel %vm2516, %v5734, 0
        %v5758 = vsel %vm2516, %v5735, 0
        %v5761 = vsel %vm2516, %v5736, 0
        %v5764 = vsel %vm2516, %v5737, 0
        %v5767 = vsel %vm2516, %v5738, 0
        %v5770 = vsel %vm2516, %v5739, 0
        %v5773 = vsel %vm2516, %v5740, 0
        %v5776 = vsel %vm2516, %v5741, 0
        %v5779 = vsel %vm2516, %v5742, 0
        %v5782 = vsel %vm2516, %v5743, 0
        %v5785 = vsel %vm2516, %v5744, 0
        %v5788 = vsel %vm2516, %v5745, 0
        %v5791 = vsel %vm2516, %v5746, 0
        %v5794 = vsel %vm2516, %v5747, 0
        %v5797 = vand.u32 %v5699, %v2568
        %5799 = vmatprep.subr.bf16.mxu0 0
        %5800 = vmatpush1.bf16.msra.mxu0 0
        %5801 = vmatprep.subr.bf16.mxu0 0
        %5802 = vmatpush1.bf16.msra.mxu0 0
        %5803 = vmatprep.subr.bf16.mxu0 0
        %5804 = vmatpush1.bf16.msra.mxu0 0
        %5805 = vmatprep.subr.bf16.mxu0 0
        %5806 = vmatpush1.bf16.msra.mxu0 0
        %5807 = vmatprep.subr.bf16.mxu0 0
        %5808 = vmatpush1.bf16.msra.mxu0 0
        %5809 = vmatprep.subr.bf16.mxu0 0
        %5810 = vmatpush1.bf16.msra.mxu0 0
        %5811 = vmatprep.subr.bf16.mxu0 0
        %5812 = vmatpush1.bf16.msra.mxu0 0
        %5813 = vmatprep.subr.bf16.mxu0 0
        %5814 = vmatpush1.bf16.msra.mxu0 %v5797
        %5815 = vmatprep.subr.bf16.mxu0 0
        %5816 = vmatpush2.bf16.msra.mxu0 0
        %5817 = vmatprep.subr.bf16.mxu0 0
        %5818 = vmatpush2.bf16.msra.mxu0 0
        %5819 = vmatprep.subr.bf16.mxu0 0
        %5820 = vmatpush2.bf16.msra.mxu0 0
        %5821 = vmatprep.subr.bf16.mxu0 0
        %5822 = vmatpush2.bf16.msra.mxu0 0
        %5823 = vmatprep.subr.bf16.mxu0 0
        %5824 = vmatpush2.bf16.msra.mxu0 0
        %5825 = vmatprep.subr.bf16.mxu0 0
        %5826 = vmatpush2.bf16.msra.mxu0 0
        %5827 = vmatprep.subr.bf16.mxu0 0
        %5828 = vmatpush2.bf16.msra.mxu0 0
        %5829 = vmatprep.subr.bf16.mxu0 0
        %5830 = vmatpush2.bf16.msra.mxu0 0
        %5831 = vmatprep.mubr.bf16.mxu0 0
        %5832 = vmatmul.mubr.bf16.gmra.mxu0 %v5749
        %v5833 = vpop.f32.mrf.mxu0
        %v5834 = vadd.f32 0.0, %v5833
        %v5835 = vpop.f32.mrf.mxu0
        %v5836 = vpop.f32.mrf.mxu0
        %v5837 = vadd.f32 0.0, %v5836
        %v5838 = vpop.f32.mrf.mxu0
        %5839 = vmatprep.mubr.bf16.mxu0 0
        %5840 = vmatmul.mubr.bf16.gmra.mxu0 %v5752
        %v5841 = vpop.f32.mrf.mxu0
        %v5842 = vadd.f32 0.0, %v5841
        %v5843 = vpop.f32.mrf.mxu0
        %v5844 = vpop.f32.mrf.mxu0
        %v5845 = vadd.f32 0.0, %v5844
        %v5846 = vpop.f32.mrf.mxu0
        %5847 = vmatprep.mubr.bf16.mxu0 0
        %5848 = vmatmul.mubr.bf16.gmra.mxu0 %v5755
        %v5849 = vpop.f32.mrf.mxu0
        %v5850 = vadd.f32 0.0, %v5849
        %v5851 = vpop.f32.mrf.mxu0
        %v5852 = vpop.f32.mrf.mxu0
        %v5853 = vadd.f32 0.0, %v5852
        %v5854 = vpop.f32.mrf.mxu0
        %5855 = vmatprep.mubr.bf16.mxu0 0
        %5856 = vmatmul.mubr.bf16.gmra.mxu0 %v5758
        %v5857 = vpop.f32.mrf.mxu0
        %v5858 = vadd.f32 0.0, %v5857
        %v5859 = vpop.f32.mrf.mxu0
        %v5860 = vpop.f32.mrf.mxu0
        %v5861 = vadd.f32 0.0, %v5860
        %v5862 = vpop.f32.mrf.mxu0
        %5863 = vmatprep.mubr.bf16.mxu0 0
        %5864 = vmatmul.mubr.bf16.gmra.mxu0 %v5761
        %v5865 = vpop.f32.mrf.mxu0
        %v5866 = vadd.f32 0.0, %v5865
        %v5867 = vpop.f32.mrf.mxu0
        %v5868 = vpop.f32.mrf.mxu0
        %v5869 = vadd.f32 0.0, %v5868
        %v5870 = vpop.f32.mrf.mxu0
        %5871 = vmatprep.mubr.bf16.mxu0 0
        %5872 = vmatmul.mubr.bf16.gmra.mxu0 %v5764
        %v5873 = vpop.f32.mrf.mxu0
        %v5874 = vadd.f32 0.0, %v5873
        %v5875 = vpop.f32.mrf.mxu0
        %v5876 = vpop.f32.mrf.mxu0
        %v5877 = vadd.f32 0.0, %v5876
        %v5878 = vpop.f32.mrf.mxu0
        %5879 = vmatprep.mubr.bf16.mxu0 0
        %5880 = vmatmul.mubr.bf16.gmra.mxu0 %v5767
        %v5881 = vpop.f32.mrf.mxu0
        %v5882 = vadd.f32 0.0, %v5881
        %v5883 = vpop.f32.mrf.mxu0
        %v5884 = vpop.f32.mrf.mxu0
        %v5885 = vadd.f32 0.0, %v5884
        %v5886 = vpop.f32.mrf.mxu0
        %5887 = vmatprep.mubr.bf16.mxu0 0
        %5888 = vmatmul.mubr.bf16.gmra.mxu0 %v5770
        %v5889 = vpop.f32.mrf.mxu0
        %v5890 = vadd.f32 0.0, %v5889
        %v5891 = vpop.f32.mrf.mxu0
        %v5892 = vpop.f32.mrf.mxu0
        %v5893 = vadd.f32 0.0, %v5892
        %v5894 = vpop.f32.mrf.mxu0
        %5895 = vmatprep.mubr.bf16.mxu0 0
        %5896 = vmatmul.mubr.bf16.gmra.mxu0 %v5773
        %v5897 = vpop.f32.mrf.mxu0
        %v5898 = vadd.f32 0.0, %v5897
        %v5899 = vpop.f32.mrf.mxu0
        %v5900 = vpop.f32.mrf.mxu0
        %v5901 = vadd.f32 0.0, %v5900
        %v5902 = vpop.f32.mrf.mxu0
        %5903 = vmatprep.mubr.bf16.mxu0 0
        %5904 = vmatmul.mubr.bf16.gmra.mxu0 %v5776
        %v5905 = vpop.f32.mrf.mxu0
        %v5906 = vadd.f32 0.0, %v5905
        %v5907 = vpop.f32.mrf.mxu0
        %v5908 = vpop.f32.mrf.mxu0
        %v5909 = vadd.f32 0.0, %v5908
        %v5910 = vpop.f32.mrf.mxu0
        %5911 = vmatprep.mubr.bf16.mxu0 0
        %5912 = vmatmul.mubr.bf16.gmra.mxu0 %v5779
        %v5913 = vpop.f32.mrf.mxu0
        %v5914 = vadd.f32 0.0, %v5913
        %v5915 = vpop.f32.mrf.mxu0
        %v5916 = vpop.f32.mrf.mxu0
        %v5917 = vadd.f32 0.0, %v5916
        %v5918 = vpop.f32.mrf.mxu0
        %5919 = vmatprep.mubr.bf16.mxu0 0
        %5920 = vmatmul.mubr.bf16.gmra.mxu0 %v5782
        %v5921 = vpop.f32.mrf.mxu0
        %v5922 = vadd.f32 0.0, %v5921
        %v5923 = vpop.f32.mrf.mxu0
        %v5924 = vpop.f32.mrf.mxu0
        %v5925 = vadd.f32 0.0, %v5924
        %v5926 = vpop.f32.mrf.mxu0
        %5927 = vmatprep.mubr.bf16.mxu0 0
        %5928 = vmatmul.mubr.bf16.gmra.mxu0 %v5785
        %v5929 = vpop.f32.mrf.mxu0
        %v5930 = vadd.f32 0.0, %v5929
        %v5931 = vpop.f32.mrf.mxu0
        %v5932 = vpop.f32.mrf.mxu0
        %v5933 = vadd.f32 0.0, %v5932
        %v5934 = vpop.f32.mrf.mxu0
        %5935 = vmatprep.mubr.bf16.mxu0 0
        %5936 = vmatmul.mubr.bf16.gmra.mxu0 %v5788
        %v5937 = vpop.f32.mrf.mxu0
        %v5938 = vadd.f32 0.0, %v5937
        %v5939 = vpop.f32.mrf.mxu0
        %v5940 = vpop.f32.mrf.mxu0
        %v5941 = vadd.f32 0.0, %v5940
        %v5942 = vpop.f32.mrf.mxu0
        %5943 = vmatprep.mubr.bf16.mxu0 0
        %5944 = vmatmul.mubr.bf16.gmra.mxu0 %v5791
        %v5945 = vpop.f32.mrf.mxu0
        %v5946 = vadd.f32 0.0, %v5945
        %v5947 = vpop.f32.mrf.mxu0
        %v5948 = vpop.f32.mrf.mxu0
        %v5949 = vadd.f32 0.0, %v5948
        %v5950 = vpop.f32.mrf.mxu0
        %5951 = vmatprep.mubr.bf16.mxu0 0
        %5952 = vmatmul.mubr.bf16.gmra.mxu0 %v5794
        %v5953 = vpop.f32.mrf.mxu0
        %v5954 = vadd.f32 0.0, %v5953
        %v5955 = vpop.f32.mrf.mxu0
        %v5956 = vpop.f32.mrf.mxu0
        %v5957 = vadd.f32 0.0, %v5956
        %v5958 = vpop.f32.mrf.mxu0
        %5959 = vdwg.mxu0
        %v5960 = vadd.f32 %v5274, %v5834
        %v5961 = vadd.f32 %v5275, %v5837
        %v5962 = vadd.f32 %v5276, %v5842
        %v5963 = vadd.f32 %v5277, %v5845
        %v5964 = vadd.f32 %v5278, %v5850
        %v5965 = vadd.f32 %v5279, %v5853
        %v5966 = vadd.f32 %v5280, %v5858
        %v5967 = vadd.f32 %v5281, %v5861
        %v5968 = vadd.f32 %v5282, %v5866
        %v5969 = vadd.f32 %v5283, %v5869
        %v5970 = vadd.f32 %v5284, %v5874
        %v5971 = vadd.f32 %v5285, %v5877
        %v5972 = vadd.f32 %v5286, %v5882
        %v5973 = vadd.f32 %v5287, %v5885
        %v5974 = vadd.f32 %v5288, %v5890
        %v5975 = vadd.f32 %v5289, %v5893
        %v5976 = vadd.f32 %v5290, %v5898
        %v5977 = vadd.f32 %v5291, %v5901
        %v5978 = vadd.f32 %v5292, %v5906
        %v5979 = vadd.f32 %v5293, %v5909
        %v5980 = vadd.f32 %v5294, %v5914
        %v5981 = vadd.f32 %v5295, %v5917
        %v5982 = vadd.f32 %v5296, %v5922
        %v5983 = vadd.f32 %v5297, %v5925
        %v5984 = vadd.f32 %v5298, %v5930
        %v5985 = vadd.f32 %v5299, %v5933
        %v5986 = vadd.f32 %v5300, %v5938
        %v5987 = vadd.f32 %v5301, %v5941
        %v5988 = vadd.f32 %v5302, %v5946
        %v5989 = vadd.f32 %v5303, %v5949
        %v5990 = vadd.f32 %v5304, %v5954
        %v5991 = vadd.f32 %v5305, %v5957
        %v5992 = vld [vmem:[%s4947] sm:$0xe]
        %v5993 = vld [vmem:[%s4947 + $0x14] sm:$0xe]
        %v5994 = vld [vmem:[%s4947 + $0x28] sm:$0xe]
        %v5995 = vld [vmem:[%s4947 + $0x3c] sm:$0xe]
        %v5996 = vld [vmem:[%s4947 + $0x50] sm:$0xe]
        %v5997 = vld [vmem:[%s4947 + $0x64] sm:$0xe]
        %v5998 = vld [vmem:[%s4947 + $0x78] sm:$0xe]
        %v5999 = vld [vmem:[%s4947 + $0x8c] sm:$0xe]
        %v6040 = vrot.slane %v5992, 5
        %v6041 = vrot.slane %v6040, 4
        %v6042 = vrot.slane %v5307, 5
        %v6043 = vsel %vm3051, %v6041, %v6042
        %v6044 = vrot.slane %v6042, 4
        %v6045 = vrot.slane %v5308, 5
        %v6046 = vsel %vm3051, %v6044, %v6045
        %v6047 = vrot.slane %v6045, 4
        %v6048 = vrot.slane %v5309, 5
        %v6049 = vsel %vm3051, %v6047, %v6048
        %v6050 = vrot.slane %v6048, 4
        %v6051 = vrot.slane %v5310, 5
        %v6052 = vsel %vm3051, %v6050, %v6051
        %v6053 = vrot.slane %v5993, 5
        %v6054 = vrot.slane %v6053, 4
        %v6055 = vrot.slane %v5312, 5
        %v6056 = vsel %vm3051, %v6054, %v6055
        %v6057 = vrot.slane %v6055, 4
        %v6058 = vrot.slane %v5313, 5
        %v6059 = vsel %vm3051, %v6057, %v6058
        %v6060 = vrot.slane %v6058, 4
        %v6061 = vrot.slane %v5314, 5
        %v6062 = vsel %vm3051, %v6060, %v6061
        %v6063 = vrot.slane %v6061, 4
        %v6064 = vrot.slane %v5315, 5
        %v6065 = vsel %vm3051, %v6063, %v6064
        %v6066 = vrot.slane %v5994, 5
        %v6067 = vrot.slane %v6066, 4
        %v6068 = vrot.slane %v5317, 5
        %v6069 = vsel %vm3051, %v6067, %v6068
        %v6070 = vrot.slane %v6068, 4
        %v6071 = vrot.slane %v5318, 5
        %v6072 = vsel %vm3051, %v6070, %v6071
        %v6073 = vrot.slane %v6071, 4
        %v6074 = vrot.slane %v5319, 5
        %v6075 = vsel %vm3051, %v6073, %v6074
        %v6076 = vrot.slane %v6074, 4
        %v6077 = vrot.slane %v5320, 5
        %v6078 = vsel %vm3051, %v6076, %v6077
        %v6079 = vrot.slane %v5995, 5
        %v6080 = vrot.slane %v6079, 4
        %v6081 = vrot.slane %v5322, 5
        %v6082 = vsel %vm3051, %v6080, %v6081
        %v6083 = vrot.slane %v6081, 4
        %v6084 = vrot.slane %v5323, 5
        %v6085 = vsel %vm3051, %v6083, %v6084
        %v6086 = vrot.slane %v6084, 4
        %v6087 = vrot.slane %v5324, 5
        %v6088 = vsel %vm3051, %v6086, %v6087
        %v6089 = vrot.slane %v6087, 4
        %v6090 = vrot.slane %v5325, 5
        %v6091 = vsel %vm3051, %v6089, %v6090
        %v6092 = vrot.slane %v5996, 5
        %v6093 = vrot.slane %v6092, 4
        %v6094 = vrot.slane %v5327, 5
        %v6095 = vsel %vm3051, %v6093, %v6094
        %v6096 = vrot.slane %v6094, 4
        %v6097 = vrot.slane %v5328, 5
        %v6098 = vsel %vm3051, %v6096, %v6097
        %v6099 = vrot.slane %v6097, 4
        %v6100 = vrot.slane %v5329, 5
        %v6101 = vsel %vm3051, %v6099, %v6100
        %v6102 = vrot.slane %v6100, 4
        %v6103 = vrot.slane %v5330, 5
        %v6104 = vsel %vm3051, %v6102, %v6103
        %v6105 = vrot.slane %v5997, 5
        %v6106 = vrot.slane %v6105, 4
        %v6107 = vrot.slane %v5332, 5
        %v6108 = vsel %vm3051, %v6106, %v6107
        %v6109 = vrot.slane %v6107, 4
        %v6110 = vrot.slane %v5333, 5
        %v6111 = vsel %vm3051, %v6109, %v6110
        %v6112 = vrot.slane %v6110, 4
        %v6113 = vrot.slane %v5334, 5
        %v6114 = vsel %vm3051, %v6112, %v6113
        %v6115 = vrot.slane %v6113, 4
        %v6116 = vrot.slane %v5335, 5
        %v6117 = vsel %vm3051, %v6115, %v6116
        %v6118 = vrot.slane %v5998, 5
        %v6119 = vrot.slane %v6118, 4
        %v6120 = vrot.slane %v5337, 5
        %v6121 = vsel %vm3051, %v6119, %v6120
        %v6122 = vrot.slane %v6120, 4
        %v6123 = vrot.slane %v5338, 5
        %v6124 = vsel %vm3051, %v6122, %v6123
        %v6125 = vrot.slane %v6123, 4
        %v6126 = vrot.slane %v5339, 5
        %v6127 = vsel %vm3051, %v6125, %v6126
        %v6128 = vrot.slane %v6126, 4
        %v6129 = vrot.slane %v5340, 5
        %v6130 = vsel %vm3051, %v6128, %v6129
        %v6131 = vrot.slane %v5999, 5
        %v6132 = vrot.slane %v6131, 4
        %v6133 = vrot.slane %v5342, 5
        %v6134 = vsel %vm3051, %v6132, %v6133
        %v6135 = vrot.slane %v6133, 4
        %v6136 = vrot.slane %v5343, 5
        %v6137 = vsel %vm3051, %v6135, %v6136
        %v6138 = vrot.slane %v6136, 4
        %v6139 = vrot.slane %v5344, 5
        %v6140 = vsel %vm3051, %v6138, %v6139
        %v6141 = vrot.slane %v6139, 4
        %v6142 = vrot.slane %v5345, 5
        %v6143 = vsel %vm3051, %v6141, %v6142
        %s6144 = scalar_lea.vmem %s1, 16
        %v6145 = vld [vmem:[%s6144] sm:$0x3]
        %v6146 = vunpack.c.l.b16 %v6043
        %v6147 = vunpack.c.l.b16 %v6046
        %v6148 = vunpack.c.l.b16 %v6049
        %v6149 = vunpack.c.l.b16 %v6052
        %v6150 = vunpack.c.l.b16 %v6056
        %v6151 = vunpack.c.l.b16 %v6059
        %v6152 = vunpack.c.l.b16 %v6062
        %v6153 = vunpack.c.l.b16 %v6065
        %v6154 = vunpack.c.l.b16 %v6069
        %v6155 = vunpack.c.l.b16 %v6072
        %v6156 = vunpack.c.l.b16 %v6075
        %v6157 = vunpack.c.l.b16 %v6078
        %v6158 = vunpack.c.l.b16 %v6082
        %v6159 = vunpack.c.l.b16 %v6085
        %v6160 = vunpack.c.l.b16 %v6088
        %v6161 = vunpack.c.l.b16 %v6091
        %v6162 = vunpack.c.l.b16 %v6095
        %v6163 = vunpack.c.l.b16 %v6098
        %v6164 = vunpack.c.l.b16 %v6101
        %v6165 = vunpack.c.l.b16 %v6104
        %v6166 = vunpack.c.l.b16 %v6108
        %v6167 = vunpack.c.l.b16 %v6111
        %v6168 = vunpack.c.l.b16 %v6114
        %v6169 = vunpack.c.l.b16 %v6117
        %v6170 = vunpack.c.l.b16 %v6121
        %v6171 = vunpack.c.l.b16 %v6124
        %v6172 = vunpack.c.l.b16 %v6127
        %v6173 = vunpack.c.l.b16 %v6130
        %v6174 = vunpack.c.l.b16 %v6134
        %v6175 = vunpack.c.l.b16 %v6137
        %v6176 = vunpack.c.l.b16 %v6140
        %v6177 = vunpack.c.l.b16 %v6143
        %v6178 = vpack.c.b16 %v6147, %v6146
        %v6179 = vpack.c.b16 %v6149, %v6148
        %v6180 = vpack.c.b16 %v6151, %v6150
        %v6181 = vpack.c.b16 %v6153, %v6152
        %v6182 = vpack.c.b16 %v6155, %v6154
        %v6183 = vpack.c.b16 %v6157, %v6156
        %v6184 = vpack.c.b16 %v6159, %v6158
        %v6185 = vpack.c.b16 %v6161, %v6160
        %v6186 = vpack.c.b16 %v6163, %v6162
        %v6187 = vpack.c.b16 %v6165, %v6164
        %v6188 = vpack.c.b16 %v6167, %v6166
        %v6189 = vpack.c.b16 %v6169, %v6168
        %v6190 = vpack.c.b16 %v6171, %v6170
        %v6191 = vpack.c.b16 %v6173, %v6172
        %v6192 = vpack.c.b16 %v6175, %v6174
        %v6193 = vpack.c.b16 %v6177, %v6176
        %v6195 = vsel %vm2516, %v6178, 0
        %v6198 = vsel %vm2516, %v6179, 0
        %v6201 = vsel %vm2516, %v6180, 0
        %v6204 = vsel %vm2516, %v6181, 0
        %v6207 = vsel %vm2516, %v6182, 0
        %v6210 = vsel %vm2516, %v6183, 0
        %v6213 = vsel %vm2516, %v6184, 0
        %v6216 = vsel %vm2516, %v6185, 0
        %v6219 = vsel %vm2516, %v6186, 0
        %v6222 = vsel %vm2516, %v6187, 0
        %v6225 = vsel %vm2516, %v6188, 0
        %v6228 = vsel %vm2516, %v6189, 0
        %v6231 = vsel %vm2516, %v6190, 0
        %v6234 = vsel %vm2516, %v6191, 0
        %v6237 = vsel %vm2516, %v6192, 0
        %v6240 = vsel %vm2516, %v6193, 0
        %v6243 = vand.u32 %v6145, %v2568
        %6245 = vmatprep.subr.bf16.mxu0 0
        %6246 = vmatpush1.bf16.msra.mxu0 0
        %6247 = vmatprep.subr.bf16.mxu0 0
        %6248 = vmatpush1.bf16.msra.mxu0 0
        %6249 = vmatprep.subr.bf16.mxu0 0
        %6250 = vmatpush1.bf16.msra.mxu0 0
        %6251 = vmatprep.subr.bf16.mxu0 0
        %6252 = vmatpush1.bf16.msra.mxu0 0
        %6253 = vmatprep.subr.bf16.mxu0 0
        %6254 = vmatpush1.bf16.msra.mxu0 0
        %6255 = vmatprep.subr.bf16.mxu0 0
        %6256 = vmatpush1.bf16.msra.mxu0 0
        %6257 = vmatprep.subr.bf16.mxu0 0
        %6258 = vmatpush1.bf16.msra.mxu0 0
        %6259 = vmatprep.subr.bf16.mxu0 0
        %6260 = vmatpush1.bf16.msra.mxu0 %v6243
        %6261 = vmatprep.subr.bf16.mxu0 0
        %6262 = vmatpush2.bf16.msra.mxu0 0
        %6263 = vmatprep.subr.bf16.mxu0 0
        %6264 = vmatpush2.bf16.msra.mxu0 0
        %6265 = vmatprep.subr.bf16.mxu0 0
        %6266 = vmatpush2.bf16.msra.mxu0 0
        %6267 = vmatprep.subr.bf16.mxu0 0
        %6268 = vmatpush2.bf16.msra.mxu0 0
        %6269 = vmatprep.subr.bf16.mxu0 0
        %6270 = vmatpush2.bf16.msra.mxu0 0
        %6271 = vmatprep.subr.bf16.mxu0 0
        %6272 = vmatpush2.bf16.msra.mxu0 0
        %6273 = vmatprep.subr.bf16.mxu0 0
        %6274 = vmatpush2.bf16.msra.mxu0 0
        %6275 = vmatprep.subr.bf16.mxu0 0
        %6276 = vmatpush2.bf16.msra.mxu0 0
        %6277 = vmatprep.mubr.bf16.mxu0 0
        %6278 = vmatmul.mubr.bf16.gmra.mxu0 %v6195
        %v6279 = vpop.f32.mrf.mxu0
        %v6280 = vadd.f32 0.0, %v6279
        %v6281 = vpop.f32.mrf.mxu0
        %v6282 = vpop.f32.mrf.mxu0
        %v6283 = vadd.f32 0.0, %v6282
        %v6284 = vpop.f32.mrf.mxu0
        %6285 = vmatprep.mubr.bf16.mxu0 0
        %6286 = vmatmul.mubr.bf16.gmra.mxu0 %v6198
        %v6287 = vpop.f32.mrf.mxu0
        %v6288 = vadd.f32 0.0, %v6287
        %v6289 = vpop.f32.mrf.mxu0
        %v6290 = vpop.f32.mrf.mxu0
        %v6291 = vadd.f32 0.0, %v6290
        %v6292 = vpop.f32.mrf.mxu0
        %6293 = vmatprep.mubr.bf16.mxu0 0
        %6294 = vmatmul.mubr.bf16.gmra.mxu0 %v6201
        %v6295 = vpop.f32.mrf.mxu0
        %v6296 = vadd.f32 0.0, %v6295
        %v6297 = vpop.f32.mrf.mxu0
        %v6298 = vpop.f32.mrf.mxu0
        %v6299 = vadd.f32 0.0, %v6298
        %v6300 = vpop.f32.mrf.mxu0
        %6301 = vmatprep.mubr.bf16.mxu0 0
        %6302 = vmatmul.mubr.bf16.gmra.mxu0 %v6204
        %v6303 = vpop.f32.mrf.mxu0
        %v6304 = vadd.f32 0.0, %v6303
        %v6305 = vpop.f32.mrf.mxu0
        %v6306 = vpop.f32.mrf.mxu0
        %v6307 = vadd.f32 0.0, %v6306
        %v6308 = vpop.f32.mrf.mxu0
        %6309 = vmatprep.mubr.bf16.mxu0 0
        %6310 = vmatmul.mubr.bf16.gmra.mxu0 %v6207
        %v6311 = vpop.f32.mrf.mxu0
        %v6312 = vadd.f32 0.0, %v6311
        %v6313 = vpop.f32.mrf.mxu0
        %v6314 = vpop.f32.mrf.mxu0
        %v6315 = vadd.f32 0.0, %v6314
        %v6316 = vpop.f32.mrf.mxu0
        %6317 = vmatprep.mubr.bf16.mxu0 0
        %6318 = vmatmul.mubr.bf16.gmra.mxu0 %v6210
        %v6319 = vpop.f32.mrf.mxu0
        %v6320 = vadd.f32 0.0, %v6319
        %v6321 = vpop.f32.mrf.mxu0
        %v6322 = vpop.f32.mrf.mxu0
        %v6323 = vadd.f32 0.0, %v6322
        %v6324 = vpop.f32.mrf.mxu0
        %6325 = vmatprep.mubr.bf16.mxu0 0
        %6326 = vmatmul.mubr.bf16.gmra.mxu0 %v6213
        %v6327 = vpop.f32.mrf.mxu0
        %v6328 = vadd.f32 0.0, %v6327
        %v6329 = vpop.f32.mrf.mxu0
        %v6330 = vpop.f32.mrf.mxu0
        %v6331 = vadd.f32 0.0, %v6330
        %v6332 = vpop.f32.mrf.mxu0
        %6333 = vmatprep.mubr.bf16.mxu0 0
        %6334 = vmatmul.mubr.bf16.gmra.mxu0 %v6216
        %v6335 = vpop.f32.mrf.mxu0
        %v6336 = vadd.f32 0.0, %v6335
        %v6337 = vpop.f32.mrf.mxu0
        %v6338 = vpop.f32.mrf.mxu0
        %v6339 = vadd.f32 0.0, %v6338
        %v6340 = vpop.f32.mrf.mxu0
        %6341 = vmatprep.mubr.bf16.mxu0 0
        %6342 = vmatmul.mubr.bf16.gmra.mxu0 %v6219
        %v6343 = vpop.f32.mrf.mxu0
        %v6344 = vadd.f32 0.0, %v6343
        %v6345 = vpop.f32.mrf.mxu0
        %v6346 = vpop.f32.mrf.mxu0
        %v6347 = vadd.f32 0.0, %v6346
        %v6348 = vpop.f32.mrf.mxu0
        %6349 = vmatprep.mubr.bf16.mxu0 0
        %6350 = vmatmul.mubr.bf16.gmra.mxu0 %v6222
        %v6351 = vpop.f32.mrf.mxu0
        %v6352 = vadd.f32 0.0, %v6351
        %v6353 = vpop.f32.mrf.mxu0
        %v6354 = vpop.f32.mrf.mxu0
        %v6355 = vadd.f32 0.0, %v6354
        %v6356 = vpop.f32.mrf.mxu0
        %6357 = vmatprep.mubr.bf16.mxu0 0
        %6358 = vmatmul.mubr.bf16.gmra.mxu0 %v6225
        %v6359 = vpop.f32.mrf.mxu0
        %v6360 = vadd.f32 0.0, %v6359
        %v6361 = vpop.f32.mrf.mxu0
        %v6362 = vpop.f32.mrf.mxu0
        %v6363 = vadd.f32 0.0, %v6362
        %v6364 = vpop.f32.mrf.mxu0
        %6365 = vmatprep.mubr.bf16.mxu0 0
        %6366 = vmatmul.mubr.bf16.gmra.mxu0 %v6228
        %v6367 = vpop.f32.mrf.mxu0
        %v6368 = vadd.f32 0.0, %v6367
        %v6369 = vpop.f32.mrf.mxu0
        %v6370 = vpop.f32.mrf.mxu0
        %v6371 = vadd.f32 0.0, %v6370
        %v6372 = vpop.f32.mrf.mxu0
        %6373 = vmatprep.mubr.bf16.mxu0 0
        %6374 = vmatmul.mubr.bf16.gmra.mxu0 %v6231
        %v6375 = vpop.f32.mrf.mxu0
        %v6376 = vadd.f32 0.0, %v6375
        %v6377 = vpop.f32.mrf.mxu0
        %v6378 = vpop.f32.mrf.mxu0
        %v6379 = vadd.f32 0.0, %v6378
        %v6380 = vpop.f32.mrf.mxu0
        %6381 = vmatprep.mubr.bf16.mxu0 0
        %6382 = vmatmul.mubr.bf16.gmra.mxu0 %v6234
        %v6383 = vpop.f32.mrf.mxu0
        %v6384 = vadd.f32 0.0, %v6383
        %v6385 = vpop.f32.mrf.mxu0
        %v6386 = vpop.f32.mrf.mxu0
        %v6387 = vadd.f32 0.0, %v6386
        %v6388 = vpop.f32.mrf.mxu0
        %6389 = vmatprep.mubr.bf16.mxu0 0
        %6390 = vmatmul.mubr.bf16.gmra.mxu0 %v6237
        %v6391 = vpop.f32.mrf.mxu0
        %v6392 = vadd.f32 0.0, %v6391
        %v6393 = vpop.f32.mrf.mxu0
        %v6394 = vpop.f32.mrf.mxu0
        %v6395 = vadd.f32 0.0, %v6394
        %v6396 = vpop.f32.mrf.mxu0
        %6397 = vmatprep.mubr.bf16.mxu0 0
        %6398 = vmatmul.mubr.bf16.gmra.mxu0 %v6240
        %v6399 = vpop.f32.mrf.mxu0
        %v6400 = vadd.f32 0.0, %v6399
        %v6401 = vpop.f32.mrf.mxu0
        %v6402 = vpop.f32.mrf.mxu0
        %v6403 = vadd.f32 0.0, %v6402
        %v6404 = vpop.f32.mrf.mxu0
        %6405 = vdwg.mxu0
        %v6406 = vadd.f32 %v5960, %v6280
        %v6407 = vadd.f32 %v5961, %v6283
        %v6408 = vadd.f32 %v5962, %v6288
        %v6409 = vadd.f32 %v5963, %v6291
        %v6410 = vadd.f32 %v5964, %v6296
        %v6411 = vadd.f32 %v5965, %v6299
        %v6412 = vadd.f32 %v5966, %v6304
        %v6413 = vadd.f32 %v5967, %v6307
        %v6414 = vadd.f32 %v5968, %v6312
        %v6415 = vadd.f32 %v5969, %v6315
        %v6416 = vadd.f32 %v5970, %v6320
        %v6417 = vadd.f32 %v5971, %v6323
        %v6418 = vadd.f32 %v5972, %v6328
        %v6419 = vadd.f32 %v5973, %v6331
        %v6420 = vadd.f32 %v5974, %v6336
        %v6421 = vadd.f32 %v5975, %v6339
        %v6422 = vadd.f32 %v5976, %v6344
        %v6423 = vadd.f32 %v5977, %v6347
        %v6424 = vadd.f32 %v5978, %v6352
        %v6425 = vadd.f32 %v5979, %v6355
        %v6426 = vadd.f32 %v5980, %v6360
        %v6427 = vadd.f32 %v5981, %v6363
        %v6428 = vadd.f32 %v5982, %v6368
        %v6429 = vadd.f32 %v5983, %v6371
        %v6430 = vadd.f32 %v5984, %v6376
        %v6431 = vadd.f32 %v5985, %v6379
        %v6432 = vadd.f32 %v5986, %v6384
        %v6433 = vadd.f32 %v5987, %v6387
        %v6434 = vadd.f32 %v5988, %v6392
        %v6435 = vadd.f32 %v5989, %v6395
        %v6436 = vadd.f32 %v5990, %v6400
        %v6437 = vadd.f32 %v5991, %v6403
        %v6438 = vld [vmem:[%s2] sm:$0x1]
        %v6440 = vlaneseq
        %v6441 = vshrl.u32 %v6440, 7
        %v6442 = vsub.s32 0, %v6441
        %v6443 = vrot.slane %v6438, %v6442
        %v6445 = vadd.f32 %v6406, %v6443
        %v6446 = vadd.f32 %v6407, %v6443
        %v6447 = vadd.f32 %v6408, %v6443
        %v6448 = vadd.f32 %v6409, %v6443
        %v6449 = vadd.f32 %v6410, %v6443
        %v6450 = vadd.f32 %v6411, %v6443
        %v6451 = vadd.f32 %v6412, %v6443
        %v6452 = vadd.f32 %v6413, %v6443
        %v6453 = vadd.f32 %v6414, %v6443
        %v6454 = vadd.f32 %v6415, %v6443
        %v6455 = vadd.f32 %v6416, %v6443
        %v6456 = vadd.f32 %v6417, %v6443
        %v6457 = vadd.f32 %v6418, %v6443
        %v6458 = vadd.f32 %v6419, %v6443
        %v6459 = vadd.f32 %v6420, %v6443
        %v6460 = vadd.f32 %v6421, %v6443
        %v6461 = vadd.f32 %v6422, %v6443
        %v6462 = vadd.f32 %v6423, %v6443
        %v6463 = vadd.f32 %v6424, %v6443
        %v6464 = vadd.f32 %v6425, %v6443
        %v6465 = vadd.f32 %v6426, %v6443
        %v6466 = vadd.f32 %v6427, %v6443
        %v6467 = vadd.f32 %v6428, %v6443
        %v6468 = vadd.f32 %v6429, %v6443
        %v6469 = vadd.f32 %v6430, %v6443
        %v6470 = vadd.f32 %v6431, %v6443
        %v6471 = vadd.f32 %v6432, %v6443
        %v6472 = vadd.f32 %v6433, %v6443
        %v6473 = vadd.f32 %v6434, %v6443
        %v6474 = vadd.f32 %v6435, %v6443
        %v6475 = vadd.f32 %v6436, %v6443
        %v6476 = vadd.f32 %v6437, %v6443
        %v6477 = vmax.f32 %v6445, 0.0
        %v6478 = vmax.f32 %v6446, 0.0
        %v6479 = vmax.f32 %v6447, 0.0
        %v6480 = vmax.f32 %v6448, 0.0
        %v6481 = vmax.f32 %v6449, 0.0
        %v6482 = vmax.f32 %v6450, 0.0
        %v6483 = vmax.f32 %v6451, 0.0
        %v6484 = vmax.f32 %v6452, 0.0
        %v6485 = vmax.f32 %v6453, 0.0
        %v6486 = vmax.f32 %v6454, 0.0
        %v6487 = vmax.f32 %v6455, 0.0
        %v6488 = vmax.f32 %v6456, 0.0
        %v6489 = vmax.f32 %v6457, 0.0
        %v6490 = vmax.f32 %v6458, 0.0
        %v6491 = vmax.f32 %v6459, 0.0
        %v6492 = vmax.f32 %v6460, 0.0
        %v6493 = vmax.f32 %v6461, 0.0
        %v6494 = vmax.f32 %v6462, 0.0
        %v6495 = vmax.f32 %v6463, 0.0
        %v6496 = vmax.f32 %v6464, 0.0
        %v6497 = vmax.f32 %v6465, 0.0
        %v6498 = vmax.f32 %v6466, 0.0
        %v6499 = vmax.f32 %v6467, 0.0
        %v6500 = vmax.f32 %v6468, 0.0
        %v6501 = vmax.f32 %v6469, 0.0
        %v6502 = vmax.f32 %v6470, 0.0
        %v6503 = vmax.f32 %v6471, 0.0
        %v6504 = vmax.f32 %v6472, 0.0
        %v6505 = vmax.f32 %v6473, 0.0
        %v6506 = vmax.f32 %v6474, 0.0
        %v6507 = vmax.f32 %v6475, 0.0
        %v6508 = vmax.f32 %v6476, 0.0
        %v6509 = vpack.c.bf16 %v6478, %v6477
        %v6510 = vpack.c.bf16 %v6480, %v6479
        %v6511 = vpack.c.bf16 %v6482, %v6481
        %v6512 = vpack.c.bf16 %v6484, %v6483
        %v6513 = vpack.c.bf16 %v6486, %v6485
        %v6514 = vpack.c.bf16 %v6488, %v6487
        %v6515 = vpack.c.bf16 %v6490, %v6489
        %v6516 = vpack.c.bf16 %v6492, %v6491
        %v6517 = vpack.c.bf16 %v6494, %v6493
        %v6518 = vpack.c.bf16 %v6496, %v6495
        %v6519 = vpack.c.bf16 %v6498, %v6497
        %v6520 = vpack.c.bf16 %v6500, %v6499
        %v6521 = vpack.c.bf16 %v6502, %v6501
        %v6522 = vpack.c.bf16 %v6504, %v6503
        %v6523 = vpack.c.bf16 %v6506, %v6505
        %v6524 = vpack.c.bf16 %v6508, %v6507
        %v6541 = vunpack.c.l.b16 %v6509
        %v6542 = vunpack.c.h.b16 %v6509
        %v6543 = vunpack.c.l.b16 %v6510
        %v6544 = vunpack.c.h.b16 %v6510
        %v6545 = vunpack.c.l.b16 %v6511
        %v6546 = vunpack.c.h.b16 %v6511
        %v6547 = vunpack.c.l.b16 %v6512
        %v6548 = vunpack.c.h.b16 %v6512
        %v6549 = vunpack.c.l.b16 %v6513
        %v6550 = vunpack.c.h.b16 %v6513
        %v6551 = vunpack.c.l.b16 %v6514
        %v6552 = vunpack.c.h.b16 %v6514
        %v6553 = vunpack.c.l.b16 %v6515
        %v6554 = vunpack.c.h.b16 %v6515
        %v6555 = vunpack.c.l.b16 %v6516
        %v6556 = vunpack.c.h.b16 %v6516
        %v6557 = vunpack.c.l.b16 %v6517
        %v6558 = vunpack.c.h.b16 %v6517
        %v6559 = vunpack.c.l.b16 %v6518
        %v6560 = vunpack.c.h.b16 %v6518
        %v6561 = vunpack.c.l.b16 %v6519
        %v6562 = vunpack.c.h.b16 %v6519
        %v6563 = vunpack.c.l.b16 %v6520
        %v6564 = vunpack.c.h.b16 %v6520
        %v6565 = vunpack.c.l.b16 %v6521
        %v6566 = vunpack.c.h.b16 %v6521
        %v6567 = vunpack.c.l.b16 %v6522
        %v6568 = vunpack.c.h.b16 %v6522
        %v6569 = vunpack.c.l.b16 %v6523
        %v6570 = vunpack.c.h.b16 %v6523
        %v6571 = vunpack.c.l.b16 %v6524
        %v6572 = vunpack.c.h.b16 %v6524
        %v6573 = vpack.c.b16 %v6541, %v6541
        %v6574 = vpack.c.b16 %v6542, %v6542
        %v6575 = vpack.c.b16 %v6543, %v6543
        %v6576 = vpack.c.b16 %v6544, %v6544
        %v6577 = vpack.c.b16 %v6545, %v6545
        %v6578 = vpack.c.b16 %v6546, %v6546
        %v6579 = vpack.c.b16 %v6547, %v6547
        %v6580 = vpack.c.b16 %v6548, %v6548
        %v6581 = vpack.c.b16 %v6549, %v6549
        %v6582 = vpack.c.b16 %v6550, %v6550
        %v6583 = vpack.c.b16 %v6551, %v6551
        %v6584 = vpack.c.b16 %v6552, %v6552
        %v6585 = vpack.c.b16 %v6553, %v6553
        %v6586 = vpack.c.b16 %v6554, %v6554
        %v6587 = vpack.c.b16 %v6555, %v6555
        %v6588 = vpack.c.b16 %v6556, %v6556
        %v6589 = vpack.c.b16 %v6557, %v6557
        %v6590 = vpack.c.b16 %v6558, %v6558
        %v6591 = vpack.c.b16 %v6559, %v6559
        %v6592 = vpack.c.b16 %v6560, %v6560
        %v6593 = vpack.c.b16 %v6561, %v6561
        %v6594 = vpack.c.b16 %v6562, %v6562
        %v6595 = vpack.c.b16 %v6563, %v6563
        %v6596 = vpack.c.b16 %v6564, %v6564
        %v6597 = vpack.c.b16 %v6565, %v6565
        %v6598 = vpack.c.b16 %v6566, %v6566
        %v6599 = vpack.c.b16 %v6567, %v6567
        %v6600 = vpack.c.b16 %v6568, %v6568
        %v6601 = vpack.c.b16 %v6569, %v6569
        %v6602 = vpack.c.b16 %v6570, %v6570
        %v6603 = vpack.c.b16 %v6571, %v6571
        %v6604 = vpack.c.b16 %v6572, %v6572
        %vm6637 = vcmask 519168
        %6638 = vst.msk [vmem:[%s177] sm:$0xf] %vm6637, %v6573
        %6639 = vst.msk [vmem:[%s177 + $0x4] sm:$0xf] %vm6637, %v6574
        %6640 = vst.msk [vmem:[%s177 + $0x8] sm:$0xf] %vm6637, %v6575
        %6641 = vst.msk [vmem:[%s177 + $0xc] sm:$0xf] %vm6637, %v6576
        %6642 = vst.msk [vmem:[%s177 + $0x10] sm:$0xf] %vm6637, %v6577
        %6643 = vst.msk [vmem:[%s177 + $0x14] sm:$0xf] %vm6637, %v6578
        %6644 = vst.msk [vmem:[%s177 + $0x18] sm:$0xf] %vm6637, %v6579
        %6645 = vst.msk [vmem:[%s177 + $0x1c] sm:$0xf] %vm6637, %v6580
        %6646 = vst.msk [vmem:[%s177 + $0x20] sm:$0xf] %vm6637, %v6581
        %6647 = vst.msk [vmem:[%s177 + $0x24] sm:$0xf] %vm6637, %v6582
        %6648 = vst.msk [vmem:[%s177 + $0x28] sm:$0xf] %vm6637, %v6583
        %6649 = vst.msk [vmem:[%s177 + $0x2c] sm:$0xf] %vm6637, %v6584
        %6650 = vst.msk [vmem:[%s177 + $0x30] sm:$0xf] %vm6637, %v6585
        %6651 = vst.msk [vmem:[%s177 + $0x34] sm:$0xf] %vm6637, %v6586
        %6652 = vst.msk [vmem:[%s177 + $0x38] sm:$0xf] %vm6637, %v6587
        %6653 = vst.msk [vmem:[%s177 + $0x3c] sm:$0xf] %vm6637, %v6588
        %6654 = vst.msk [vmem:[%s177 + $0x40] sm:$0xf] %vm6637, %v6589
        %6655 = vst.msk [vmem:[%s177 + $0x44] sm:$0xf] %vm6637, %v6590
        %6656 = vst.msk [vmem:[%s177 + $0x48] sm:$0xf] %vm6637, %v6591
        %6657 = vst.msk [vmem:[%s177 + $0x4c] sm:$0xf] %vm6637, %v6592
        %6658 = vst.msk [vmem:[%s177 + $0x50] sm:$0xf] %vm6637, %v6593
        %6659 = vst.msk [vmem:[%s177 + $0x54] sm:$0xf] %vm6637, %v6594
        %6660 = vst.msk [vmem:[%s177 + $0x58] sm:$0xf] %vm6637, %v6595
        %6661 = vst.msk [vmem:[%s177 + $0x5c] sm:$0xf] %vm6637, %v6596
        %6662 = vst.msk [vmem:[%s177 + $0x60] sm:$0xf] %vm6637, %v6597
        %6663 = vst.msk [vmem:[%s177 + $0x64] sm:$0xf] %vm6637, %v6598
        %6664 = vst.msk [vmem:[%s177 + $0x68] sm:$0xf] %vm6637, %v6599
        %6665 = vst.msk [vmem:[%s177 + $0x6c] sm:$0xf] %vm6637, %v6600
        %6666 = vst.msk [vmem:[%s177 + $0x70] sm:$0xf] %vm6637, %v6601
        %6667 = vst.msk [vmem:[%s177 + $0x74] sm:$0xf] %vm6637, %v6602
        %6668 = vst.msk [vmem:[%s177 + $0x78] sm:$0xf] %vm6637, %v6603
        %6669 = vst.msk [vmem:[%s177 + $0x7c] sm:$0xf] %vm6637, %v6604
        %s6670 = sand.u32 %s107, 1
        %s6671 = scalar_lea.sflag [#allocation4], %s6670
        %s6672 = sand.u32 %s107, 1
        %s6673 = smul.addr %s6672, 128
        %s6674 = scalar_lea.vmem [#allocation3], %s6673
        // Predicated region
        $region37: #{tpu_custom_call.1} parent=31 // pred_check
          %p6675 = pneg %p117
        $region38: #{tpu_custom_call.1} parent=31 // pred_check_branch
          %6677 = sbr.rel (%p6675) target = $region40
        $region39: #{tpu_custom_call.1} parent=31 // pred_region
          %s6678 = smul.u32 8, %s22
          %s6680 = ssub.s32 2048, 2048
          %6681 = vsyncadd %s6671, %s6680
          %s6682 = smul.addr %s6678, 4
          %s6683 = smul.addr %s21, 128
          %s6684 = sadd.s32 %s6682, %s6683
          %s6685 = smul.addr %s6684, 64
          %s6686 = scalar_lea.hbm %s3, %s6685
          %s6687 = sshll.u32 %s6674, 4
          %s6688 = int_to_ptr.vmem [resolvable:$true] %s6687
          %6693 = dma.vmem_to_hbm [thread:$0]  %s6688, 2048, %s6686, %s6671, 64, 64, 4
        $region40: #{tpu_custom_call.1} parent=31 // pred_fallthru
          _
      $region32: #{tpu_custom_call.1} parent=5 // pred_fallthru
        _
      %p6694 = scmp.le.s32.totalorder 2, %s12
      // Predicated region
      $region41: #{tpu_custom_call.1} parent=5 // pred_check
        %p6695 = pneg %p6694
      $region42: #{tpu_custom_call.1} parent=5 // pred_check_branch
        %6697 = sbr.rel (%p6695) target = $region44
      $region43: #{tpu_custom_call.1} parent=5 // pred_region
        %s6698 = ssub.s32 %s12, 2
        // Predicated region
        $region45: #{tpu_custom_call.1} parent=43 // pred_check
          %p6699 = pneg %p123
        $region46: #{tpu_custom_call.1} parent=43 // pred_check_branch
          %6701 = sbr.rel (%p6699) target = $region48
        $region47: #{tpu_custom_call.1} parent=43 // pred_region
          %s6702 = sand.u32 %s108, 1
          %s6703 = scalar_lea.sflag [#allocation4], %s6702
          %s6704 = sand.u32 %s108, 1
          %s6705 = smul.addr %s6704, 128
          %s6706 = scalar_lea.vmem [#allocation3], %s6705
          %6707 = dma.done %s6703, 2048
        $region48: #{tpu_custom_call.1} parent=43 // pred_fallthru
          _
      $region44: #{tpu_custom_call.1} parent=5 // pred_fallthru
        _
    $region6: #{tpu_custom_call.1} parent=1 // loop_footer
      %s16 = sadd.s32 1, %s12
    $region7: #{tpu_custom_call.1} parent=1 // loop_footer_branch
      %11 = sbr.rel target = $region3
    $region8: #{tpu_custom_call.1} parent=1 // loop_exit
      _
    %6708 = vsyncpa [#allocation4], 1
    %s6709 = scalar_lea.sflag [#allocation4], 1
    %6710 = vsyncpa %s6709, 1

</llo_original>
